<compile_context>
chip_gen: v5e
topology: v5e:2x2
jax: 0.10.0
libtpu: 0.0.40
codegen_flags: <defaults>
</compile_context>

<pallas_src>
import functools

import numpy as np
import jax
import jax.numpy as jnp
from jax.experimental import pallas as pl
from jax.experimental.pallas import tpu as pltpu

# ---------------------------------------------------------------------------
# Model hyper-parameters (small, consistent with the module's __init__)
# ---------------------------------------------------------------------------
B = 2            # batch
IN_CHANS = 4     # C
NUM_FRAMES = 1   # T
TUBELET = 1
IMG = 32         # H = W
PATCH = 8
EMBED_DIM = 32          # must be divisible by 16 (3d sincos)
DEPTH = 2
NUM_HEADS = 2
MLP_RATIO = 4
DEC_EMBED_DIM = 32      # must be divisible by 16
DEC_DEPTH = 1
DEC_NUM_HEADS = 2
NORM_PIX_LOSS = False
MASK_RATIO = 0.75

GRID_T = NUM_FRAMES // TUBELET
GRID_H = IMG // PATCH
GRID_W = IMG // PATCH
NUM_PATCHES = GRID_T * GRID_H * GRID_W               # L = 16
PATCH_DIM = TUBELET * PATCH * PATCH * IN_CHANS       # 256
LEN_KEEP = int(NUM_PATCHES * (1.0 - MASK_RATIO))     # 4
S_ENC = LEN_KEEP + 1                                 # 5 (cls + kept tokens)
LN_EPS = 1e-5                                        # nn.LayerNorm default

# MXU operand dtype (f32 accumulation kept everywhere).
MXU_DTYPE = jnp.bfloat16


# ---------------------------------------------------------------------------
# Sin-cos positional embeddings (numpy, identical to the reference code)
# ---------------------------------------------------------------------------
def get_1d_sincos_pos_embed_from_grid(embed_dim, pos):
    assert embed_dim % 2 == 0
    omega = np.arange(embed_dim // 2, dtype=np.float32)
    omega /= embed_dim / 2.0
    omega = 1.0 / 10000 ** omega
    pos = pos.reshape(-1)
    out = np.einsum('m,d->md', pos, omega)
    emb_sin = np.sin(out)
    emb_cos = np.cos(out)
    return np.concatenate([emb_sin, emb_cos], axis=1)


def get_3d_sincos_pos_embed(embed_dim, grid_size, cls_token=False):
    assert embed_dim % 16 == 0
    t_size, h_size, w_size = grid_size
    w_embed_dim = embed_dim // 16 * 6
    h_embed_dim = embed_dim // 16 * 6
    t_embed_dim = embed_dim // 16 * 4
    w_pos_embed = get_1d_sincos_pos_embed_from_grid(w_embed_dim, np.arange(w_size))
    h_pos_embed = get_1d_sincos_pos_embed_from_grid(h_embed_dim, np.arange(h_size))
    t_pos_embed = get_1d_sincos_pos_embed_from_grid(t_embed_dim, np.arange(t_size))
    w_pos_embed = np.tile(w_pos_embed, (t_size * h_size, 1))
    h_pos_embed = np.tile(np.repeat(h_pos_embed, w_size, axis=0), (t_size, 1))
    t_pos_embed = np.repeat(t_pos_embed, h_size * w_size, axis=0)
    pos_embed = np.concatenate((w_pos_embed, h_pos_embed, t_pos_embed), axis=1)
    if cls_token:
        pos_embed = np.concatenate([np.zeros([1, embed_dim]), pos_embed], axis=0)
    return pos_embed


# ---------------------------------------------------------------------------
# In-kernel math helpers (f32 elementwise, bf16 MXU operands)
# ---------------------------------------------------------------------------
def _mm(a, w):
    """MXU matmul: bf16 operands, f32 accumulation."""
    return jnp.dot(a.astype(MXU_DTYPE), w.astype(MXU_DTYPE),
                   preferred_element_type=jnp.float32)


def _ln(x, g, b, eps=LN_EPS):
    """PyTorch-style LayerNorm (biased variance) in f32."""
    mean = jnp.mean(x, axis=-1, keepdims=True)
    var = jnp.mean((x - mean) ** 2, axis=-1, keepdims=True)
    return (x - mean) * jax.lax.rsqrt(var + eps) * g + b


_SQRT1_2 = 0.7071067811865476


def _erf_approx(x):
    # Abramowitz & Stegun 7.1.26 (|err| < 1.5e-7).  Built only from mul/add/div/exp,
    # all of which lower cleanly in Mosaic (no dependence on an erf primitive).
    a1, a2, a3, a4, a5 = 0.254829592, -0.284496736, 1.421413741, -1.453152027, 1.061405429
    p = 0.3275911
    sgn = jnp.where(x >= 0.0, 1.0, -1.0)
    z = jnp.abs(x)
    t = 1.0 / (1.0 + p * z)
    poly = ((((a5 * t + a4) * t + a3) * t + a2) * t + a1) * t
    return sgn * (1.0 - poly * jnp.exp(-z * z))


def _gelu_exact(x):
    """Erf-form GELU, matching nn.GELU() (exact) to ~1.5e-7."""
    return 0.5 * x * (1.0 + _erf_approx(x * _SQRT1_2))


def _vit_block(x, num_heads, n1g, n1b, qkvw, qkvb, projw, projb,
               n2g, n2b, fc1w, fc1b, fc2w, fc2b):
    """One timm-style ViT block on an (S, D) f32 activation; all intermediates in vregs.

    The 1/sqrt(head_dim) attention scale is pre-folded into the Q columns of qkv_w.
    """
    S, D = x.shape
    dh = D // num_heads

    # --- attention branch ---
    h = _ln(x, n1g, n1b)
    qkv = _mm(h, qkvw) + qkvb                  # (S, 3D), f32
    qkv_b16 = qkv.astype(MXU_DTYPE)            # single bf16 cast, sliced per head below
    heads = []
    for hd in range(num_heads):                # static unroll; heads stay in vregs
        q = qkv_b16[:, hd * dh:(hd + 1) * dh]
        k = qkv_b16[:, D + hd * dh:D + (hd + 1) * dh]
        v = qkv_b16[:, 2 * D + hd * dh:2 * D + (hd + 1) * dh]
        s = jax.lax.dot_general(q, k, (((1,), (1,)), ((), ())),
                                preferred_element_type=jnp.float32)   # (S, S) = q @ k^T
        s = s - jnp.max(s, axis=-1, keepdims=True)
        p = jnp.exp(s)
        p = p * pl.reciprocal(jnp.sum(p, axis=-1, keepdims=True), approx=True)
        heads.append(jnp.dot(p.astype(MXU_DTYPE), v,
                             preferred_element_type=jnp.float32))
    attn = jnp.concatenate(heads, axis=-1)     # (S, D) f32, no VMEM scratch round-trip
    x = x + _mm(attn, projw) + projb

    # --- MLP branch ---
    h = _ln(x, n2g, n2b)
    h = _mm(h, fc1w) + fc1b
    h = _gelu_exact(h)
    return x + _mm(h, fc2w) + fc2b


# ---------------------------------------------------------------------------
# Fused encoder kernel:
#   patch-embed matmul + pos add + masking keep-gather + cls prepend
#   + DEPTH transformer blocks + final LN + decoder_embed
# ---------------------------------------------------------------------------
def _encoder_kernel(x_ref, idsk_ref, pew_ref, peb_ref, pos_ref, cls_ref,
                    b_ln1g, b_ln1b, b_qkvw, b_qkvb, b_projw, b_projb,
                    b_ln2g, b_ln2b, b_fc1w, b_fc1b, b_fc2w, b_fc2b,
                    ng_ref, nb_ref, dew_ref, deb_ref,
                    o_ref):
    x = x_ref[0].astype(jnp.float32)                          # (L, PATCH_DIM)
    pos = pos_ref[0]                                          # (L+1, E)

    # Conv3d(kernel==stride) as a patch matmul, fused with the pos-embed add.
    emb = _mm(x, pew_ref[...]) + peb_ref[...] + pos[1:, :]    # (L, E)

    # random-masking keep-gather as a one-hot f32 matmul: kept[r] = emb[ids_keep[r]]
    ids = idsk_ref[0]                                         # (LEN_KEEP, 1) int32
    sel = jnp.where(
        ids == jax.lax.broadcasted_iota(jnp.int32, (LEN_KEEP, NUM_PATCHES), 1),
        1.0, 0.0)                                             # (LEN_KEEP, L) f32
    kept = jnp.dot(sel, emb, preferred_element_type=jnp.float32)   # (LEN_KEEP, E)

    cls = cls_ref[0] + pos[:1, :]                             # (1, E)
    seq = jnp.concatenate([cls, kept], axis=0)                # (S_ENC, E)

    for d in range(DEPTH):                                    # static depth unroll
        seq = _vit_block(seq, NUM_HEADS,
                         b_ln1g[d], b_ln1b[d], b_qkvw[d], b_qkvb[d],
                         b_projw[d], b_projb[d], b_ln2g[d], b_ln2b[d],
                         b_fc1w[d], b_fc1b[d], b_fc2w[d], b_fc2b[d])

    # final encoder LayerNorm fused with decoder_embed
    h = _ln(seq, ng_ref[...], nb_ref[...])
    o_ref[0] = (_mm(h, dew_ref[...]) + deb_ref[...]).astype(o_ref.dtype)


# ---------------------------------------------------------------------------
# Fused decoder kernel:
#   mask-token un-shuffle + dec pos add + DEC_DEPTH blocks + LN + decoder_pred
#   + MAE loss epilogue (per-batch numerator / denominator)
# ---------------------------------------------------------------------------
def _decoder_kernel(y_ref, idsr_ref, mtok_ref, pos_ref,
                    b_ln1g, b_ln1b, b_qkvw, b_qkvb, b_projw, b_projb,
                    b_ln2g, b_ln2b, b_fc1w, b_fc1b, b_fc2w, b_fc2b,
                    ng_ref, nb_ref, pw_ref, pb_ref, tgt_ref,
                    pred_ref, loss_ref, *, norm_pix):
    y = y_ref[0].astype(jnp.float32)                          # (S_ENC, De)
    ids = idsr_ref[0]                                         # (L, 1) int32
    pos = pos_ref[0]                                          # (L+1, De)

    # un-shuffle: row j <- kept[ids_restore[j]] if ids_restore[j] < LEN_KEEP else mask_token
    sel = jnp.where(
        ids == jax.lax.broadcasted_iota(jnp.int32, (NUM_PATCHES, LEN_KEEP), 1),
        1.0, 0.0)                                             # (L, LEN_KEEP) f32
    gathered = jnp.dot(sel, y[1:, :], preferred_element_type=jnp.float32)   # (L, De)
    is_masked = jnp.where(ids >= LEN_KEEP, 1.0, 0.0)          # (L, 1); == the MAE mask
    rows = gathered + is_masked * mtok_ref[0]                 # (L, De)
    seq = jnp.concatenate([y[:1, :], rows], axis=0) + pos     # (L+1, De)

    for d in range(DEC_DEPTH):                                # static depth unroll
        seq = _vit_block(seq, DEC_NUM_HEADS,
                         b_ln1g[d], b_ln1b[d], b_qkvw[d], b_qkvb[d],
                         b_projw[d], b_projb[d], b_ln2g[d], b_ln2b[d],
                         b_fc1w[d], b_fc1b[d], b_fc2w[d], b_fc2b[d])

    # decoder LayerNorm fused with decoder_pred (lane-dense 256-wide output)
    h = _ln(seq, ng_ref[...], nb_ref[...])
    full = _mm(h, pw_ref[...]) + pb_ref[...]                  # (L+1, PATCH_DIM)
    pred = full[1:, :]                                        # drop cls row
    pred_ref[0] = pred.astype(pred_ref.dtype)

    # ---- MAE loss epilogue (no extra HBM round-trip of pred) ----
    tgt = tgt_ref[0].astype(jnp.float32)                      # (L, PATCH_DIM)
    if norm_pix:
        mean = jnp.mean(tgt, axis=-1, keepdims=True)
        var = jnp.sum((tgt - mean) ** 2, axis=-1, keepdims=True) / (PATCH_DIM - 1)
        tgt = (tgt - mean) * jax.lax.rsqrt(var + 1e-6)
    per_patch = jnp.mean((pred - tgt) ** 2, axis=-1, keepdims=True)   # (L, 1)
    num = jnp.sum(per_patch * is_masked, keepdims=True)       # (1, 1)
    den = jnp.sum(is_masked, keepdims=True)                   # (1, 1)
    loss_ref[0] = jnp.concatenate([num, den], axis=-1)        # (1, 2)


# ---------------------------------------------------------------------------
# pallas_call wrappers
# ---------------------------------------------------------------------------
def _rep_spec(a):
    """Full-array block, replicated across the batch grid axis."""
    return pl.BlockSpec(a.shape, lambda b, nd=a.ndim: (0,) * nd)


def pallas_encoder(x_patches, ids_keep, params):
    Bx = x_patches.shape[0]
    e = params['enc_blocks']
    args = [
        x_patches,                                   # (B, L, PATCH_DIM)
        ids_keep,                                    # (B, LEN_KEEP, 1) int32
        params['patch_w'], params['patch_b'],
        params['pos_embed'], params['cls_token'],
        e['ln1_g'], e['ln1_b'], e['qkv_w'], e['qkv_b'],
        e['proj_w'], e['proj_b'], e['ln2_g'], e['ln2_b'],
        e['fc1_w'], e['fc1_b'], e['fc2_w'], e['fc2_b'],
        params['norm_g'], params['norm_b'],
        params['dec_embed_w'], params['dec_embed_b'],
    ]
    in_specs = [
        pl.BlockSpec((1, NUM_PATCHES, PATCH_DIM), lambda b: (b, 0, 0)),
        pl.BlockSpec((1, LEN_KEEP, 1), lambda b: (b, 0, 0)),
    ] + [_rep_spec(a) for a in args[2:]]
    return pl.pallas_call(
        _encoder_kernel,
        grid=(Bx,),
        in_specs=in_specs,
        out_specs=pl.BlockSpec((1, S_ENC, DEC_EMBED_DIM), lambda b: (b, 0, 0)),
        out_shape=jax.ShapeDtypeStruct((Bx, S_ENC, DEC_EMBED_DIM), jnp.float32),
        compiler_params=pltpu.CompilerParams(dimension_semantics=("parallel",)),
    )(*args)


def pallas_decoder(y_enc, ids_restore, target, params):
    Bx = y_enc.shape[0]
    d = params['dec_blocks']
    args = [
        y_enc,                                       # (B, S_ENC, De)
        ids_restore,                                 # (B, L, 1) int32
        params['mask_token'], params['dec_pos_embed'],
        d['ln1_g'], d['ln1_b'], d['qkv_w'], d['qkv_b'],
        d['proj_w'], d['proj_b'], d['ln2_g'], d['ln2_b'],
        d['fc1_w'], d['fc1_b'], d['fc2_w'], d['fc2_b'],
        params['dec_norm_g'], params['dec_norm_b'],
        params['dec_pred_w'], params['dec_pred_b'],
        target,                                      # (B, L, PATCH_DIM)
    ]
    in_specs = [
        pl.BlockSpec((1, S_ENC, DEC_EMBED_DIM), lambda b: (b, 0, 0)),
        pl.BlockSpec((1, NUM_PATCHES, 1), lambda b: (b, 0, 0)),
    ] + [_rep_spec(a) for a in args[2:-1]] + [
        pl.BlockSpec((1, NUM_PATCHES, PATCH_DIM), lambda b: (b, 0, 0)),
    ]
    pred, loss_parts = pl.pallas_call(
        functools.partial(_decoder_kernel, norm_pix=NORM_PIX_LOSS),
        grid=(Bx,),
        in_specs=in_specs,
        out_specs=[
            pl.BlockSpec((1, NUM_PATCHES, PATCH_DIM), lambda b: (b, 0, 0)),
            pl.BlockSpec((1, 1, 2), lambda b: (b, 0, 0)),
        ],
        out_shape=[
            jax.ShapeDtypeStruct((Bx, NUM_PATCHES, PATCH_DIM), jnp.float32),
            jax.ShapeDtypeStruct((Bx, 1, 2), jnp.float32),
        ],
        compiler_params=pltpu.CompilerParams(dimension_semantics=("parallel",)),
    )(*args)
    return pred, loss_parts


# ---------------------------------------------------------------------------
# Parameter initialization (deterministic, synthetic; matches reference init scheme)
# ---------------------------------------------------------------------------
def _xavier(key, fan_in, fan_out, dtype=jnp.float32):
    a = float(np.sqrt(6.0 / (fan_in + fan_out)))
    return jax.random.uniform(key, (fan_in, fan_out), jnp.float32, -a, a).astype(dtype)


def _init_blocks(key, depth, dim, num_heads, mlp_ratio):
    """Block params stacked along a leading depth axis; matmul weights in bf16.

    The 1/sqrt(head_dim) attention scale is folded into the Q columns of qkv_w here
    (qkv bias is zero at init, so nothing to fold there).
    """
    hidden = int(dim * mlp_ratio)
    scale = float((dim // num_heads) ** -0.5)
    keys = jax.random.split(key, 4 * depth)
    qkv_w, proj_w, fc1_w, fc2_w = [], [], [], []
    for d in range(depth):
        w = _xavier(keys[4 * d + 0], dim, 3 * dim)
        w = w.at[:, :dim].multiply(scale)           # fold attention scale into Q
        qkv_w.append(w)
        proj_w.append(_xavier(keys[4 * d + 1], dim, dim))
        fc1_w.append(_xavier(keys[4 * d + 2], dim, hidden))
        fc2_w.append(_xavier(keys[4 * d + 3], hidden, dim))
    stack = lambda xs: jnp.stack(xs, axis=0)
    return {
        'ln1_g': jnp.ones((depth, 1, dim), jnp.float32),
        'ln1_b': jnp.zeros((depth, 1, dim), jnp.float32),
        'qkv_w': stack(qkv_w).astype(MXU_DTYPE),
        'qkv_b': jnp.zeros((depth, 1, 3 * dim), jnp.float32),
        'proj_w': stack(proj_w).astype(MXU_DTYPE),
        'proj_b': jnp.zeros((depth, 1, dim), jnp.float32),
        'ln2_g': jnp.ones((depth, 1, dim), jnp.float32),
        'ln2_b': jnp.zeros((depth, 1, dim), jnp.float32),
        'fc1_w': stack(fc1_w).astype(MXU_DTYPE),
        'fc1_b': jnp.zeros((depth, 1, hidden), jnp.float32),
        'fc2_w': stack(fc2_w).astype(MXU_DTYPE),
        'fc2_b': jnp.zeros((depth, 1, dim), jnp.float32),
    }


def init_params(key):
    k_patch, k_cls, k_mask, k_enc, k_dembed, k_dec, k_pred = jax.random.split(key, 7)

    pos_embed = jnp.asarray(
        get_3d_sincos_pos_embed(EMBED_DIM, (GRID_T, GRID_H, GRID_W), cls_token=True),
        jnp.float32)[None]                                    # (1, L+1, E)
    dec_pos_embed = jnp.asarray(
        get_3d_sincos_pos_embed(DEC_EMBED_DIM, (GRID_T, GRID_H, GRID_W), cls_token=True),
        jnp.float32)[None]

    return {
        # Conv3d patch projection flattened to (C*tub*p*p, E) for the in-kernel matmul
        'patch_w': _xavier(k_patch, PATCH_DIM, EMBED_DIM, MXU_DTYPE),
        'patch_b': jnp.zeros((1, EMBED_DIM), jnp.float32),
        'cls_token': 0.02 * jax.random.normal(k_cls, (1, 1, EMBED_DIM), jnp.float32),
        'mask_token': 0.02 * jax.random.normal(k_mask, (1, 1, DEC_EMBED_DIM), jnp.float32),
        'pos_embed': pos_embed,
        'dec_pos_embed': dec_pos_embed,
        'enc_blocks': _init_blocks(k_enc, DEPTH, EMBED_DIM, NUM_HEADS, MLP_RATIO),
        'norm_g': jnp.ones((1, EMBED_DIM), jnp.float32),
        'norm_b': jnp.zeros((1, EMBED_DIM), jnp.float32),
        'dec_embed_w': _xavier(k_dembed, EMBED_DIM, DEC_EMBED_DIM, MXU_DTYPE),
        'dec_embed_b': jnp.zeros((1, DEC_EMBED_DIM), jnp.float32),
        'dec_blocks': _init_blocks(k_dec, DEC_DEPTH, DEC_EMBED_DIM, DEC_NUM_HEADS, MLP_RATIO),
        'dec_norm_g': jnp.ones((1, DEC_EMBED_DIM), jnp.float32),
        'dec_norm_b': jnp.zeros((1, DEC_EMBED_DIM), jnp.float32),
        'dec_pred_w': _xavier(k_pred, DEC_EMBED_DIM, PATCH_DIM, MXU_DTYPE),
        'dec_pred_b': jnp.zeros((1, PATCH_DIM), jnp.float32),
    }


# ---------------------------------------------------------------------------
# Model glue (input rearranges + random masking indices) + forward
# ---------------------------------------------------------------------------
def _extract_conv_patches(imgs):
    # Conv3d(kernel==stride) operand layout: each patch flattened as (c, dt, dh, dw),
    # matching the flattening of the Conv3d weight.
    Bx = imgs.shape[0]
    x = imgs.reshape(Bx, IN_CHANS, GRID_T, TUBELET, GRID_H, PATCH, GRID_W, PATCH)
    x = x.transpose(0, 2, 4, 6, 1, 3, 5, 7)
    return x.reshape(Bx, NUM_PATCHES, PATCH_DIM)


def patchify(imgs):
    # 'b c (t tub) (h p) (w q) -> b (t h w) (tub p q c)' -- loss-target layout.
    Bx = imgs.shape[0]
    x = imgs.reshape(Bx, IN_CHANS, GRID_T, TUBELET, GRID_H, PATCH, GRID_W, PATCH)
    x = x.transpose(0, 2, 4, 6, 3, 5, 7, 1)
    return x.reshape(Bx, NUM_PATCHES, PATCH_DIM)


@jax.jit
def forward(params, imgs, mask_key):
    Bx = imgs.shape[0]
    x_patches = _extract_conv_patches(imgs)
    target = patchify(imgs)

    # TODO(synk): per-sample argsort-based shuffling (random_masking) has no Pallas/Mosaic
    # sort primitive; the two (B, 16) argsorts stay in XLA glue.  The dependent gathers
    # (keep-gather and un-shuffle) ARE executed in-kernel.
    noise = jax.random.uniform(mask_key, (Bx, NUM_PATCHES), jnp.float32)
    ids_shuffle = jnp.argsort(noise, axis=1)
    ids_restore = jnp.argsort(ids_shuffle, axis=1)
    ids_keep = ids_shuffle[:, :LEN_KEEP]
    # identical to gather(mask0, ids_restore) in the reference:
    mask = (ids_restore >= LEN_KEEP).astype(jnp.float32)

    y_enc = pallas_encoder(
        x_patches, ids_keep.reshape(Bx, LEN_KEEP, 1).astype(jnp.int32), params)
    pred, loss_parts = pallas_decoder(
        y_enc, ids_restore.reshape(Bx, NUM_PATCHES, 1).astype(jnp.int32), target, params)

    # Global (sum num_b) / (sum den_b); den > 0 always for mask_ratio = 0.75
    # (no 0/0 guard, matching the reference).
    loss = jnp.sum(loss_parts[:, 0, 0]) / jnp.sum(loss_parts[:, 0, 1])
    return loss, pred, mask


# ---------------------------------------------------------------------------
if __name__ == "__main__":
    root = jax.random.PRNGKey(0)
    k_param, k_img, k_mask = jax.random.split(root, 3)

    params = init_params(k_param)
    imgs = jax.random.normal(k_img, (B, IN_CHANS, NUM_FRAMES, IMG, IMG), jnp.float32)

    loss, pred, mask = forward(params, imgs, k_mask)
    jax.block_until_ready((loss, pred, mask))

    assert pred.shape == (B, NUM_PATCHES, PATCH_DIM)
    assert mask.shape == (B, NUM_PATCHES)
    assert np.isfinite(float(loss))
    print("KERNEL_OK")
</pallas_src>

<mosaic_0001>
module attributes {stable_mosaic.version = 11 : i64} {
  func.func @_encoder_kernel(%arg0: i32, %arg1: memref<1x16x256xf32, #tpu.memory_space<vmem>>, %arg2: memref<1x4x1xi32, #tpu.memory_space<vmem>>, %arg3: memref<256x32xbf16, #tpu.memory_space<vmem>>, %arg4: memref<1x32xf32, #tpu.memory_space<vmem>>, %arg5: memref<1x17x32xf32, #tpu.memory_space<vmem>>, %arg6: memref<1x1x32xf32, #tpu.memory_space<vmem>>, %arg7: memref<2x1x32xf32, #tpu.memory_space<vmem>>, %arg8: memref<2x1x32xf32, #tpu.memory_space<vmem>>, %arg9: memref<2x32x96xbf16, #tpu.memory_space<vmem>>, %arg10: memref<2x1x96xf32, #tpu.memory_space<vmem>>, %arg11: memref<2x32x32xbf16, #tpu.memory_space<vmem>>, %arg12: memref<2x1x32xf32, #tpu.memory_space<vmem>>, %arg13: memref<2x1x32xf32, #tpu.memory_space<vmem>>, %arg14: memref<2x1x32xf32, #tpu.memory_space<vmem>>, %arg15: memref<2x32x128xbf16, #tpu.memory_space<vmem>>, %arg16: memref<2x1x128xf32, #tpu.memory_space<vmem>>, %arg17: memref<2x128x32xbf16, #tpu.memory_space<vmem>>, %arg18: memref<2x1x32xf32, #tpu.memory_space<vmem>>, %arg19: memref<1x32xf32, #tpu.memory_space<vmem>>, %arg20: memref<1x32xf32, #tpu.memory_space<vmem>>, %arg21: memref<32x32xbf16, #tpu.memory_space<vmem>>, %arg22: memref<1x32xf32, #tpu.memory_space<vmem>>, %arg23: memref<1x5x32xf32, #tpu.memory_space<vmem>>) attributes {dimension_semantics = [#tpu.dimension_semantics<parallel>], iteration_bounds = array<i64: 2>, scalar_prefetch = 0 : i64, scratch_operands = 0 : i64, tpu.core_type = #tpu.core_type<tc>, window_params = [{transform_indices = @transform_0, window_bounds = array<i64: 1, 16, 256>}, {transform_indices = @transform_1, window_bounds = array<i64: 1, 4, 1>}, {pipeline_mode = #tpu.pipeline_mode<synchronous>, transform_indices = @transform_2, window_bounds = array<i64: 256, 32>}, {pipeline_mode = #tpu.pipeline_mode<synchronous>, transform_indices = @transform_3, window_bounds = array<i64: 1, 32>}, {pipeline_mode = #tpu.pipeline_mode<synchronous>, transform_indices = @transform_4, window_bounds = array<i64: 1, 17, 32>}, {pipeline_mode = #tpu.pipeline_mode<synchronous>, transform_indices = @transform_5, window_bounds = array<i64: 1, 1, 32>}, {pipeline_mode = #tpu.pipeline_mode<synchronous>, transform_indices = @transform_6, window_bounds = array<i64: 2, 1, 32>}, {pipeline_mode = #tpu.pipeline_mode<synchronous>, transform_indices = @transform_7, window_bounds = array<i64: 2, 1, 32>}, {pipeline_mode = #tpu.pipeline_mode<synchronous>, transform_indices = @transform_8, window_bounds = array<i64: 2, 32, 96>}, {pipeline_mode = #tpu.pipeline_mode<synchronous>, transform_indices = @transform_9, window_bounds = array<i64: 2, 1, 96>}, {pipeline_mode = #tpu.pipeline_mode<synchronous>, transform_indices = @transform_10, window_bounds = array<i64: 2, 32, 32>}, {pipeline_mode = #tpu.pipeline_mode<synchronous>, transform_indices = @transform_11, window_bounds = array<i64: 2, 1, 32>}, {pipeline_mode = #tpu.pipeline_mode<synchronous>, transform_indices = @transform_12, window_bounds = array<i64: 2, 1, 32>}, {pipeline_mode = #tpu.pipeline_mode<synchronous>, transform_indices = @transform_13, window_bounds = array<i64: 2, 1, 32>}, {pipeline_mode = #tpu.pipeline_mode<synchronous>, transform_indices = @transform_14, window_bounds = array<i64: 2, 32, 128>}, {pipeline_mode = #tpu.pipeline_mode<synchronous>, transform_indices = @transform_15, window_bounds = array<i64: 2, 1, 128>}, {pipeline_mode = #tpu.pipeline_mode<synchronous>, transform_indices = @transform_16, window_bounds = array<i64: 2, 128, 32>}, {pipeline_mode = #tpu.pipeline_mode<synchronous>, transform_indices = @transform_17, window_bounds = array<i64: 2, 1, 32>}, {pipeline_mode = #tpu.pipeline_mode<synchronous>, transform_indices = @transform_18, window_bounds = array<i64: 1, 32>}, {pipeline_mode = #tpu.pipeline_mode<synchronous>, transform_indices = @transform_19, window_bounds = array<i64: 1, 32>}, {pipeline_mode = #tpu.pipeline_mode<synchronous>, transform_indices = @transform_20, window_bounds = array<i64: 32, 32>}, {pipeline_mode = #tpu.pipeline_mode<synchronous>, transform_indices = @transform_21, window_bounds = array<i64: 1, 32>}, {transform_indices = @transform_22, window_bounds = array<i64: 1, 5, 32>}]} {
    %c0 = arith.constant 0 : index
    %c0_0 = arith.constant 0 : index
    %c0_1 = arith.constant 0 : index
    %0 = vector.load %arg1[%c0, %c0_0, %c0_1] : memref<1x16x256xf32, #tpu.memory_space<vmem>>, vector<1x16x256xf32>
    %1 = vector.shape_cast %0 : vector<1x16x256xf32> to vector<16x256xf32>
    %c0_2 = arith.constant 0 : index
    %c0_3 = arith.constant 0 : index
    %c0_4 = arith.constant 0 : index
    %2 = vector.load %arg5[%c0_2, %c0_3, %c0_4] : memref<1x17x32xf32, #tpu.memory_space<vmem>>, vector<1x17x32xf32>
    %3 = vector.shape_cast %2 : vector<1x17x32xf32> to vector<17x32xf32>
    %c0_5 = arith.constant 0 : index
    %c0_6 = arith.constant 0 : index
    %4 = vector.load %arg3[%c0_5, %c0_6] : memref<256x32xbf16, #tpu.memory_space<vmem>>, vector<256x32xbf16>
    %5 = arith.truncf %1 : vector<16x256xf32> to vector<16x256xbf16>
    %cst = arith.constant dense<0.000000e+00> : vector<16x32xf32>
    %6 = tpu.matmul %5, %4, %cst {dimension_numbers = #tpu.dot_dimension_numbers<[1], [0], [0], [1], [0, 0, 1, 1], [], []>} : vector<16x256xbf16>, vector<256x32xbf16>, vector<16x32xf32> -> vector<16x32xf32>
    %c0_7 = arith.constant 0 : index
    %c0_8 = arith.constant 0 : index
    %7 = vector.load %arg4[%c0_7, %c0_8] : memref<1x32xf32, #tpu.memory_space<vmem>>, vector<1x32xf32>
    %8 = vector.broadcast %7 : vector<1x32xf32> to vector<16x32xf32>
    %9 = arith.addf %6, %8 : vector<16x32xf32>
    %10 = vector.extract_strided_slice %3 {offsets = [1, 0], sizes = [16, 32], strides = [1, 1]} : vector<17x32xf32> to vector<16x32xf32>
    %11 = arith.addf %9, %10 : vector<16x32xf32>
    %c0_9 = arith.constant 0 : index
    %c0_10 = arith.constant 0 : index
    %c0_11 = arith.constant 0 : index
    %12 = vector.load %arg2[%c0_9, %c0_10, %c0_11] : memref<1x4x1xi32, #tpu.memory_space<vmem>>, vector<1x4x1xi32>
    %13 = vector.shape_cast %12 : vector<1x4x1xi32> to vector<4x1xi32>
    %14 = tpu.iota {dimensions = array<i32: 1>} : vector<4x16xi32>
    %15 = vector.broadcast %13 : vector<4x1xi32> to vector<4x16xi32>
    %16 = arith.cmpi eq, %15, %14 : vector<4x16xi32>
    %cst_12 = arith.constant 1.000000e+00 : f32
    %cst_13 = arith.constant 0.000000e+00 : f32
    %17 = vector.broadcast %cst_12 : f32 to vector<4x16xf32>
    %18 = vector.broadcast %cst_13 : f32 to vector<4x16xf32>
    %19 = arith.select %16, %17, %18 : vector<4x16xi1>, vector<4x16xf32>
    %cst_14 = arith.constant dense<0.000000e+00> : vector<4x32xf32>
    %20 = tpu.matmul %19, %11, %cst_14 {dimension_numbers = #tpu.dot_dimension_numbers<[1], [0], [0], [1], [0, 0, 1, 1], [], []>} : vector<4x16xf32>, vector<16x32xf32>, vector<4x32xf32> -> vector<4x32xf32>
    %c0_15 = arith.constant 0 : index
    %c0_16 = arith.constant 0 : index
    %c0_17 = arith.constant 0 : index
    %21 = vector.load %arg6[%c0_15, %c0_16, %c0_17] : memref<1x1x32xf32, #tpu.memory_space<vmem>>, vector<1x1x32xf32>
    %22 = vector.shape_cast %21 : vector<1x1x32xf32> to vector<1x32xf32>
    %23 = vector.extract_strided_slice %3 {offsets = [0, 0], sizes = [1, 32], strides = [1, 1]} : vector<17x32xf32> to vector<1x32xf32>
    %24 = arith.addf %22, %23 : vector<1x32xf32>
    %25 = tpu.concatenate %24, %20 in 0 : vector<1x32xf32>, vector<4x32xf32> -> vector<5x32xf32>
    %c0_18 = arith.constant 0 : index
    %c0_19 = arith.constant 0 : index
    %c0_20 = arith.constant 0 : index
    %26 = vector.load %arg7[%c0_18, %c0_19, %c0_20] : memref<2x1x32xf32, #tpu.memory_space<vmem>>, vector<1x1x32xf32>
    %27 = vector.shape_cast %26 : vector<1x1x32xf32> to vector<1x32xf32>
    %c0_21 = arith.constant 0 : index
    %c0_22 = arith.constant 0 : index
    %c0_23 = arith.constant 0 : index
    %28 = vector.load %arg8[%c0_21, %c0_22, %c0_23] : memref<2x1x32xf32, #tpu.memory_space<vmem>>, vector<1x1x32xf32>
    %29 = vector.shape_cast %28 : vector<1x1x32xf32> to vector<1x32xf32>
    %c0_24 = arith.constant 0 : index
    %c0_25 = arith.constant 0 : index
    %c0_26 = arith.constant 0 : index
    %30 = vector.load %arg9[%c0_24, %c0_25, %c0_26] : memref<2x32x96xbf16, #tpu.memory_space<vmem>>, vector<1x32x96xbf16>
    %31 = vector.shape_cast %30 : vector<1x32x96xbf16> to vector<32x96xbf16>
    %c0_27 = arith.constant 0 : index
    %c0_28 = arith.constant 0 : index
    %c0_29 = arith.constant 0 : index
    %32 = vector.load %arg10[%c0_27, %c0_28, %c0_29] : memref<2x1x96xf32, #tpu.memory_space<vmem>>, vector<1x1x96xf32>
    %33 = vector.shape_cast %32 : vector<1x1x96xf32> to vector<1x96xf32>
    %c0_30 = arith.constant 0 : index
    %c0_31 = arith.constant 0 : index
    %c0_32 = arith.constant 0 : index
    %34 = vector.load %arg11[%c0_30, %c0_31, %c0_32] : memref<2x32x32xbf16, #tpu.memory_space<vmem>>, vector<1x32x32xbf16>
    %35 = vector.shape_cast %34 : vector<1x32x32xbf16> to vector<32x32xbf16>
    %c0_33 = arith.constant 0 : index
    %c0_34 = arith.constant 0 : index
    %c0_35 = arith.constant 0 : index
    %36 = vector.load %arg12[%c0_33, %c0_34, %c0_35] : memref<2x1x32xf32, #tpu.memory_space<vmem>>, vector<1x1x32xf32>
    %37 = vector.shape_cast %36 : vector<1x1x32xf32> to vector<1x32xf32>
    %c0_36 = arith.constant 0 : index
    %c0_37 = arith.constant 0 : index
    %c0_38 = arith.constant 0 : index
    %38 = vector.load %arg13[%c0_36, %c0_37, %c0_38] : memref<2x1x32xf32, #tpu.memory_space<vmem>>, vector<1x1x32xf32>
    %39 = vector.shape_cast %38 : vector<1x1x32xf32> to vector<1x32xf32>
    %c0_39 = arith.constant 0 : index
    %c0_40 = arith.constant 0 : index
    %c0_41 = arith.constant 0 : index
    %40 = vector.load %arg14[%c0_39, %c0_40, %c0_41] : memref<2x1x32xf32, #tpu.memory_space<vmem>>, vector<1x1x32xf32>
    %41 = vector.shape_cast %40 : vector<1x1x32xf32> to vector<1x32xf32>
    %c0_42 = arith.constant 0 : index
    %c0_43 = arith.constant 0 : index
    %c0_44 = arith.constant 0 : index
    %42 = vector.load %arg15[%c0_42, %c0_43, %c0_44] : memref<2x32x128xbf16, #tpu.memory_space<vmem>>, vector<1x32x128xbf16>
    %43 = vector.shape_cast %42 : vector<1x32x128xbf16> to vector<32x128xbf16>
    %c0_45 = arith.constant 0 : index
    %c0_46 = arith.constant 0 : index
    %c0_47 = arith.constant 0 : index
    %44 = vector.load %arg16[%c0_45, %c0_46, %c0_47] : memref<2x1x128xf32, #tpu.memory_space<vmem>>, vector<1x1x128xf32>
    %45 = vector.shape_cast %44 : vector<1x1x128xf32> to vector<1x128xf32>
    %c0_48 = arith.constant 0 : index
    %c0_49 = arith.constant 0 : index
    %c0_50 = arith.constant 0 : index
    %46 = vector.load %arg17[%c0_48, %c0_49, %c0_50] : memref<2x128x32xbf16, #tpu.memory_space<vmem>>, vector<1x128x32xbf16>
    %47 = vector.shape_cast %46 : vector<1x128x32xbf16> to vector<128x32xbf16>
    %c0_51 = arith.constant 0 : index
    %c0_52 = arith.constant 0 : index
    %c0_53 = arith.constant 0 : index
    %48 = vector.load %arg18[%c0_51, %c0_52, %c0_53] : memref<2x1x32xf32, #tpu.memory_space<vmem>>, vector<1x1x32xf32>
    %49 = vector.shape_cast %48 : vector<1x1x32xf32> to vector<1x32xf32>
    %cst_54 = arith.constant dense<0.000000e+00> : vector<5xf32>
    %50 = vector.multi_reduction <add>, %25, %cst_54 [1] : vector<5x32xf32> to vector<5xf32>
    %51 = vector.shape_cast %50 : vector<5xf32> to vector<5x1xf32>
    %cst_55 = arith.constant 3.200000e+01 : f32
    %52 = vector.broadcast %cst_55 : f32 to vector<5x1xf32>
    %53 = arith.divf %51, %52 : vector<5x1xf32>
    %54 = vector.broadcast %53 : vector<5x1xf32> to vector<5x32xf32>
    %55 = arith.subf %25, %54 : vector<5x32xf32>
    %56 = arith.mulf %55, %55 : vector<5x32xf32>
    %cst_56 = arith.constant dense<0.000000e+00> : vector<5xf32>
    %57 = vector.multi_reduction <add>, %56, %cst_56 [1] : vector<5x32xf32> to vector<5xf32>
    %58 = vector.shape_cast %57 : vector<5xf32> to vector<5x1xf32>
    %cst_57 = arith.constant 3.200000e+01 : f32
    %59 = vector.broadcast %cst_57 : f32 to vector<5x1xf32>
    %60 = arith.divf %58, %59 : vector<5x1xf32>
    %61 = vector.broadcast %53 : vector<5x1xf32> to vector<5x32xf32>
    %62 = arith.subf %25, %61 : vector<5x32xf32>
    %cst_58 = arith.constant 9.99999974E-6 : f32
    %63 = vector.broadcast %cst_58 : f32 to vector<5x1xf32>
    %64 = arith.addf %60, %63 : vector<5x1xf32>
    %65 = math.rsqrt %64 : vector<5x1xf32>
    %66 = vector.broadcast %65 : vector<5x1xf32> to vector<5x32xf32>
    %67 = arith.mulf %62, %66 : vector<5x32xf32>
    %68 = vector.broadcast %27 : vector<1x32xf32> to vector<5x32xf32>
    %69 = arith.mulf %67, %68 : vector<5x32xf32>
    %70 = vector.broadcast %29 : vector<1x32xf32> to vector<5x32xf32>
    %71 = arith.addf %69, %70 : vector<5x32xf32>
    %72 = arith.truncf %71 : vector<5x32xf32> to vector<5x32xbf16>
    %cst_59 = arith.constant dense<0.000000e+00> : vector<5x96xf32>
    %73 = tpu.matmul %72, %31, %cst_59 {dimension_numbers = #tpu.dot_dimension_numbers<[1], [0], [0], [1], [0, 0, 1, 1], [], []>} : vector<5x32xbf16>, vector<32x96xbf16>, vector<5x96xf32> -> vector<5x96xf32>
    %74 = vector.broadcast %33 : vector<1x96xf32> to vector<5x96xf32>
    %75 = arith.addf %73, %74 : vector<5x96xf32>
    %76 = arith.truncf %75 : vector<5x96xf32> to vector<5x96xbf16>
    %77 = vector.extract_strided_slice %76 {offsets = [0, 0], sizes = [5, 16], strides = [1, 1]} : vector<5x96xbf16> to vector<5x16xbf16>
    %78 = vector.extract_strided_slice %76 {offsets = [0, 32], sizes = [5, 16], strides = [1, 1]} : vector<5x96xbf16> to vector<5x16xbf16>
    %79 = vector.extract_strided_slice %76 {offsets = [0, 64], sizes = [5, 16], strides = [1, 1]} : vector<5x96xbf16> to vector<5x16xbf16>
    %cst_60 = arith.constant dense<0.000000e+00> : vector<5x5xf32>
    %80 = tpu.matmul %77, %78, %cst_60 {dimension_numbers = #tpu.dot_dimension_numbers<[1], [1], [0], [0], [0, 0, 1, 0], [], []>} : vector<5x16xbf16>, vector<5x16xbf16>, vector<5x5xf32> -> vector<5x5xf32>
    %cst_61 = arith.constant dense<0xFF800000> : vector<5xf32>
    %81 = vector.multi_reduction <maximumf>, %80, %cst_61 [1] : vector<5x5xf32> to vector<5xf32>
    %82 = vector.shape_cast %81 : vector<5xf32> to vector<5x1xf32>
    %83 = vector.broadcast %82 : vector<5x1xf32> to vector<5x5xf32>
    %84 = arith.subf %80, %83 : vector<5x5xf32>
    %85 = math.exp %84 : vector<5x5xf32>
    %cst_62 = arith.constant dense<0.000000e+00> : vector<5xf32>
    %86 = vector.multi_reduction <add>, %85, %cst_62 [1] : vector<5x5xf32> to vector<5xf32>
    %87 = vector.shape_cast %86 : vector<5xf32> to vector<5x1xf32>
    %88 = tpu.reciprocal %87 {approx = true} : vector<5x1xf32> -> vector<5x1xf32>
    %89 = vector.broadcast %88 : vector<5x1xf32> to vector<5x5xf32>
    %90 = arith.mulf %85, %89 : vector<5x5xf32>
    %91 = arith.truncf %90 : vector<5x5xf32> to vector<5x5xbf16>
    %cst_63 = arith.constant dense<0.000000e+00> : vector<5x16xf32>
    %92 = tpu.matmul %91, %79, %cst_63 {dimension_numbers = #tpu.dot_dimension_numbers<[1], [0], [0], [1], [0, 0, 1, 1], [], []>} : vector<5x5xbf16>, vector<5x16xbf16>, vector<5x16xf32> -> vector<5x16xf32>
    %93 = vector.extract_strided_slice %76 {offsets = [0, 16], sizes = [5, 16], strides = [1, 1]} : vector<5x96xbf16> to vector<5x16xbf16>
    %94 = vector.extract_strided_slice %76 {offsets = [0, 48], sizes = [5, 16], strides = [1, 1]} : vector<5x96xbf16> to vector<5x16xbf16>
    %95 = vector.extract_strided_slice %76 {offsets = [0, 80], sizes = [5, 16], strides = [1, 1]} : vector<5x96xbf16> to vector<5x16xbf16>
    %cst_64 = arith.constant dense<0.000000e+00> : vector<5x5xf32>
    %96 = tpu.matmul %93, %94, %cst_64 {dimension_numbers = #tpu.dot_dimension_numbers<[1], [1], [0], [0], [0, 0, 1, 0], [], []>} : vector<5x16xbf16>, vector<5x16xbf16>, vector<5x5xf32> -> vector<5x5xf32>
    %cst_65 = arith.constant dense<0xFF800000> : vector<5xf32>
    %97 = vector.multi_reduction <maximumf>, %96, %cst_65 [1] : vector<5x5xf32> to vector<5xf32>
    %98 = vector.shape_cast %97 : vector<5xf32> to vector<5x1xf32>
    %99 = vector.broadcast %98 : vector<5x1xf32> to vector<5x5xf32>
    %100 = arith.subf %96, %99 : vector<5x5xf32>
    %101 = math.exp %100 : vector<5x5xf32>
    %cst_66 = arith.constant dense<0.000000e+00> : vector<5xf32>
    %102 = vector.multi_reduction <add>, %101, %cst_66 [1] : vector<5x5xf32> to vector<5xf32>
    %103 = vector.shape_cast %102 : vector<5xf32> to vector<5x1xf32>
    %104 = tpu.reciprocal %103 {approx = true} : vector<5x1xf32> -> vector<5x1xf32>
    %105 = vector.broadcast %104 : vector<5x1xf32> to vector<5x5xf32>
    %106 = arith.mulf %101, %105 : vector<5x5xf32>
    %107 = arith.truncf %106 : vector<5x5xf32> to vector<5x5xbf16>
    %cst_67 = arith.constant dense<0.000000e+00> : vector<5x16xf32>
    %108 = tpu.matmul %107, %95, %cst_67 {dimension_numbers = #tpu.dot_dimension_numbers<[1], [0], [0], [1], [0, 0, 1, 1], [], []>} : vector<5x5xbf16>, vector<5x16xbf16>, vector<5x16xf32> -> vector<5x16xf32>
    %109 = tpu.concatenate %92, %108 in 1 : vector<5x16xf32>, vector<5x16xf32> -> vector<5x32xf32>
    %110 = arith.truncf %109 : vector<5x32xf32> to vector<5x32xbf16>
    %cst_68 = arith.constant dense<0.000000e+00> : vector<5x32xf32>
    %111 = tpu.matmul %110, %35, %cst_68 {dimension_numbers = #tpu.dot_dimension_numbers<[1], [0], [0], [1], [0, 0, 1, 1], [], []>} : vector<5x32xbf16>, vector<32x32xbf16>, vector<5x32xf32> -> vector<5x32xf32>
    %112 = arith.addf %25, %111 : vector<5x32xf32>
    %113 = vector.broadcast %37 : vector<1x32xf32> to vector<5x32xf32>
    %114 = arith.addf %112, %113 : vector<5x32xf32>
    %cst_69 = arith.constant dense<0.000000e+00> : vector<5xf32>
    %115 = vector.multi_reduction <add>, %114, %cst_69 [1] : vector<5x32xf32> to vector<5xf32>
    %116 = vector.shape_cast %115 : vector<5xf32> to vector<5x1xf32>
    %cst_70 = arith.constant 3.200000e+01 : f32
    %117 = vector.broadcast %cst_70 : f32 to vector<5x1xf32>
    %118 = arith.divf %116, %117 : vector<5x1xf32>
    %119 = vector.broadcast %118 : vector<5x1xf32> to vector<5x32xf32>
    %120 = arith.subf %114, %119 : vector<5x32xf32>
    %121 = arith.mulf %120, %120 : vector<5x32xf32>
    %cst_71 = arith.constant dense<0.000000e+00> : vector<5xf32>
    %122 = vector.multi_reduction <add>, %121, %cst_71 [1] : vector<5x32xf32> to vector<5xf32>
    %123 = vector.shape_cast %122 : vector<5xf32> to vector<5x1xf32>
    %cst_72 = arith.constant 3.200000e+01 : f32
    %124 = vector.broadcast %cst_72 : f32 to vector<5x1xf32>
    %125 = arith.divf %123, %124 : vector<5x1xf32>
    %126 = vector.broadcast %118 : vector<5x1xf32> to vector<5x32xf32>
    %127 = arith.subf %114, %126 : vector<5x32xf32>
    %cst_73 = arith.constant 9.99999974E-6 : f32
    %128 = vector.broadcast %cst_73 : f32 to vector<5x1xf32>
    %129 = arith.addf %125, %128 : vector<5x1xf32>
    %130 = math.rsqrt %129 : vector<5x1xf32>
    %131 = vector.broadcast %130 : vector<5x1xf32> to vector<5x32xf32>
    %132 = arith.mulf %127, %131 : vector<5x32xf32>
    %133 = vector.broadcast %39 : vector<1x32xf32> to vector<5x32xf32>
    %134 = arith.mulf %132, %133 : vector<5x32xf32>
    %135 = vector.broadcast %41 : vector<1x32xf32> to vector<5x32xf32>
    %136 = arith.addf %134, %135 : vector<5x32xf32>
    %137 = arith.truncf %136 : vector<5x32xf32> to vector<5x32xbf16>
    %cst_74 = arith.constant dense<0.000000e+00> : vector<5x128xf32>
    %138 = tpu.matmul %137, %43, %cst_74 {dimension_numbers = #tpu.dot_dimension_numbers<[1], [0], [0], [1], [0, 0, 1, 1], [], []>} : vector<5x32xbf16>, vector<32x128xbf16>, vector<5x128xf32> -> vector<5x128xf32>
    %139 = vector.broadcast %45 : vector<1x128xf32> to vector<5x128xf32>
    %140 = arith.addf %138, %139 : vector<5x128xf32>
    %cst_75 = arith.constant 5.000000e-01 : f32
    %141 = vector.broadcast %cst_75 : f32 to vector<5x128xf32>
    %142 = arith.mulf %141, %140 : vector<5x128xf32>
    %cst_76 = arith.constant 0.707106769 : f32
    %143 = vector.broadcast %cst_76 : f32 to vector<5x128xf32>
    %144 = arith.mulf %140, %143 : vector<5x128xf32>
    %cst_77 = arith.constant 0.000000e+00 : f32
    %145 = vector.broadcast %cst_77 : f32 to vector<5x128xf32>
    %146 = arith.cmpf oge, %144, %145 : vector<5x128xf32>
    %cst_78 = arith.constant 1.000000e+00 : f32
    %cst_79 = arith.constant -1.000000e+00 : f32
    %147 = vector.broadcast %cst_78 : f32 to vector<5x128xf32>
    %148 = vector.broadcast %cst_79 : f32 to vector<5x128xf32>
    %149 = arith.select %146, %147, %148 : vector<5x128xi1>, vector<5x128xf32>
    %150 = math.absf %144 : vector<5x128xf32>
    %cst_80 = arith.constant 0.327591091 : f32
    %151 = vector.broadcast %cst_80 : f32 to vector<5x128xf32>
    %152 = arith.mulf %151, %150 : vector<5x128xf32>
    %cst_81 = arith.constant 1.000000e+00 : f32
    %153 = vector.broadcast %cst_81 : f32 to vector<5x128xf32>
    %154 = arith.addf %153, %152 : vector<5x128xf32>
    %cst_82 = arith.constant 1.000000e+00 : f32
    %155 = vector.broadcast %cst_82 : f32 to vector<5x128xf32>
    %156 = arith.divf %155, %154 : vector<5x128xf32>
    %cst_83 = arith.constant 1.06140542 : f32
    %157 = vector.broadcast %cst_83 : f32 to vector<5x128xf32>
    %158 = arith.mulf %157, %156 : vector<5x128xf32>
    %cst_84 = arith.constant -1.45315206 : f32
    %159 = vector.broadcast %cst_84 : f32 to vector<5x128xf32>
    %160 = arith.addf %158, %159 : vector<5x128xf32>
    %161 = arith.mulf %160, %156 : vector<5x128xf32>
    %cst_85 = arith.constant 1.42141378 : f32
    %162 = vector.broadcast %cst_85 : f32 to vector<5x128xf32>
    %163 = arith.addf %161, %162 : vector<5x128xf32>
    %164 = arith.mulf %163, %156 : vector<5x128xf32>
    %cst_86 = arith.constant -0.284496725 : f32
    %165 = vector.broadcast %cst_86 : f32 to vector<5x128xf32>
    %166 = arith.addf %164, %165 : vector<5x128xf32>
    %167 = arith.mulf %166, %156 : vector<5x128xf32>
    %cst_87 = arith.constant 0.254829586 : f32
    %168 = vector.broadcast %cst_87 : f32 to vector<5x128xf32>
    %169 = arith.addf %167, %168 : vector<5x128xf32>
    %170 = arith.mulf %169, %156 : vector<5x128xf32>
    %cst_88 = arith.constant 0.000000e+00 : f32
    %171 = vector.broadcast %cst_88 : f32 to vector<5x128xf32>
    %172 = arith.subf %171, %150 : vector<5x128xf32>
    %173 = arith.mulf %172, %150 : vector<5x128xf32>
    %174 = math.exp %173 : vector<5x128xf32>
    %175 = arith.mulf %170, %174 : vector<5x128xf32>
    %cst_89 = arith.constant 1.000000e+00 : f32
    %176 = vector.broadcast %cst_89 : f32 to vector<5x128xf32>
    %177 = arith.subf %176, %175 : vector<5x128xf32>
    %178 = arith.mulf %149, %177 : vector<5x128xf32>
    %cst_90 = arith.constant 1.000000e+00 : f32
    %179 = vector.broadcast %cst_90 : f32 to vector<5x128xf32>
    %180 = arith.addf %179, %178 : vector<5x128xf32>
    %181 = arith.mulf %142, %180 : vector<5x128xf32>
    %182 = arith.truncf %181 : vector<5x128xf32> to vector<5x128xbf16>
    %cst_91 = arith.constant dense<0.000000e+00> : vector<5x32xf32>
    %183 = tpu.matmul %182, %47, %cst_91 {dimension_numbers = #tpu.dot_dimension_numbers<[1], [0], [0], [1], [0, 0, 1, 1], [], []>} : vector<5x128xbf16>, vector<128x32xbf16>, vector<5x32xf32> -> vector<5x32xf32>
    %184 = arith.addf %114, %183 : vector<5x32xf32>
    %185 = vector.broadcast %49 : vector<1x32xf32> to vector<5x32xf32>
    %186 = arith.addf %184, %185 : vector<5x32xf32>
    %c1 = arith.constant 1 : index
    %c0_92 = arith.constant 0 : index
    %c0_93 = arith.constant 0 : index
    %187 = vector.load %arg7[%c1, %c0_92, %c0_93] : memref<2x1x32xf32, #tpu.memory_space<vmem>>, vector<1x1x32xf32>
    %188 = vector.shape_cast %187 : vector<1x1x32xf32> to vector<1x32xf32>
    %c1_94 = arith.constant 1 : index
    %c0_95 = arith.constant 0 : index
    %c0_96 = arith.constant 0 : index
    %189 = vector.load %arg8[%c1_94, %c0_95, %c0_96] : memref<2x1x32xf32, #tpu.memory_space<vmem>>, vector<1x1x32xf32>
    %190 = vector.shape_cast %189 : vector<1x1x32xf32> to vector<1x32xf32>
    %c1_97 = arith.constant 1 : index
    %c0_98 = arith.constant 0 : index
    %c0_99 = arith.constant 0 : index
    %191 = vector.load %arg9[%c1_97, %c0_98, %c0_99] : memref<2x32x96xbf16, #tpu.memory_space<vmem>>, vector<1x32x96xbf16>
    %192 = vector.shape_cast %191 : vector<1x32x96xbf16> to vector<32x96xbf16>
    %c1_100 = arith.constant 1 : index
    %c0_101 = arith.constant 0 : index
    %c0_102 = arith.constant 0 : index
    %193 = vector.load %arg10[%c1_100, %c0_101, %c0_102] : memref<2x1x96xf32, #tpu.memory_space<vmem>>, vector<1x1x96xf32>
    %194 = vector.shape_cast %193 : vector<1x1x96xf32> to vector<1x96xf32>
    %c1_103 = arith.constant 1 : index
    %c0_104 = arith.constant 0 : index
    %c0_105 = arith.constant 0 : index
    %195 = vector.load %arg11[%c1_103, %c0_104, %c0_105] : memref<2x32x32xbf16, #tpu.memory_space<vmem>>, vector<1x32x32xbf16>
    %196 = vector.shape_cast %195 : vector<1x32x32xbf16> to vector<32x32xbf16>
    %c1_106 = arith.constant 1 : index
    %c0_107 = arith.constant 0 : index
    %c0_108 = arith.constant 0 : index
    %197 = vector.load %arg12[%c1_106, %c0_107, %c0_108] : memref<2x1x32xf32, #tpu.memory_space<vmem>>, vector<1x1x32xf32>
    %198 = vector.shape_cast %197 : vector<1x1x32xf32> to vector<1x32xf32>
    %c1_109 = arith.constant 1 : index
    %c0_110 = arith.constant 0 : index
    %c0_111 = arith.constant 0 : index
    %199 = vector.load %arg13[%c1_109, %c0_110, %c0_111] : memref<2x1x32xf32, #tpu.memory_space<vmem>>, vector<1x1x32xf32>
    %200 = vector.shape_cast %199 : vector<1x1x32xf32> to vector<1x32xf32>
    %c1_112 = arith.constant 1 : index
    %c0_113 = arith.constant 0 : index
    %c0_114 = arith.constant 0 : index
    %201 = vector.load %arg14[%c1_112, %c0_113, %c0_114] : memref<2x1x32xf32, #tpu.memory_space<vmem>>, vector<1x1x32xf32>
    %202 = vector.shape_cast %201 : vector<1x1x32xf32> to vector<1x32xf32>
    %c1_115 = arith.constant 1 : index
    %c0_116 = arith.constant 0 : index
    %c0_117 = arith.constant 0 : index
    %203 = vector.load %arg15[%c1_115, %c0_116, %c0_117] : memref<2x32x128xbf16, #tpu.memory_space<vmem>>, vector<1x32x128xbf16>
    %204 = vector.shape_cast %203 : vector<1x32x128xbf16> to vector<32x128xbf16>
    %c1_118 = arith.constant 1 : index
    %c0_119 = arith.constant 0 : index
    %c0_120 = arith.constant 0 : index
    %205 = vector.load %arg16[%c1_118, %c0_119, %c0_120] : memref<2x1x128xf32, #tpu.memory_space<vmem>>, vector<1x1x128xf32>
    %206 = vector.shape_cast %205 : vector<1x1x128xf32> to vector<1x128xf32>
    %c1_121 = arith.constant 1 : index
    %c0_122 = arith.constant 0 : index
    %c0_123 = arith.constant 0 : index
    %207 = vector.load %arg17[%c1_121, %c0_122, %c0_123] : memref<2x128x32xbf16, #tpu.memory_space<vmem>>, vector<1x128x32xbf16>
    %208 = vector.shape_cast %207 : vector<1x128x32xbf16> to vector<128x32xbf16>
    %c1_124 = arith.constant 1 : index
    %c0_125 = arith.constant 0 : index
    %c0_126 = arith.constant 0 : index
    %209 = vector.load %arg18[%c1_124, %c0_125, %c0_126] : memref<2x1x32xf32, #tpu.memory_space<vmem>>, vector<1x1x32xf32>
    %210 = vector.shape_cast %209 : vector<1x1x32xf32> to vector<1x32xf32>
    %cst_127 = arith.constant dense<0.000000e+00> : vector<5xf32>
    %211 = vector.multi_reduction <add>, %186, %cst_127 [1] : vector<5x32xf32> to vector<5xf32>
    %212 = vector.shape_cast %211 : vector<5xf32> to vector<5x1xf32>
    %cst_128 = arith.constant 3.200000e+01 : f32
    %213 = vector.broadcast %cst_128 : f32 to vector<5x1xf32>
    %214 = arith.divf %212, %213 : vector<5x1xf32>
    %215 = vector.broadcast %214 : vector<5x1xf32> to vector<5x32xf32>
    %216 = arith.subf %186, %215 : vector<5x32xf32>
    %217 = arith.mulf %216, %216 : vector<5x32xf32>
    %cst_129 = arith.constant dense<0.000000e+00> : vector<5xf32>
    %218 = vector.multi_reduction <add>, %217, %cst_129 [1] : vector<5x32xf32> to vector<5xf32>
    %219 = vector.shape_cast %218 : vector<5xf32> to vector<5x1xf32>
    %cst_130 = arith.constant 3.200000e+01 : f32
    %220 = vector.broadcast %cst_130 : f32 to vector<5x1xf32>
    %221 = arith.divf %219, %220 : vector<5x1xf32>
    %222 = vector.broadcast %214 : vector<5x1xf32> to vector<5x32xf32>
    %223 = arith.subf %186, %222 : vector<5x32xf32>
    %cst_131 = arith.constant 9.99999974E-6 : f32
    %224 = vector.broadcast %cst_131 : f32 to vector<5x1xf32>
    %225 = arith.addf %221, %224 : vector<5x1xf32>
    %226 = math.rsqrt %225 : vector<5x1xf32>
    %227 = vector.broadcast %226 : vector<5x1xf32> to vector<5x32xf32>
    %228 = arith.mulf %223, %227 : vector<5x32xf32>
    %229 = vector.broadcast %188 : vector<1x32xf32> to vector<5x32xf32>
    %230 = arith.mulf %228, %229 : vector<5x32xf32>
    %231 = vector.broadcast %190 : vector<1x32xf32> to vector<5x32xf32>
    %232 = arith.addf %230, %231 : vector<5x32xf32>
    %233 = arith.truncf %232 : vector<5x32xf32> to vector<5x32xbf16>
    %cst_132 = arith.constant dense<0.000000e+00> : vector<5x96xf32>
    %234 = tpu.matmul %233, %192, %cst_132 {dimension_numbers = #tpu.dot_dimension_numbers<[1], [0], [0], [1], [0, 0, 1, 1], [], []>} : vector<5x32xbf16>, vector<32x96xbf16>, vector<5x96xf32> -> vector<5x96xf32>
    %235 = vector.broadcast %194 : vector<1x96xf32> to vector<5x96xf32>
    %236 = arith.addf %234, %235 : vector<5x96xf32>
    %237 = arith.truncf %236 : vector<5x96xf32> to vector<5x96xbf16>
    %238 = vector.extract_strided_slice %237 {offsets = [0, 0], sizes = [5, 16], strides = [1, 1]} : vector<5x96xbf16> to vector<5x16xbf16>
    %239 = vector.extract_strided_slice %237 {offsets = [0, 32], sizes = [5, 16], strides = [1, 1]} : vector<5x96xbf16> to vector<5x16xbf16>
    %240 = vector.extract_strided_slice %237 {offsets = [0, 64], sizes = [5, 16], strides = [1, 1]} : vector<5x96xbf16> to vector<5x16xbf16>
    %cst_133 = arith.constant dense<0.000000e+00> : vector<5x5xf32>
    %241 = tpu.matmul %238, %239, %cst_133 {dimension_numbers = #tpu.dot_dimension_numbers<[1], [1], [0], [0], [0, 0, 1, 0], [], []>} : vector<5x16xbf16>, vector<5x16xbf16>, vector<5x5xf32> -> vector<5x5xf32>
    %cst_134 = arith.constant dense<0xFF800000> : vector<5xf32>
    %242 = vector.multi_reduction <maximumf>, %241, %cst_134 [1] : vector<5x5xf32> to vector<5xf32>
    %243 = vector.shape_cast %242 : vector<5xf32> to vector<5x1xf32>
    %244 = vector.broadcast %243 : vector<5x1xf32> to vector<5x5xf32>
    %245 = arith.subf %241, %244 : vector<5x5xf32>
    %246 = math.exp %245 : vector<5x5xf32>
    %cst_135 = arith.constant dense<0.000000e+00> : vector<5xf32>
    %247 = vector.multi_reduction <add>, %246, %cst_135 [1] : vector<5x5xf32> to vector<5xf32>
    %248 = vector.shape_cast %247 : vector<5xf32> to vector<5x1xf32>
    %249 = tpu.reciprocal %248 {approx = true} : vector<5x1xf32> -> vector<5x1xf32>
    %250 = vector.broadcast %249 : vector<5x1xf32> to vector<5x5xf32>
    %251 = arith.mulf %246, %250 : vector<5x5xf32>
    %252 = arith.truncf %251 : vector<5x5xf32> to vector<5x5xbf16>
    %cst_136 = arith.constant dense<0.000000e+00> : vector<5x16xf32>
    %253 = tpu.matmul %252, %240, %cst_136 {dimension_numbers = #tpu.dot_dimension_numbers<[1], [0], [0], [1], [0, 0, 1, 1], [], []>} : vector<5x5xbf16>, vector<5x16xbf16>, vector<5x16xf32> -> vector<5x16xf32>
    %254 = vector.extract_strided_slice %237 {offsets = [0, 16], sizes = [5, 16], strides = [1, 1]} : vector<5x96xbf16> to vector<5x16xbf16>
    %255 = vector.extract_strided_slice %237 {offsets = [0, 48], sizes = [5, 16], strides = [1, 1]} : vector<5x96xbf16> to vector<5x16xbf16>
    %256 = vector.extract_strided_slice %237 {offsets = [0, 80], sizes = [5, 16], strides = [1, 1]} : vector<5x96xbf16> to vector<5x16xbf16>
    %cst_137 = arith.constant dense<0.000000e+00> : vector<5x5xf32>
    %257 = tpu.matmul %254, %255, %cst_137 {dimension_numbers = #tpu.dot_dimension_numbers<[1], [1], [0], [0], [0, 0, 1, 0], [], []>} : vector<5x16xbf16>, vector<5x16xbf16>, vector<5x5xf32> -> vector<5x5xf32>
    %cst_138 = arith.constant dense<0xFF800000> : vector<5xf32>
    %258 = vector.multi_reduction <maximumf>, %257, %cst_138 [1] : vector<5x5xf32> to vector<5xf32>
    %259 = vector.shape_cast %258 : vector<5xf32> to vector<5x1xf32>
    %260 = vector.broadcast %259 : vector<5x1xf32> to vector<5x5xf32>
    %261 = arith.subf %257, %260 : vector<5x5xf32>
    %262 = math.exp %261 : vector<5x5xf32>
    %cst_139 = arith.constant dense<0.000000e+00> : vector<5xf32>
    %263 = vector.multi_reduction <add>, %262, %cst_139 [1] : vector<5x5xf32> to vector<5xf32>
    %264 = vector.shape_cast %263 : vector<5xf32> to vector<5x1xf32>
    %265 = tpu.reciprocal %264 {approx = true} : vector<5x1xf32> -> vector<5x1xf32>
    %266 = vector.broadcast %265 : vector<5x1xf32> to vector<5x5xf32>
    %267 = arith.mulf %262, %266 : vector<5x5xf32>
    %268 = arith.truncf %267 : vector<5x5xf32> to vector<5x5xbf16>
    %cst_140 = arith.constant dense<0.000000e+00> : vector<5x16xf32>
    %269 = tpu.matmul %268, %256, %cst_140 {dimension_numbers = #tpu.dot_dimension_numbers<[1], [0], [0], [1], [0, 0, 1, 1], [], []>} : vector<5x5xbf16>, vector<5x16xbf16>, vector<5x16xf32> -> vector<5x16xf32>
    %270 = tpu.concatenate %253, %269 in 1 : vector<5x16xf32>, vector<5x16xf32> -> vector<5x32xf32>
    %271 = arith.truncf %270 : vector<5x32xf32> to vector<5x32xbf16>
    %cst_141 = arith.constant dense<0.000000e+00> : vector<5x32xf32>
    %272 = tpu.matmul %271, %196, %cst_141 {dimension_numbers = #tpu.dot_dimension_numbers<[1], [0], [0], [1], [0, 0, 1, 1], [], []>} : vector<5x32xbf16>, vector<32x32xbf16>, vector<5x32xf32> -> vector<5x32xf32>
    %273 = arith.addf %186, %272 : vector<5x32xf32>
    %274 = vector.broadcast %198 : vector<1x32xf32> to vector<5x32xf32>
    %275 = arith.addf %273, %274 : vector<5x32xf32>
    %cst_142 = arith.constant dense<0.000000e+00> : vector<5xf32>
    %276 = vector.multi_reduction <add>, %275, %cst_142 [1] : vector<5x32xf32> to vector<5xf32>
    %277 = vector.shape_cast %276 : vector<5xf32> to vector<5x1xf32>
    %cst_143 = arith.constant 3.200000e+01 : f32
    %278 = vector.broadcast %cst_143 : f32 to vector<5x1xf32>
    %279 = arith.divf %277, %278 : vector<5x1xf32>
    %280 = vector.broadcast %279 : vector<5x1xf32> to vector<5x32xf32>
    %281 = arith.subf %275, %280 : vector<5x32xf32>
    %282 = arith.mulf %281, %281 : vector<5x32xf32>
    %cst_144 = arith.constant dense<0.000000e+00> : vector<5xf32>
    %283 = vector.multi_reduction <add>, %282, %cst_144 [1] : vector<5x32xf32> to vector<5xf32>
    %284 = vector.shape_cast %283 : vector<5xf32> to vector<5x1xf32>
    %cst_145 = arith.constant 3.200000e+01 : f32
    %285 = vector.broadcast %cst_145 : f32 to vector<5x1xf32>
    %286 = arith.divf %284, %285 : vector<5x1xf32>
    %287 = vector.broadcast %279 : vector<5x1xf32> to vector<5x32xf32>
    %288 = arith.subf %275, %287 : vector<5x32xf32>
    %cst_146 = arith.constant 9.99999974E-6 : f32
    %289 = vector.broadcast %cst_146 : f32 to vector<5x1xf32>
    %290 = arith.addf %286, %289 : vector<5x1xf32>
    %291 = math.rsqrt %290 : vector<5x1xf32>
    %292 = vector.broadcast %291 : vector<5x1xf32> to vector<5x32xf32>
    %293 = arith.mulf %288, %292 : vector<5x32xf32>
    %294 = vector.broadcast %200 : vector<1x32xf32> to vector<5x32xf32>
    %295 = arith.mulf %293, %294 : vector<5x32xf32>
    %296 = vector.broadcast %202 : vector<1x32xf32> to vector<5x32xf32>
    %297 = arith.addf %295, %296 : vector<5x32xf32>
    %298 = arith.truncf %297 : vector<5x32xf32> to vector<5x32xbf16>
    %cst_147 = arith.constant dense<0.000000e+00> : vector<5x128xf32>
    %299 = tpu.matmul %298, %204, %cst_147 {dimension_numbers = #tpu.dot_dimension_numbers<[1], [0], [0], [1], [0, 0, 1, 1], [], []>} : vector<5x32xbf16>, vector<32x128xbf16>, vector<5x128xf32> -> vector<5x128xf32>
    %300 = vector.broadcast %206 : vector<1x128xf32> to vector<5x128xf32>
    %301 = arith.addf %299, %300 : vector<5x128xf32>
    %cst_148 = arith.constant 5.000000e-01 : f32
    %302 = vector.broadcast %cst_148 : f32 to vector<5x128xf32>
    %303 = arith.mulf %302, %301 : vector<5x128xf32>
    %cst_149 = arith.constant 0.707106769 : f32
    %304 = vector.broadcast %cst_149 : f32 to vector<5x128xf32>
    %305 = arith.mulf %301, %304 : vector<5x128xf32>
    %cst_150 = arith.constant 0.000000e+00 : f32
    %306 = vector.broadcast %cst_150 : f32 to vector<5x128xf32>
    %307 = arith.cmpf oge, %305, %306 : vector<5x128xf32>
    %cst_151 = arith.constant 1.000000e+00 : f32
    %cst_152 = arith.constant -1.000000e+00 : f32
    %308 = vector.broadcast %cst_151 : f32 to vector<5x128xf32>
    %309 = vector.broadcast %cst_152 : f32 to vector<5x128xf32>
    %310 = arith.select %307, %308, %309 : vector<5x128xi1>, vector<5x128xf32>
    %311 = math.absf %305 : vector<5x128xf32>
    %cst_153 = arith.constant 0.327591091 : f32
    %312 = vector.broadcast %cst_153 : f32 to vector<5x128xf32>
    %313 = arith.mulf %312, %311 : vector<5x128xf32>
    %cst_154 = arith.constant 1.000000e+00 : f32
    %314 = vector.broadcast %cst_154 : f32 to vector<5x128xf32>
    %315 = arith.addf %314, %313 : vector<5x128xf32>
    %cst_155 = arith.constant 1.000000e+00 : f32
    %316 = vector.broadcast %cst_155 : f32 to vector<5x128xf32>
    %317 = arith.divf %316, %315 : vector<5x128xf32>
    %cst_156 = arith.constant 1.06140542 : f32
    %318 = vector.broadcast %cst_156 : f32 to vector<5x128xf32>
    %319 = arith.mulf %318, %317 : vector<5x128xf32>
    %cst_157 = arith.constant -1.45315206 : f32
    %320 = vector.broadcast %cst_157 : f32 to vector<5x128xf32>
    %321 = arith.addf %319, %320 : vector<5x128xf32>
    %322 = arith.mulf %321, %317 : vector<5x128xf32>
    %cst_158 = arith.constant 1.42141378 : f32
    %323 = vector.broadcast %cst_158 : f32 to vector<5x128xf32>
    %324 = arith.addf %322, %323 : vector<5x128xf32>
    %325 = arith.mulf %324, %317 : vector<5x128xf32>
    %cst_159 = arith.constant -0.284496725 : f32
    %326 = vector.broadcast %cst_159 : f32 to vector<5x128xf32>
    %327 = arith.addf %325, %326 : vector<5x128xf32>
    %328 = arith.mulf %327, %317 : vector<5x128xf32>
    %cst_160 = arith.constant 0.254829586 : f32
    %329 = vector.broadcast %cst_160 : f32 to vector<5x128xf32>
    %330 = arith.addf %328, %329 : vector<5x128xf32>
    %331 = arith.mulf %330, %317 : vector<5x128xf32>
    %cst_161 = arith.constant 0.000000e+00 : f32
    %332 = vector.broadcast %cst_161 : f32 to vector<5x128xf32>
    %333 = arith.subf %332, %311 : vector<5x128xf32>
    %334 = arith.mulf %333, %311 : vector<5x128xf32>
    %335 = math.exp %334 : vector<5x128xf32>
    %336 = arith.mulf %331, %335 : vector<5x128xf32>
    %cst_162 = arith.constant 1.000000e+00 : f32
    %337 = vector.broadcast %cst_162 : f32 to vector<5x128xf32>
    %338 = arith.subf %337, %336 : vector<5x128xf32>
    %339 = arith.mulf %310, %338 : vector<5x128xf32>
    %cst_163 = arith.constant 1.000000e+00 : f32
    %340 = vector.broadcast %cst_163 : f32 to vector<5x128xf32>
    %341 = arith.addf %340, %339 : vector<5x128xf32>
    %342 = arith.mulf %303, %341 : vector<5x128xf32>
    %343 = arith.truncf %342 : vector<5x128xf32> to vector<5x128xbf16>
    %cst_164 = arith.constant dense<0.000000e+00> : vector<5x32xf32>
    %344 = tpu.matmul %343, %208, %cst_164 {dimension_numbers = #tpu.dot_dimension_numbers<[1], [0], [0], [1], [0, 0, 1, 1], [], []>} : vector<5x128xbf16>, vector<128x32xbf16>, vector<5x32xf32> -> vector<5x32xf32>
    %345 = arith.addf %275, %344 : vector<5x32xf32>
    %346 = vector.broadcast %210 : vector<1x32xf32> to vector<5x32xf32>
    %347 = arith.addf %345, %346 : vector<5x32xf32>
    %c0_165 = arith.constant 0 : index
    %c0_166 = arith.constant 0 : index
    %348 = vector.load %arg19[%c0_165, %c0_166] : memref<1x32xf32, #tpu.memory_space<vmem>>, vector<1x32xf32>
    %c0_167 = arith.constant 0 : index
    %c0_168 = arith.constant 0 : index
    %349 = vector.load %arg20[%c0_167, %c0_168] : memref<1x32xf32, #tpu.memory_space<vmem>>, vector<1x32xf32>
    %cst_169 = arith.constant dense<0.000000e+00> : vector<5xf32>
    %350 = vector.multi_reduction <add>, %347, %cst_169 [1] : vector<5x32xf32> to vector<5xf32>
    %351 = vector.shape_cast %350 : vector<5xf32> to vector<5x1xf32>
    %cst_170 = arith.constant 3.200000e+01 : f32
    %352 = vector.broadcast %cst_170 : f32 to vector<5x1xf32>
    %353 = arith.divf %351, %352 : vector<5x1xf32>
    %354 = vector.broadcast %353 : vector<5x1xf32> to vector<5x32xf32>
    %355 = arith.subf %347, %354 : vector<5x32xf32>
    %356 = arith.mulf %355, %355 : vector<5x32xf32>
    %cst_171 = arith.constant dense<0.000000e+00> : vector<5xf32>
    %357 = vector.multi_reduction <add>, %356, %cst_171 [1] : vector<5x32xf32> to vector<5xf32>
    %358 = vector.shape_cast %357 : vector<5xf32> to vector<5x1xf32>
    %cst_172 = arith.constant 3.200000e+01 : f32
    %359 = vector.broadcast %cst_172 : f32 to vector<5x1xf32>
    %360 = arith.divf %358, %359 : vector<5x1xf32>
    %361 = vector.broadcast %353 : vector<5x1xf32> to vector<5x32xf32>
    %362 = arith.subf %347, %361 : vector<5x32xf32>
    %cst_173 = arith.constant 9.99999974E-6 : f32
    %363 = vector.broadcast %cst_173 : f32 to vector<5x1xf32>
    %364 = arith.addf %360, %363 : vector<5x1xf32>
    %365 = math.rsqrt %364 : vector<5x1xf32>
    %366 = vector.broadcast %365 : vector<5x1xf32> to vector<5x32xf32>
    %367 = arith.mulf %362, %366 : vector<5x32xf32>
    %368 = vector.broadcast %348 : vector<1x32xf32> to vector<5x32xf32>
    %369 = arith.mulf %367, %368 : vector<5x32xf32>
    %370 = vector.broadcast %349 : vector<1x32xf32> to vector<5x32xf32>
    %371 = arith.addf %369, %370 : vector<5x32xf32>
    %c0_174 = arith.constant 0 : index
    %c0_175 = arith.constant 0 : index
    %372 = vector.load %arg21[%c0_174, %c0_175] : memref<32x32xbf16, #tpu.memory_space<vmem>>, vector<32x32xbf16>
    %373 = arith.truncf %371 : vector<5x32xf32> to vector<5x32xbf16>
    %cst_176 = arith.constant dense<0.000000e+00> : vector<5x32xf32>
    %374 = tpu.matmul %373, %372, %cst_176 {dimension_numbers = #tpu.dot_dimension_numbers<[1], [0], [0], [1], [0, 0, 1, 1], [], []>} : vector<5x32xbf16>, vector<32x32xbf16>, vector<5x32xf32> -> vector<5x32xf32>
    %c0_177 = arith.constant 0 : index
    %c0_178 = arith.constant 0 : index
    %375 = vector.load %arg22[%c0_177, %c0_178] : memref<1x32xf32, #tpu.memory_space<vmem>>, vector<1x32xf32>
    %376 = vector.broadcast %375 : vector<1x32xf32> to vector<5x32xf32>
    %377 = arith.addf %374, %376 : vector<5x32xf32>
    %c0_179 = arith.constant 0 : index
    %c0_180 = arith.constant 0 : index
    %c0_181 = arith.constant 0 : index
    %378 = vector.load %arg23[%c0_179, %c0_180, %c0_181] : memref<1x5x32xf32, #tpu.memory_space<vmem>>, vector<1x5x32xf32>
    %379 = vector.shape_cast %378 : vector<1x5x32xf32> to vector<5x32xf32>
    %380 = vector.shape_cast %377 : vector<5x32xf32> to vector<1x5x32xf32>
    tpu.vector_store %arg23[%c0_179, %c0_180, %c0_181], %380 {strides = array<i32>} : memref<1x5x32xf32, #tpu.memory_space<vmem>>, vector<1x5x32xf32>,
    return
  }
  func.func @transform_0(%arg0: i32) -> (i32, i32, i32) {
    %c0_i32 = arith.constant 0 : i32
    %c0_i32_0 = arith.constant 0 : i32
    %c0_i32_1 = arith.constant 0 : i32
    return %arg0, %c0_i32, %c0_i32_0 : i32, i32, i32
  }
  func.func @transform_1(%arg0: i32) -> (i32, i32, i32) {
    %c0_i32 = arith.constant 0 : i32
    %c0_i32_0 = arith.constant 0 : i32
    %c0_i32_1 = arith.constant 0 : i32
    return %arg0, %c0_i32, %c0_i32_0 : i32, i32, i32
  }
  func.func @transform_2(%arg0: i32) -> (i32, i32) {
    %c0_i32 = arith.constant 0 : i32
    %c0_i32_0 = arith.constant 0 : i32
    %c0_i32_1 = arith.constant 0 : i32
    return %c0_i32, %c0_i32_0 : i32, i32
  }
  func.func @transform_3(%arg0: i32) -> (i32, i32) {
    %c0_i32 = arith.constant 0 : i32
    %c0_i32_0 = arith.constant 0 : i32
    %c0_i32_1 = arith.constant 0 : i32
    return %c0_i32, %c0_i32_0 : i32, i32
  }
  func.func @transform_4(%arg0: i32) -> (i32, i32, i32) {
    %c0_i32 = arith.constant 0 : i32
    %c0_i32_0 = arith.constant 0 : i32
    %c0_i32_1 = arith.constant 0 : i32
    %c0_i32_2 = arith.constant 0 : i32
    return %c0_i32, %c0_i32_0, %c0_i32_1 : i32, i32, i32
  }
  func.func @transform_5(%arg0: i32) -> (i32, i32, i32) {
    %c0_i32 = arith.constant 0 : i32
    %c0_i32_0 = arith.constant 0 : i32
    %c0_i32_1 = arith.constant 0 : i32
    %c0_i32_2 = arith.constant 0 : i32
    return %c0_i32, %c0_i32_0, %c0_i32_1 : i32, i32, i32
  }
  func.func @transform_6(%arg0: i32) -> (i32, i32, i32) {
    %c0_i32 = arith.constant 0 : i32
    %c0_i32_0 = arith.constant 0 : i32
    %c0_i32_1 = arith.constant 0 : i32
    %c0_i32_2 = arith.constant 0 : i32
    return %c0_i32, %c0_i32_0, %c0_i32_1 : i32, i32, i32
  }
  func.func @transform_7(%arg0: i32) -> (i32, i32, i32) {
    %c0_i32 = arith.constant 0 : i32
    %c0_i32_0 = arith.constant 0 : i32
    %c0_i32_1 = arith.constant 0 : i32
    %c0_i32_2 = arith.constant 0 : i32
    return %c0_i32, %c0_i32_0, %c0_i32_1 : i32, i32, i32
  }
  func.func @transform_8(%arg0: i32) -> (i32, i32, i32) {
    %c0_i32 = arith.constant 0 : i32
    %c0_i32_0 = arith.constant 0 : i32
    %c0_i32_1 = arith.constant 0 : i32
    %c0_i32_2 = arith.constant 0 : i32
    return %c0_i32, %c0_i32_0, %c0_i32_1 : i32, i32, i32
  }
  func.func @transform_9(%arg0: i32) -> (i32, i32, i32) {
    %c0_i32 = arith.constant 0 : i32
    %c0_i32_0 = arith.constant 0 : i32
    %c0_i32_1 = arith.constant 0 : i32
    %c0_i32_2 = arith.constant 0 : i32
    return %c0_i32, %c0_i32_0, %c0_i32_1 : i32, i32, i32
  }
  func.func @transform_10(%arg0: i32) -> (i32, i32, i32) {
    %c0_i32 = arith.constant 0 : i32
    %c0_i32_0 = arith.constant 0 : i32
    %c0_i32_1 = arith.constant 0 : i32
    %c0_i32_2 = arith.constant 0 : i32
    return %c0_i32, %c0_i32_0, %c0_i32_1 : i32, i32, i32
  }
  func.func @transform_11(%arg0: i32) -> (i32, i32, i32) {
    %c0_i32 = arith.constant 0 : i32
    %c0_i32_0 = arith.constant 0 : i32
    %c0_i32_1 = arith.constant 0 : i32
    %c0_i32_2 = arith.constant 0 : i32
    return %c0_i32, %c0_i32_0, %c0_i32_1 : i32, i32, i32
  }
  func.func @transform_12(%arg0: i32) -> (i32, i32, i32) {
    %c0_i32 = arith.constant 0 : i32
    %c0_i32_0 = arith.constant 0 : i32
    %c0_i32_1 = arith.constant 0 : i32
    %c0_i32_2 = arith.constant 0 : i32
    return %c0_i32, %c0_i32_0, %c0_i32_1 : i32, i32, i32
  }
  func.func @transform_13(%arg0: i32) -> (i32, i32, i32) {
    %c0_i32 = arith.constant 0 : i32
    %c0_i32_0 = arith.constant 0 : i32
    %c0_i32_1 = arith.constant 0 : i32
    %c0_i32_2 = arith.constant 0 : i32
    return %c0_i32, %c0_i32_0, %c0_i32_1 : i32, i32, i32
  }
  func.func @transform_14(%arg0: i32) -> (i32, i32, i32) {
    %c0_i32 = arith.constant 0 : i32
    %c0_i32_0 = arith.constant 0 : i32
    %c0_i32_1 = arith.constant 0 : i32
    %c0_i32_2 = arith.constant 0 : i32
    return %c0_i32, %c0_i32_0, %c0_i32_1 : i32, i32, i32
  }
  func.func @transform_15(%arg0: i32) -> (i32, i32, i32) {
    %c0_i32 = arith.constant 0 : i32
    %c0_i32_0 = arith.constant 0 : i32
    %c0_i32_1 = arith.constant 0 : i32
    %c0_i32_2 = arith.constant 0 : i32
    return %c0_i32, %c0_i32_0, %c0_i32_1 : i32, i32, i32
  }
  func.func @transform_16(%arg0: i32) -> (i32, i32, i32) {
    %c0_i32 = arith.constant 0 : i32
    %c0_i32_0 = arith.constant 0 : i32
    %c0_i32_1 = arith.constant 0 : i32
    %c0_i32_2 = arith.constant 0 : i32
    return %c0_i32, %c0_i32_0, %c0_i32_1 : i32, i32, i32
  }
  func.func @transform_17(%arg0: i32) -> (i32, i32, i32) {
    %c0_i32 = arith.constant 0 : i32
    %c0_i32_0 = arith.constant 0 : i32
    %c0_i32_1 = arith.constant 0 : i32
    %c0_i32_2 = arith.constant 0 : i32
    return %c0_i32, %c0_i32_0, %c0_i32_1 : i32, i32, i32
  }
  func.func @transform_18(%arg0: i32) -> (i32, i32) {
    %c0_i32 = arith.constant 0 : i32
    %c0_i32_0 = arith.constant 0 : i32
    %c0_i32_1 = arith.constant 0 : i32
    return %c0_i32, %c0_i32_0 : i32, i32
  }
  func.func @transform_19(%arg0: i32) -> (i32, i32) {
    %c0_i32 = arith.constant 0 : i32
    %c0_i32_0 = arith.constant 0 : i32
    %c0_i32_1 = arith.constant 0 : i32
    return %c0_i32, %c0_i32_0 : i32, i32
  }
  func.func @transform_20(%arg0: i32) -> (i32, i32) {
    %c0_i32 = arith.constant 0 : i32
    %c0_i32_0 = arith.constant 0 : i32
    %c0_i32_1 = arith.constant 0 : i32
    return %c0_i32, %c0_i32_0 : i32, i32
  }
  func.func @transform_21(%arg0: i32) -> (i32, i32) {
    %c0_i32 = arith.constant 0 : i32
    %c0_i32_0 = arith.constant 0 : i32
    %c0_i32_1 = arith.constant 0 : i32
    return %c0_i32, %c0_i32_0 : i32, i32
  }
  func.func @transform_22(%arg0: i32) -> (i32, i32, i32) {
    %c0_i32 = arith.constant 0 : i32
    %c0_i32_0 = arith.constant 0 : i32
    %c0_i32_1 = arith.constant 0 : i32
    return %arg0, %c0_i32, %c0_i32_0 : i32, i32, i32
  }
}

module attributes {stable_mosaic.version = 11 : i64} {
  func.func @_decoder_kernel(%arg0: i32, %arg1: memref<1x5x32xf32, #tpu.memory_space<vmem>>, %arg2: memref<1x16x1xi32, #tpu.memory_space<vmem>>, %arg3: memref<1x1x32xf32, #tpu.memory_space<vmem>>, %arg4: memref<1x17x32xf32, #tpu.memory_space<vmem>>, %arg5: memref<1x1x32xf32, #tpu.memory_space<vmem>>, %arg6: memref<1x1x32xf32, #tpu.memory_space<vmem>>, %arg7: memref<1x32x96xbf16, #tpu.memory_space<vmem>>, %arg8: memref<1x1x96xf32, #tpu.memory_space<vmem>>, %arg9: memref<1x32x32xbf16, #tpu.memory_space<vmem>>, %arg10: memref<1x1x32xf32, #tpu.memory_space<vmem>>, %arg11: memref<1x1x32xf32, #tpu.memory_space<vmem>>, %arg12: memref<1x1x32xf32, #tpu.memory_space<vmem>>, %arg13: memref<1x32x128xbf16, #tpu.memory_space<vmem>>, %arg14: memref<1x1x128xf32, #tpu.memory_space<vmem>>, %arg15: memref<1x128x32xbf16, #tpu.memory_space<vmem>>, %arg16: memref<1x1x32xf32, #tpu.memory_space<vmem>>, %arg17: memref<1x32xf32, #tpu.memory_space<vmem>>, %arg18: memref<1x32xf32, #tpu.memory_space<vmem>>, %arg19: memref<32x256xbf16, #tpu.memory_space<vmem>>, %arg20: memref<1x256xf32, #tpu.memory_space<vmem>>, %arg21: memref<1x16x256xf32, #tpu.memory_space<vmem>>, %arg22: memref<1x16x256xf32, #tpu.memory_space<vmem>>, %arg23: memref<1x1x2xf32, #tpu.memory_space<vmem>>) attributes {dimension_semantics = [#tpu.dimension_semantics<parallel>], iteration_bounds = array<i64: 2>, scalar_prefetch = 0 : i64, scratch_operands = 0 : i64, tpu.core_type = #tpu.core_type<tc>, window_params = [{transform_indices = @transform_0, window_bounds = array<i64: 1, 5, 32>}, {transform_indices = @transform_1, window_bounds = array<i64: 1, 16, 1>}, {pipeline_mode = #tpu.pipeline_mode<synchronous>, transform_indices = @transform_2, window_bounds = array<i64: 1, 1, 32>}, {pipeline_mode = #tpu.pipeline_mode<synchronous>, transform_indices = @transform_3, window_bounds = array<i64: 1, 17, 32>}, {pipeline_mode = #tpu.pipeline_mode<synchronous>, transform_indices = @transform_4, window_bounds = array<i64: 1, 1, 32>}, {pipeline_mode = #tpu.pipeline_mode<synchronous>, transform_indices = @transform_5, window_bounds = array<i64: 1, 1, 32>}, {pipeline_mode = #tpu.pipeline_mode<synchronous>, transform_indices = @transform_6, window_bounds = array<i64: 1, 32, 96>}, {pipeline_mode = #tpu.pipeline_mode<synchronous>, transform_indices = @transform_7, window_bounds = array<i64: 1, 1, 96>}, {pipeline_mode = #tpu.pipeline_mode<synchronous>, transform_indices = @transform_8, window_bounds = array<i64: 1, 32, 32>}, {pipeline_mode = #tpu.pipeline_mode<synchronous>, transform_indices = @transform_9, window_bounds = array<i64: 1, 1, 32>}, {pipeline_mode = #tpu.pipeline_mode<synchronous>, transform_indices = @transform_10, window_bounds = array<i64: 1, 1, 32>}, {pipeline_mode = #tpu.pipeline_mode<synchronous>, transform_indices = @transform_11, window_bounds = array<i64: 1, 1, 32>}, {pipeline_mode = #tpu.pipeline_mode<synchronous>, transform_indices = @transform_12, window_bounds = array<i64: 1, 32, 128>}, {pipeline_mode = #tpu.pipeline_mode<synchronous>, transform_indices = @transform_13, window_bounds = array<i64: 1, 1, 128>}, {pipeline_mode = #tpu.pipeline_mode<synchronous>, transform_indices = @transform_14, window_bounds = array<i64: 1, 128, 32>}, {pipeline_mode = #tpu.pipeline_mode<synchronous>, transform_indices = @transform_15, window_bounds = array<i64: 1, 1, 32>}, {pipeline_mode = #tpu.pipeline_mode<synchronous>, transform_indices = @transform_16, window_bounds = array<i64: 1, 32>}, {pipeline_mode = #tpu.pipeline_mode<synchronous>, transform_indices = @transform_17, window_bounds = array<i64: 1, 32>}, {pipeline_mode = #tpu.pipeline_mode<synchronous>, transform_indices = @transform_18, window_bounds = array<i64: 32, 256>}, {pipeline_mode = #tpu.pipeline_mode<synchronous>, transform_indices = @transform_19, window_bounds = array<i64: 1, 256>}, {transform_indices = @transform_20, window_bounds = array<i64: 1, 16, 256>}, {transform_indices = @transform_21, window_bounds = array<i64: 1, 16, 256>}, {transform_indices = @transform_22, window_bounds = array<i64: 1, 1, 2>}]} {
    %c0 = arith.constant 0 : index
    %c0_0 = arith.constant 0 : index
    %c0_1 = arith.constant 0 : index
    %0 = vector.load %arg1[%c0, %c0_0, %c0_1] : memref<1x5x32xf32, #tpu.memory_space<vmem>>, vector<1x5x32xf32>
    %1 = vector.shape_cast %0 : vector<1x5x32xf32> to vector<5x32xf32>
    %c0_2 = arith.constant 0 : index
    %c0_3 = arith.constant 0 : index
    %c0_4 = arith.constant 0 : index
    %2 = vector.load %arg2[%c0_2, %c0_3, %c0_4] : memref<1x16x1xi32, #tpu.memory_space<vmem>>, vector<1x16x1xi32>
    %3 = vector.shape_cast %2 : vector<1x16x1xi32> to vector<16x1xi32>
    %c0_5 = arith.constant 0 : index
    %c0_6 = arith.constant 0 : index
    %c0_7 = arith.constant 0 : index
    %4 = vector.load %arg4[%c0_5, %c0_6, %c0_7] : memref<1x17x32xf32, #tpu.memory_space<vmem>>, vector<1x17x32xf32>
    %5 = vector.shape_cast %4 : vector<1x17x32xf32> to vector<17x32xf32>
    %6 = tpu.iota {dimensions = array<i32: 1>} : vector<16x4xi32>
    %7 = vector.broadcast %3 : vector<16x1xi32> to vector<16x4xi32>
    %8 = arith.cmpi eq, %7, %6 : vector<16x4xi32>
    %cst = arith.constant 1.000000e+00 : f32
    %cst_8 = arith.constant 0.000000e+00 : f32
    %9 = vector.broadcast %cst : f32 to vector<16x4xf32>
    %10 = vector.broadcast %cst_8 : f32 to vector<16x4xf32>
    %11 = arith.select %8, %9, %10 : vector<16x4xi1>, vector<16x4xf32>
    %12 = vector.extract_strided_slice %1 {offsets = [1, 0], sizes = [4, 32], strides = [1, 1]} : vector<5x32xf32> to vector<4x32xf32>
    %cst_9 = arith.constant dense<0.000000e+00> : vector<16x32xf32>
    %13 = tpu.matmul %11, %12, %cst_9 {dimension_numbers = #tpu.dot_dimension_numbers<[1], [0], [0], [1], [0, 0, 1, 1], [], []>} : vector<16x4xf32>, vector<4x32xf32>, vector<16x32xf32> -> vector<16x32xf32>
    %c4_i32 = arith.constant 4 : i32
    %14 = vector.broadcast %c4_i32 : i32 to vector<16x1xi32>
    %15 = arith.cmpi sge, %3, %14 : vector<16x1xi32>
    %cst_10 = arith.constant 1.000000e+00 : f32
    %cst_11 = arith.constant 0.000000e+00 : f32
    %16 = vector.broadcast %cst_10 : f32 to vector<16x1xf32>
    %17 = vector.broadcast %cst_11 : f32 to vector<16x1xf32>
    %18 = arith.select %15, %16, %17 : vector<16x1xi1>, vector<16x1xf32>
    %c0_12 = arith.constant 0 : index
    %c0_13 = arith.constant 0 : index
    %c0_14 = arith.constant 0 : index
    %19 = vector.load %arg3[%c0_12, %c0_13, %c0_14] : memref<1x1x32xf32, #tpu.memory_space<vmem>>, vector<1x1x32xf32>
    %20 = vector.shape_cast %19 : vector<1x1x32xf32> to vector<1x32xf32>
    %21 = vector.broadcast %18 : vector<16x1xf32> to vector<16x32xf32>
    %22 = vector.broadcast %20 : vector<1x32xf32> to vector<16x32xf32>
    %23 = arith.mulf %21, %22 : vector<16x32xf32>
    %24 = arith.addf %13, %23 : vector<16x32xf32>
    %25 = vector.extract_strided_slice %1 {offsets = [0, 0], sizes = [1, 32], strides = [1, 1]} : vector<5x32xf32> to vector<1x32xf32>
    %26 = tpu.concatenate %25, %24 in 0 : vector<1x32xf32>, vector<16x32xf32> -> vector<17x32xf32>
    %27 = arith.addf %26, %5 : vector<17x32xf32>
    %c0_15 = arith.constant 0 : index
    %c0_16 = arith.constant 0 : index
    %c0_17 = arith.constant 0 : index
    %28 = vector.load %arg5[%c0_15, %c0_16, %c0_17] : memref<1x1x32xf32, #tpu.memory_space<vmem>>, vector<1x1x32xf32>
    %29 = vector.shape_cast %28 : vector<1x1x32xf32> to vector<1x32xf32>
    %c0_18 = arith.constant 0 : index
    %c0_19 = arith.constant 0 : index
    %c0_20 = arith.constant 0 : index
    %30 = vector.load %arg6[%c0_18, %c0_19, %c0_20] : memref<1x1x32xf32, #tpu.memory_space<vmem>>, vector<1x1x32xf32>
    %31 = vector.shape_cast %30 : vector<1x1x32xf32> to vector<1x32xf32>
    %c0_21 = arith.constant 0 : index
    %c0_22 = arith.constant 0 : index
    %c0_23 = arith.constant 0 : index
    %32 = vector.load %arg7[%c0_21, %c0_22, %c0_23] : memref<1x32x96xbf16, #tpu.memory_space<vmem>>, vector<1x32x96xbf16>
    %33 = vector.shape_cast %32 : vector<1x32x96xbf16> to vector<32x96xbf16>
    %c0_24 = arith.constant 0 : index
    %c0_25 = arith.constant 0 : index
    %c0_26 = arith.constant 0 : index
    %34 = vector.load %arg8[%c0_24, %c0_25, %c0_26] : memref<1x1x96xf32, #tpu.memory_space<vmem>>, vector<1x1x96xf32>
    %35 = vector.shape_cast %34 : vector<1x1x96xf32> to vector<1x96xf32>
    %c0_27 = arith.constant 0 : index
    %c0_28 = arith.constant 0 : index
    %c0_29 = arith.constant 0 : index
    %36 = vector.load %arg9[%c0_27, %c0_28, %c0_29] : memref<1x32x32xbf16, #tpu.memory_space<vmem>>, vector<1x32x32xbf16>
    %37 = vector.shape_cast %36 : vector<1x32x32xbf16> to vector<32x32xbf16>
    %c0_30 = arith.constant 0 : index
    %c0_31 = arith.constant 0 : index
    %c0_32 = arith.constant 0 : index
    %38 = vector.load %arg10[%c0_30, %c0_31, %c0_32] : memref<1x1x32xf32, #tpu.memory_space<vmem>>, vector<1x1x32xf32>
    %39 = vector.shape_cast %38 : vector<1x1x32xf32> to vector<1x32xf32>
    %c0_33 = arith.constant 0 : index
    %c0_34 = arith.constant 0 : index
    %c0_35 = arith.constant 0 : index
    %40 = vector.load %arg11[%c0_33, %c0_34, %c0_35] : memref<1x1x32xf32, #tpu.memory_space<vmem>>, vector<1x1x32xf32>
    %41 = vector.shape_cast %40 : vector<1x1x32xf32> to vector<1x32xf32>
    %c0_36 = arith.constant 0 : index
    %c0_37 = arith.constant 0 : index
    %c0_38 = arith.constant 0 : index
    %42 = vector.load %arg12[%c0_36, %c0_37, %c0_38] : memref<1x1x32xf32, #tpu.memory_space<vmem>>, vector<1x1x32xf32>
    %43 = vector.shape_cast %42 : vector<1x1x32xf32> to vector<1x32xf32>
    %c0_39 = arith.constant 0 : index
    %c0_40 = arith.constant 0 : index
    %c0_41 = arith.constant 0 : index
    %44 = vector.load %arg13[%c0_39, %c0_40, %c0_41] : memref<1x32x128xbf16, #tpu.memory_space<vmem>>, vector<1x32x128xbf16>
    %45 = vector.shape_cast %44 : vector<1x32x128xbf16> to vector<32x128xbf16>
    %c0_42 = arith.constant 0 : index
    %c0_43 = arith.constant 0 : index
    %c0_44 = arith.constant 0 : index
    %46 = vector.load %arg14[%c0_42, %c0_43, %c0_44] : memref<1x1x128xf32, #tpu.memory_space<vmem>>, vector<1x1x128xf32>
    %47 = vector.shape_cast %46 : vector<1x1x128xf32> to vector<1x128xf32>
    %c0_45 = arith.constant 0 : index
    %c0_46 = arith.constant 0 : index
    %c0_47 = arith.constant 0 : index
    %48 = vector.load %arg15[%c0_45, %c0_46, %c0_47] : memref<1x128x32xbf16, #tpu.memory_space<vmem>>, vector<1x128x32xbf16>
    %49 = vector.shape_cast %48 : vector<1x128x32xbf16> to vector<128x32xbf16>
    %c0_48 = arith.constant 0 : index
    %c0_49 = arith.constant 0 : index
    %c0_50 = arith.constant 0 : index
    %50 = vector.load %arg16[%c0_48, %c0_49, %c0_50] : memref<1x1x32xf32, #tpu.memory_space<vmem>>, vector<1x1x32xf32>
    %51 = vector.shape_cast %50 : vector<1x1x32xf32> to vector<1x32xf32>
    %cst_51 = arith.constant dense<0.000000e+00> : vector<17xf32>
    %52 = vector.multi_reduction <add>, %27, %cst_51 [1] : vector<17x32xf32> to vector<17xf32>
    %53 = vector.shape_cast %52 : vector<17xf32> to vector<17x1xf32>
    %cst_52 = arith.constant 3.200000e+01 : f32
    %54 = vector.broadcast %cst_52 : f32 to vector<17x1xf32>
    %55 = arith.divf %53, %54 : vector<17x1xf32>
    %56 = vector.broadcast %55 : vector<17x1xf32> to vector<17x32xf32>
    %57 = arith.subf %27, %56 : vector<17x32xf32>
    %58 = arith.mulf %57, %57 : vector<17x32xf32>
    %cst_53 = arith.constant dense<0.000000e+00> : vector<17xf32>
    %59 = vector.multi_reduction <add>, %58, %cst_53 [1] : vector<17x32xf32> to vector<17xf32>
    %60 = vector.shape_cast %59 : vector<17xf32> to vector<17x1xf32>
    %cst_54 = arith.constant 3.200000e+01 : f32
    %61 = vector.broadcast %cst_54 : f32 to vector<17x1xf32>
    %62 = arith.divf %60, %61 : vector<17x1xf32>
    %63 = vector.broadcast %55 : vector<17x1xf32> to vector<17x32xf32>
    %64 = arith.subf %27, %63 : vector<17x32xf32>
    %cst_55 = arith.constant 9.99999974E-6 : f32
    %65 = vector.broadcast %cst_55 : f32 to vector<17x1xf32>
    %66 = arith.addf %62, %65 : vector<17x1xf32>
    %67 = math.rsqrt %66 : vector<17x1xf32>
    %68 = vector.broadcast %67 : vector<17x1xf32> to vector<17x32xf32>
    %69 = arith.mulf %64, %68 : vector<17x32xf32>
    %70 = vector.broadcast %29 : vector<1x32xf32> to vector<17x32xf32>
    %71 = arith.mulf %69, %70 : vector<17x32xf32>
    %72 = vector.broadcast %31 : vector<1x32xf32> to vector<17x32xf32>
    %73 = arith.addf %71, %72 : vector<17x32xf32>
    %74 = arith.truncf %73 : vector<17x32xf32> to vector<17x32xbf16>
    %cst_56 = arith.constant dense<0.000000e+00> : vector<17x96xf32>
    %75 = tpu.matmul %74, %33, %cst_56 {dimension_numbers = #tpu.dot_dimension_numbers<[1], [0], [0], [1], [0, 0, 1, 1], [], []>} : vector<17x32xbf16>, vector<32x96xbf16>, vector<17x96xf32> -> vector<17x96xf32>
    %76 = vector.broadcast %35 : vector<1x96xf32> to vector<17x96xf32>
    %77 = arith.addf %75, %76 : vector<17x96xf32>
    %78 = arith.truncf %77 : vector<17x96xf32> to vector<17x96xbf16>
    %79 = vector.extract_strided_slice %78 {offsets = [0, 0], sizes = [17, 16], strides = [1, 1]} : vector<17x96xbf16> to vector<17x16xbf16>
    %80 = vector.extract_strided_slice %78 {offsets = [0, 32], sizes = [17, 16], strides = [1, 1]} : vector<17x96xbf16> to vector<17x16xbf16>
    %81 = vector.extract_strided_slice %78 {offsets = [0, 64], sizes = [17, 16], strides = [1, 1]} : vector<17x96xbf16> to vector<17x16xbf16>
    %cst_57 = arith.constant dense<0.000000e+00> : vector<17x17xf32>
    %82 = tpu.matmul %79, %80, %cst_57 {dimension_numbers = #tpu.dot_dimension_numbers<[1], [1], [0], [0], [0, 0, 1, 0], [], []>} : vector<17x16xbf16>, vector<17x16xbf16>, vector<17x17xf32> -> vector<17x17xf32>
    %cst_58 = arith.constant dense<0xFF800000> : vector<17xf32>
    %83 = vector.multi_reduction <maximumf>, %82, %cst_58 [1] : vector<17x17xf32> to vector<17xf32>
    %84 = vector.shape_cast %83 : vector<17xf32> to vector<17x1xf32>
    %85 = vector.broadcast %84 : vector<17x1xf32> to vector<17x17xf32>
    %86 = arith.subf %82, %85 : vector<17x17xf32>
    %87 = math.exp %86 : vector<17x17xf32>
    %cst_59 = arith.constant dense<0.000000e+00> : vector<17xf32>
    %88 = vector.multi_reduction <add>, %87, %cst_59 [1] : vector<17x17xf32> to vector<17xf32>
    %89 = vector.shape_cast %88 : vector<17xf32> to vector<17x1xf32>
    %90 = tpu.reciprocal %89 {approx = true} : vector<17x1xf32> -> vector<17x1xf32>
    %91 = vector.broadcast %90 : vector<17x1xf32> to vector<17x17xf32>
    %92 = arith.mulf %87, %91 : vector<17x17xf32>
    %93 = arith.truncf %92 : vector<17x17xf32> to vector<17x17xbf16>
    %cst_60 = arith.constant dense<0.000000e+00> : vector<17x16xf32>
    %94 = tpu.matmul %93, %81, %cst_60 {dimension_numbers = #tpu.dot_dimension_numbers<[1], [0], [0], [1], [0, 0, 1, 1], [], []>} : vector<17x17xbf16>, vector<17x16xbf16>, vector<17x16xf32> -> vector<17x16xf32>
    %95 = vector.extract_strided_slice %78 {offsets = [0, 16], sizes = [17, 16], strides = [1, 1]} : vector<17x96xbf16> to vector<17x16xbf16>
    %96 = vector.extract_strided_slice %78 {offsets = [0, 48], sizes = [17, 16], strides = [1, 1]} : vector<17x96xbf16> to vector<17x16xbf16>
    %97 = vector.extract_strided_slice %78 {offsets = [0, 80], sizes = [17, 16], strides = [1, 1]} : vector<17x96xbf16> to vector<17x16xbf16>
    %cst_61 = arith.constant dense<0.000000e+00> : vector<17x17xf32>
    %98 = tpu.matmul %95, %96, %cst_61 {dimension_numbers = #tpu.dot_dimension_numbers<[1], [1], [0], [0], [0, 0, 1, 0], [], []>} : vector<17x16xbf16>, vector<17x16xbf16>, vector<17x17xf32> -> vector<17x17xf32>
    %cst_62 = arith.constant dense<0xFF800000> : vector<17xf32>
    %99 = vector.multi_reduction <maximumf>, %98, %cst_62 [1] : vector<17x17xf32> to vector<17xf32>
    %100 = vector.shape_cast %99 : vector<17xf32> to vector<17x1xf32>
    %101 = vector.broadcast %100 : vector<17x1xf32> to vector<17x17xf32>
    %102 = arith.subf %98, %101 : vector<17x17xf32>
    %103 = math.exp %102 : vector<17x17xf32>
    %cst_63 = arith.constant dense<0.000000e+00> : vector<17xf32>
    %104 = vector.multi_reduction <add>, %103, %cst_63 [1] : vector<17x17xf32> to vector<17xf32>
    %105 = vector.shape_cast %104 : vector<17xf32> to vector<17x1xf32>
    %106 = tpu.reciprocal %105 {approx = true} : vector<17x1xf32> -> vector<17x1xf32>
    %107 = vector.broadcast %106 : vector<17x1xf32> to vector<17x17xf32>
    %108 = arith.mulf %103, %107 : vector<17x17xf32>
    %109 = arith.truncf %108 : vector<17x17xf32> to vector<17x17xbf16>
    %cst_64 = arith.constant dense<0.000000e+00> : vector<17x16xf32>
    %110 = tpu.matmul %109, %97, %cst_64 {dimension_numbers = #tpu.dot_dimension_numbers<[1], [0], [0], [1], [0, 0, 1, 1], [], []>} : vector<17x17xbf16>, vector<17x16xbf16>, vector<17x16xf32> -> vector<17x16xf32>
    %111 = tpu.concatenate %94, %110 in 1 : vector<17x16xf32>, vector<17x16xf32> -> vector<17x32xf32>
    %112 = arith.truncf %111 : vector<17x32xf32> to vector<17x32xbf16>
    %cst_65 = arith.constant dense<0.000000e+00> : vector<17x32xf32>
    %113 = tpu.matmul %112, %37, %cst_65 {dimension_numbers = #tpu.dot_dimension_numbers<[1], [0], [0], [1], [0, 0, 1, 1], [], []>} : vector<17x32xbf16>, vector<32x32xbf16>, vector<17x32xf32> -> vector<17x32xf32>
    %114 = arith.addf %27, %113 : vector<17x32xf32>
    %115 = vector.broadcast %39 : vector<1x32xf32> to vector<17x32xf32>
    %116 = arith.addf %114, %115 : vector<17x32xf32>
    %cst_66 = arith.constant dense<0.000000e+00> : vector<17xf32>
    %117 = vector.multi_reduction <add>, %116, %cst_66 [1] : vector<17x32xf32> to vector<17xf32>
    %118 = vector.shape_cast %117 : vector<17xf32> to vector<17x1xf32>
    %cst_67 = arith.constant 3.200000e+01 : f32
    %119 = vector.broadcast %cst_67 : f32 to vector<17x1xf32>
    %120 = arith.divf %118, %119 : vector<17x1xf32>
    %121 = vector.broadcast %120 : vector<17x1xf32> to vector<17x32xf32>
    %122 = arith.subf %116, %121 : vector<17x32xf32>
    %123 = arith.mulf %122, %122 : vector<17x32xf32>
    %cst_68 = arith.constant dense<0.000000e+00> : vector<17xf32>
    %124 = vector.multi_reduction <add>, %123, %cst_68 [1] : vector<17x32xf32> to vector<17xf32>
    %125 = vector.shape_cast %124 : vector<17xf32> to vector<17x1xf32>
    %cst_69 = arith.constant 3.200000e+01 : f32
    %126 = vector.broadcast %cst_69 : f32 to vector<17x1xf32>
    %127 = arith.divf %125, %126 : vector<17x1xf32>
    %128 = vector.broadcast %120 : vector<17x1xf32> to vector<17x32xf32>
    %129 = arith.subf %116, %128 : vector<17x32xf32>
    %cst_70 = arith.constant 9.99999974E-6 : f32
    %130 = vector.broadcast %cst_70 : f32 to vector<17x1xf32>
    %131 = arith.addf %127, %130 : vector<17x1xf32>
    %132 = math.rsqrt %131 : vector<17x1xf32>
    %133 = vector.broadcast %132 : vector<17x1xf32> to vector<17x32xf32>
    %134 = arith.mulf %129, %133 : vector<17x32xf32>
    %135 = vector.broadcast %41 : vector<1x32xf32> to vector<17x32xf32>
    %136 = arith.mulf %134, %135 : vector<17x32xf32>
    %137 = vector.broadcast %43 : vector<1x32xf32> to vector<17x32xf32>
    %138 = arith.addf %136, %137 : vector<17x32xf32>
    %139 = arith.truncf %138 : vector<17x32xf32> to vector<17x32xbf16>
    %cst_71 = arith.constant dense<0.000000e+00> : vector<17x128xf32>
    %140 = tpu.matmul %139, %45, %cst_71 {dimension_numbers = #tpu.dot_dimension_numbers<[1], [0], [0], [1], [0, 0, 1, 1], [], []>} : vector<17x32xbf16>, vector<32x128xbf16>, vector<17x128xf32> -> vector<17x128xf32>
    %141 = vector.broadcast %47 : vector<1x128xf32> to vector<17x128xf32>
    %142 = arith.addf %140, %141 : vector<17x128xf32>
    %cst_72 = arith.constant 5.000000e-01 : f32
    %143 = vector.broadcast %cst_72 : f32 to vector<17x128xf32>
    %144 = arith.mulf %143, %142 : vector<17x128xf32>
    %cst_73 = arith.constant 0.707106769 : f32
    %145 = vector.broadcast %cst_73 : f32 to vector<17x128xf32>
    %146 = arith.mulf %142, %145 : vector<17x128xf32>
    %cst_74 = arith.constant 0.000000e+00 : f32
    %147 = vector.broadcast %cst_74 : f32 to vector<17x128xf32>
    %148 = arith.cmpf oge, %146, %147 : vector<17x128xf32>
    %cst_75 = arith.constant 1.000000e+00 : f32
    %cst_76 = arith.constant -1.000000e+00 : f32
    %149 = vector.broadcast %cst_75 : f32 to vector<17x128xf32>
    %150 = vector.broadcast %cst_76 : f32 to vector<17x128xf32>
    %151 = arith.select %148, %149, %150 : vector<17x128xi1>, vector<17x128xf32>
    %152 = math.absf %146 : vector<17x128xf32>
    %cst_77 = arith.constant 0.327591091 : f32
    %153 = vector.broadcast %cst_77 : f32 to vector<17x128xf32>
    %154 = arith.mulf %153, %152 : vector<17x128xf32>
    %cst_78 = arith.constant 1.000000e+00 : f32
    %155 = vector.broadcast %cst_78 : f32 to vector<17x128xf32>
    %156 = arith.addf %155, %154 : vector<17x128xf32>
    %cst_79 = arith.constant 1.000000e+00 : f32
    %157 = vector.broadcast %cst_79 : f32 to vector<17x128xf32>
    %158 = arith.divf %157, %156 : vector<17x128xf32>
    %cst_80 = arith.constant 1.06140542 : f32
    %159 = vector.broadcast %cst_80 : f32 to vector<17x128xf32>
    %160 = arith.mulf %159, %158 : vector<17x128xf32>
    %cst_81 = arith.constant -1.45315206 : f32
    %161 = vector.broadcast %cst_81 : f32 to vector<17x128xf32>
    %162 = arith.addf %160, %161 : vector<17x128xf32>
    %163 = arith.mulf %162, %158 : vector<17x128xf32>
    %cst_82 = arith.constant 1.42141378 : f32
    %164 = vector.broadcast %cst_82 : f32 to vector<17x128xf32>
    %165 = arith.addf %163, %164 : vector<17x128xf32>
    %166 = arith.mulf %165, %158 : vector<17x128xf32>
    %cst_83 = arith.constant -0.284496725 : f32
    %167 = vector.broadcast %cst_83 : f32 to vector<17x128xf32>
    %168 = arith.addf %166, %167 : vector<17x128xf32>
    %169 = arith.mulf %168, %158 : vector<17x128xf32>
    %cst_84 = arith.constant 0.254829586 : f32
    %170 = vector.broadcast %cst_84 : f32 to vector<17x128xf32>
    %171 = arith.addf %169, %170 : vector<17x128xf32>
    %172 = arith.mulf %171, %158 : vector<17x128xf32>
    %cst_85 = arith.constant 0.000000e+00 : f32
    %173 = vector.broadcast %cst_85 : f32 to vector<17x128xf32>
    %174 = arith.subf %173, %152 : vector<17x128xf32>
    %175 = arith.mulf %174, %152 : vector<17x128xf32>
    %176 = math.exp %175 : vector<17x128xf32>
    %177 = arith.mulf %172, %176 : vector<17x128xf32>
    %cst_86 = arith.constant 1.000000e+00 : f32
    %178 = vector.broadcast %cst_86 : f32 to vector<17x128xf32>
    %179 = arith.subf %178, %177 : vector<17x128xf32>
    %180 = arith.mulf %151, %179 : vector<17x128xf32>
    %cst_87 = arith.constant 1.000000e+00 : f32
    %181 = vector.broadcast %cst_87 : f32 to vector<17x128xf32>
    %182 = arith.addf %181, %180 : vector<17x128xf32>
    %183 = arith.mulf %144, %182 : vector<17x128xf32>
    %184 = arith.truncf %183 : vector<17x128xf32> to vector<17x128xbf16>
    %cst_88 = arith.constant dense<0.000000e+00> : vector<17x32xf32>
    %185 = tpu.matmul %184, %49, %cst_88 {dimension_numbers = #tpu.dot_dimension_numbers<[1], [0], [0], [1], [0, 0, 1, 1], [], []>} : vector<17x128xbf16>, vector<128x32xbf16>, vector<17x32xf32> -> vector<17x32xf32>
    %186 = arith.addf %116, %185 : vector<17x32xf32>
    %187 = vector.broadcast %51 : vector<1x32xf32> to vector<17x32xf32>
    %188 = arith.addf %186, %187 : vector<17x32xf32>
    %c0_89 = arith.constant 0 : index
    %c0_90 = arith.constant 0 : index
    %189 = vector.load %arg17[%c0_89, %c0_90] : memref<1x32xf32, #tpu.memory_space<vmem>>, vector<1x32xf32>
    %c0_91 = arith.constant 0 : index
    %c0_92 = arith.constant 0 : index
    %190 = vector.load %arg18[%c0_91, %c0_92] : memref<1x32xf32, #tpu.memory_space<vmem>>, vector<1x32xf32>
    %cst_93 = arith.constant dense<0.000000e+00> : vector<17xf32>
    %191 = vector.multi_reduction <add>, %188, %cst_93 [1] : vector<17x32xf32> to vector<17xf32>
    %192 = vector.shape_cast %191 : vector<17xf32> to vector<17x1xf32>
    %cst_94 = arith.constant 3.200000e+01 : f32
    %193 = vector.broadcast %cst_94 : f32 to vector<17x1xf32>
    %194 = arith.divf %192, %193 : vector<17x1xf32>
    %195 = vector.broadcast %194 : vector<17x1xf32> to vector<17x32xf32>
    %196 = arith.subf %188, %195 : vector<17x32xf32>
    %197 = arith.mulf %196, %196 : vector<17x32xf32>
    %cst_95 = arith.constant dense<0.000000e+00> : vector<17xf32>
    %198 = vector.multi_reduction <add>, %197, %cst_95 [1] : vector<17x32xf32> to vector<17xf32>
    %199 = vector.shape_cast %198 : vector<17xf32> to vector<17x1xf32>
    %cst_96 = arith.constant 3.200000e+01 : f32
    %200 = vector.broadcast %cst_96 : f32 to vector<17x1xf32>
    %201 = arith.divf %199, %200 : vector<17x1xf32>
    %202 = vector.broadcast %194 : vector<17x1xf32> to vector<17x32xf32>
    %203 = arith.subf %188, %202 : vector<17x32xf32>
    %cst_97 = arith.constant 9.99999974E-6 : f32
    %204 = vector.broadcast %cst_97 : f32 to vector<17x1xf32>
    %205 = arith.addf %201, %204 : vector<17x1xf32>
    %206 = math.rsqrt %205 : vector<17x1xf32>
    %207 = vector.broadcast %206 : vector<17x1xf32> to vector<17x32xf32>
    %208 = arith.mulf %203, %207 : vector<17x32xf32>
    %209 = vector.broadcast %189 : vector<1x32xf32> to vector<17x32xf32>
    %210 = arith.mulf %208, %209 : vector<17x32xf32>
    %211 = vector.broadcast %190 : vector<1x32xf32> to vector<17x32xf32>
    %212 = arith.addf %210, %211 : vector<17x32xf32>
    %c0_98 = arith.constant 0 : index
    %c0_99 = arith.constant 0 : index
    %213 = vector.load %arg19[%c0_98, %c0_99] : memref<32x256xbf16, #tpu.memory_space<vmem>>, vector<32x256xbf16>
    %214 = arith.truncf %212 : vector<17x32xf32> to vector<17x32xbf16>
    %cst_100 = arith.constant dense<0.000000e+00> : vector<17x256xf32>
    %215 = tpu.matmul %214, %213, %cst_100 {dimension_numbers = #tpu.dot_dimension_numbers<[1], [0], [0], [1], [0, 0, 1, 1], [], []>} : vector<17x32xbf16>, vector<32x256xbf16>, vector<17x256xf32> -> vector<17x256xf32>
    %c0_101 = arith.constant 0 : index
    %c0_102 = arith.constant 0 : index
    %216 = vector.load %arg20[%c0_101, %c0_102] : memref<1x256xf32, #tpu.memory_space<vmem>>, vector<1x256xf32>
    %217 = vector.broadcast %216 : vector<1x256xf32> to vector<17x256xf32>
    %218 = arith.addf %215, %217 : vector<17x256xf32>
    %219 = vector.extract_strided_slice %218 {offsets = [1, 0], sizes = [16, 256], strides = [1, 1]} : vector<17x256xf32> to vector<16x256xf32>
    %c0_103 = arith.constant 0 : index
    %c0_104 = arith.constant 0 : index
    %c0_105 = arith.constant 0 : index
    %220 = vector.load %arg22[%c0_103, %c0_104, %c0_105] : memref<1x16x256xf32, #tpu.memory_space<vmem>>, vector<1x16x256xf32>
    %221 = vector.shape_cast %220 : vector<1x16x256xf32> to vector<16x256xf32>
    %222 = vector.shape_cast %219 : vector<16x256xf32> to vector<1x16x256xf32>
    tpu.vector_store %arg22[%c0_103, %c0_104, %c0_105], %222 {strides = array<i32>} : memref<1x16x256xf32, #tpu.memory_space<vmem>>, vector<1x16x256xf32>,
    %c0_106 = arith.constant 0 : index
    %c0_107 = arith.constant 0 : index
    %c0_108 = arith.constant 0 : index
    %223 = vector.load %arg21[%c0_106, %c0_107, %c0_108] : memref<1x16x256xf32, #tpu.memory_space<vmem>>, vector<1x16x256xf32>
    %224 = vector.shape_cast %223 : vector<1x16x256xf32> to vector<16x256xf32>
    %225 = arith.subf %219, %224 : vector<16x256xf32>
    %226 = arith.mulf %225, %225 : vector<16x256xf32>
    %cst_109 = arith.constant dense<0.000000e+00> : vector<16xf32>
    %227 = vector.multi_reduction <add>, %226, %cst_109 [1] : vector<16x256xf32> to vector<16xf32>
    %228 = vector.shape_cast %227 : vector<16xf32> to vector<16x1xf32>
    %cst_110 = arith.constant 2.560000e+02 : f32
    %229 = vector.broadcast %cst_110 : f32 to vector<16x1xf32>
    %230 = arith.divf %228, %229 : vector<16x1xf32>
    %231 = arith.mulf %230, %18 : vector<16x1xf32>
    %232 = vector.shape_cast %231 : vector<16x1xf32> to vector<1x16x1xf32>
    %cst_111 = arith.constant dense<0.000000e+00> : vector<1xf32>
    %233 = vector.multi_reduction <add>, %232, %cst_111 [1, 2] : vector<1x16x1xf32> to vector<1xf32>
    %234 = vector.shape_cast %233 : vector<1xf32> to vector<1x1x1xf32>
    %235 = vector.extract %234[0, 0, 0] : f32 from vector<1x1x1xf32>
    %236 = vector.broadcast %235 : f32 to vector<1x1xf32>
    %237 = vector.shape_cast %18 : vector<16x1xf32> to vector<1x16x1xf32>
    %cst_112 = arith.constant dense<0.000000e+00> : vector<1xf32>
    %238 = vector.multi_reduction <add>, %237, %cst_112 [1, 2] : vector<1x16x1xf32> to vector<1xf32>
    %239 = vector.shape_cast %238 : vector<1xf32> to vector<1x1x1xf32>
    %240 = vector.extract %239[0, 0, 0] : f32 from vector<1x1x1xf32>
    %241 = vector.broadcast %240 : f32 to vector<1x1xf32>
    %242 = tpu.concatenate %236, %241 in 1 : vector<1x1xf32>, vector<1x1xf32> -> vector<1x2xf32>
    %c0_113 = arith.constant 0 : index
    %c0_114 = arith.constant 0 : index
    %c0_115 = arith.constant 0 : index
    %243 = vector.load %arg23[%c0_113, %c0_114, %c0_115] : memref<1x1x2xf32, #tpu.memory_space<vmem>>, vector<1x1x2xf32>
    %244 = vector.shape_cast %243 : vector<1x1x2xf32> to vector<1x2xf32>
    %245 = vector.shape_cast %242 : vector<1x2xf32> to vector<1x1x2xf32>
    tpu.vector_store %arg23[%c0_113, %c0_114, %c0_115], %245 {strides = array<i32>} : memref<1x1x2xf32, #tpu.memory_space<vmem>>, vector<1x1x2xf32>,
    return
  }
  func.func @transform_0(%arg0: i32) -> (i32, i32, i32) {
    %c0_i32 = arith.constant 0 : i32
    %c0_i32_0 = arith.constant 0 : i32
    %c0_i32_1 = arith.constant 0 : i32
    return %arg0, %c0_i32, %c0_i32_0 : i32, i32, i32
  }
  func.func @transform_1(%arg0: i32) -> (i32, i32, i32) {
    %c0_i32 = arith.constant 0 : i32
    %c0_i32_0 = arith.constant 0 : i32
    %c0_i32_1 = arith.constant 0 : i32
    return %arg0, %c0_i32, %c0_i32_0 : i32, i32, i32
  }
  func.func @transform_2(%arg0: i32) -> (i32, i32, i32) {
    %c0_i32 = arith.constant 0 : i32
    %c0_i32_0 = arith.constant 0 : i32
    %c0_i32_1 = arith.constant 0 : i32
    %c0_i32_2 = arith.constant 0 : i32
    return %c0_i32, %c0_i32_0, %c0_i32_1 : i32, i32, i32
  }
  func.func @transform_3(%arg0: i32) -> (i32, i32, i32) {
    %c0_i32 = arith.constant 0 : i32
    %c0_i32_0 = arith.constant 0 : i32
    %c0_i32_1 = arith.constant 0 : i32
    %c0_i32_2 = arith.constant 0 : i32
    return %c0_i32, %c0_i32_0, %c0_i32_1 : i32, i32, i32
  }
  func.func @transform_4(%arg0: i32) -> (i32, i32, i32) {
    %c0_i32 = arith.constant 0 : i32
    %c0_i32_0 = arith.constant 0 : i32
    %c0_i32_1 = arith.constant 0 : i32
    %c0_i32_2 = arith.constant 0 : i32
    return %c0_i32, %c0_i32_0, %c0_i32_1 : i32, i32, i32
  }
  func.func @transform_5(%arg0: i32) -> (i32, i32, i32) {
    %c0_i32 = arith.constant 0 : i32
    %c0_i32_0 = arith.constant 0 : i32
    %c0_i32_1 = arith.constant 0 : i32
    %c0_i32_2 = arith.constant 0 : i32
    return %c0_i32, %c0_i32_0, %c0_i32_1 : i32, i32, i32
  }
  func.func @transform_6(%arg0: i32) -> (i32, i32, i32) {
    %c0_i32 = arith.constant 0 : i32
    %c0_i32_0 = arith.constant 0 : i32
    %c0_i32_1 = arith.constant 0 : i32
    %c0_i32_2 = arith.constant 0 : i32
    return %c0_i32, %c0_i32_0, %c0_i32_1 : i32, i32, i32
  }
  func.func @transform_7(%arg0: i32) -> (i32, i32, i32) {
    %c0_i32 = arith.constant 0 : i32
    %c0_i32_0 = arith.constant 0 : i32
    %c0_i32_1 = arith.constant 0 : i32
    %c0_i32_2 = arith.constant 0 : i32
    return %c0_i32, %c0_i32_0, %c0_i32_1 : i32, i32, i32
  }
  func.func @transform_8(%arg0: i32) -> (i32, i32, i32) {
    %c0_i32 = arith.constant 0 : i32
    %c0_i32_0 = arith.constant 0 : i32
    %c0_i32_1 = arith.constant 0 : i32
    %c0_i32_2 = arith.constant 0 : i32
    return %c0_i32, %c0_i32_0, %c0_i32_1 : i32, i32, i32
  }
  func.func @transform_9(%arg0: i32) -> (i32, i32, i32) {
    %c0_i32 = arith.constant 0 : i32
    %c0_i32_0 = arith.constant 0 : i32
    %c0_i32_1 = arith.constant 0 : i32
    %c0_i32_2 = arith.constant 0 : i32
    return %c0_i32, %c0_i32_0, %c0_i32_1 : i32, i32, i32
  }
  func.func @transform_10(%arg0: i32) -> (i32, i32, i32) {
    %c0_i32 = arith.constant 0 : i32
    %c0_i32_0 = arith.constant 0 : i32
    %c0_i32_1 = arith.constant 0 : i32
    %c0_i32_2 = arith.constant 0 : i32
    return %c0_i32, %c0_i32_0, %c0_i32_1 : i32, i32, i32
  }
  func.func @transform_11(%arg0: i32) -> (i32, i32, i32) {
    %c0_i32 = arith.constant 0 : i32
    %c0_i32_0 = arith.constant 0 : i32
    %c0_i32_1 = arith.constant 0 : i32
    %c0_i32_2 = arith.constant 0 : i32
    return %c0_i32, %c0_i32_0, %c0_i32_1 : i32, i32, i32
  }
  func.func @transform_12(%arg0: i32) -> (i32, i32, i32) {
    %c0_i32 = arith.constant 0 : i32
    %c0_i32_0 = arith.constant 0 : i32
    %c0_i32_1 = arith.constant 0 : i32
    %c0_i32_2 = arith.constant 0 : i32
    return %c0_i32, %c0_i32_0, %c0_i32_1 : i32, i32, i32
  }
  func.func @transform_13(%arg0: i32) -> (i32, i32, i32) {
    %c0_i32 = arith.constant 0 : i32
    %c0_i32_0 = arith.constant 0 : i32
    %c0_i32_1 = arith.constant 0 : i32
    %c0_i32_2 = arith.constant 0 : i32
    return %c0_i32, %c0_i32_0, %c0_i32_1 : i32, i32, i32
  }
  func.func @transform_14(%arg0: i32) -> (i32, i32, i32) {
    %c0_i32 = arith.constant 0 : i32
    %c0_i32_0 = arith.constant 0 : i32
    %c0_i32_1 = arith.constant 0 : i32
    %c0_i32_2 = arith.constant 0 : i32
    return %c0_i32, %c0_i32_0, %c0_i32_1 : i32, i32, i32
  }
  func.func @transform_15(%arg0: i32) -> (i32, i32, i32) {
    %c0_i32 = arith.constant 0 : i32
    %c0_i32_0 = arith.constant 0 : i32
    %c0_i32_1 = arith.constant 0 : i32
    %c0_i32_2 = arith.constant 0 : i32
    return %c0_i32, %c0_i32_0, %c0_i32_1 : i32, i32, i32
  }
  func.func @transform_16(%arg0: i32) -> (i32, i32) {
    %c0_i32 = arith.constant 0 : i32
    %c0_i32_0 = arith.constant 0 : i32
    %c0_i32_1 = arith.constant 0 : i32
    return %c0_i32, %c0_i32_0 : i32, i32
  }
  func.func @transform_17(%arg0: i32) -> (i32, i32) {
    %c0_i32 = arith.constant 0 : i32
    %c0_i32_0 = arith.constant 0 : i32
    %c0_i32_1 = arith.constant 0 : i32
    return %c0_i32, %c0_i32_0 : i32, i32
  }
  func.func @transform_18(%arg0: i32) -> (i32, i32) {
    %c0_i32 = arith.constant 0 : i32
    %c0_i32_0 = arith.constant 0 : i32
    %c0_i32_1 = arith.constant 0 : i32
    return %c0_i32, %c0_i32_0 : i32, i32
  }
  func.func @transform_19(%arg0: i32) -> (i32, i32) {
    %c0_i32 = arith.constant 0 : i32
    %c0_i32_0 = arith.constant 0 : i32
    %c0_i32_1 = arith.constant 0 : i32
    return %c0_i32, %c0_i32_0 : i32, i32
  }
  func.func @transform_20(%arg0: i32) -> (i32, i32, i32) {
    %c0_i32 = arith.constant 0 : i32
    %c0_i32_0 = arith.constant 0 : i32
    %c0_i32_1 = arith.constant 0 : i32
    return %arg0, %c0_i32, %c0_i32_0 : i32, i32, i32
  }
  func.func @transform_21(%arg0: i32) -> (i32, i32, i32) {
    %c0_i32 = arith.constant 0 : i32
    %c0_i32_0 = arith.constant 0 : i32
    %c0_i32_1 = arith.constant 0 : i32
    return %arg0, %c0_i32, %c0_i32_0 : i32, i32, i32
  }
  func.func @transform_22(%arg0: i32) -> (i32, i32, i32) {
    %c0_i32 = arith.constant 0 : i32
    %c0_i32_0 = arith.constant 0 : i32
    %c0_i32_1 = arith.constant 0 : i32
    return %arg0, %c0_i32, %c0_i32_0 : i32, i32, i32
  }
}

</mosaic_0001>

<llo_original>
// kernel: forward.2
$region0: #{forward.2}
  #allocation0 [shape = 'u32[]', space=smem, size = 0x4, offset = 0x4, fixed_abs, tag = 'smem constant byte address 0x4 - core index']
  #allocation1 [shape = 'u32[72,128]{1,0:T(1,128)}', space=vmem, size = 0x9000, scoped, tag = 'internal scratch']
  %s0 = inlined_call_operand.vmem [shape: f32[2,16,256], index: 0, kind: input, shape index: {}]
  %s1 = inlined_call_operand.vmem [shape: s32[2,4,1], index: 1, kind: input, shape index: {}]
  %s2 = inlined_call_operand.vmem [shape: bf16[256,32], index: 2, kind: input, shape index: {}]
  %s3 = inlined_call_operand.vmem [shape: f32[1,32], index: 3, kind: input, shape index: {}]
  %s4 = inlined_call_operand.vmem [shape: f32[1,17,32], index: 4, kind: input, shape index: {}]
  %s5 = inlined_call_operand.vmem [shape: f32[1,1,32], index: 5, kind: input, shape index: {}]
  %s6 = inlined_call_operand.vmem [shape: f32[2,1,32], index: 6, kind: input, shape index: {}]
  %s7 = inlined_call_operand.vmem [shape: f32[2,1,32], index: 7, kind: input, shape index: {}]
  %s8 = inlined_call_operand.vmem [shape: bf16[2,32,96], index: 8, kind: input, shape index: {}]
  %s9 = inlined_call_operand.vmem [shape: f32[2,1,96], index: 9, kind: input, shape index: {}]
  %s10 = inlined_call_operand.vmem [shape: bf16[2,32,32], index: 10, kind: input, shape index: {}]
  %s11 = inlined_call_operand.vmem [shape: f32[2,1,32], index: 11, kind: input, shape index: {}]
  %s12 = inlined_call_operand.vmem [shape: f32[2,1,32], index: 12, kind: input, shape index: {}]
  %s13 = inlined_call_operand.vmem [shape: f32[2,1,32], index: 13, kind: input, shape index: {}]
  %s14 = inlined_call_operand.vmem [shape: bf16[2,32,128], index: 14, kind: input, shape index: {}]
  %s15 = inlined_call_operand.vmem [shape: f32[2,1,128], index: 15, kind: input, shape index: {}]
  %s16 = inlined_call_operand.vmem [shape: bf16[2,128,32], index: 16, kind: input, shape index: {}]
  %s17 = inlined_call_operand.vmem [shape: f32[2,1,32], index: 17, kind: input, shape index: {}]
  %s18 = inlined_call_operand.vmem [shape: f32[1,32], index: 18, kind: input, shape index: {}]
  %s19 = inlined_call_operand.vmem [shape: f32[1,32], index: 19, kind: input, shape index: {}]
  %s20 = inlined_call_operand.vmem [shape: bf16[32,32], index: 20, kind: input, shape index: {}]
  %s21 = inlined_call_operand.vmem [shape: f32[1,32], index: 21, kind: input, shape index: {}]
  %s22 = inlined_call_operand.vmem [shape: f32[2,5,32], index: 22, kind: output, shape index: {}]
  %s23 = sld [smem:[#allocation0]]
  $region121: #{forward.2} parent=0
    _
  %s25 = ssub.s32 1, %s23
  %s26 = scalar_select 0, %s25, %s23
  loop: start=0, step=1, limit=4
  $region2: #{forward.2} parent=0 // loop_pre_header
    _
  $region3: #{forward.2} parent=0 // loop_header
    %s28 = sphi 0, %s32
    %p29 = scmp.ge.s32.totalorder %s28, 4
    %s38 = sphi 0, %s40
    %s41 = sphi 0, %s38
    %s42 = sphi 0, %s41
    %s58 = sphi 0, %s42
    %s64 = sphi 0, %s66
    %s67 = sphi 0, %s64
    %s68 = sphi 0, %s67
    %s84 = sphi 0, %s68
    %s88 = sphi 0, %s88
    %s90 = sphi 0, %s88
    %s91 = sphi 0, %s90
    %s105 = sphi 0, %s91
    %s109 = sphi 0, %s109
    %s111 = sphi 0, %s109
    %s112 = sphi 0, %s111
    %s126 = sphi 0, %s112
    %s130 = sphi 0, %s130
    %s132 = sphi 0, %s130
    %s133 = sphi 0, %s132
    %s147 = sphi 0, %s133
    %s151 = sphi 0, %s151
    %s153 = sphi 0, %s151
    %s154 = sphi 0, %s153
    %s168 = sphi 0, %s154
    %s172 = sphi 0, %s172
    %s174 = sphi 0, %s172
    %s175 = sphi 0, %s174
    %s189 = sphi 0, %s175
    %s193 = sphi 0, %s193
    %s195 = sphi 0, %s193
    %s196 = sphi 0, %s195
    %s210 = sphi 0, %s196
    %s214 = sphi 0, %s214
    %s216 = sphi 0, %s214
    %s217 = sphi 0, %s216
    %s231 = sphi 0, %s217
    %s235 = sphi 0, %s235
    %s237 = sphi 0, %s235
    %s238 = sphi 0, %s237
    %s252 = sphi 0, %s238
    %s256 = sphi 0, %s256
    %s258 = sphi 0, %s256
    %s259 = sphi 0, %s258
    %s273 = sphi 0, %s259
    %s277 = sphi 0, %s277
    %s279 = sphi 0, %s277
    %s280 = sphi 0, %s279
    %s294 = sphi 0, %s280
    %s298 = sphi 0, %s298
    %s300 = sphi 0, %s298
    %s301 = sphi 0, %s300
    %s315 = sphi 0, %s301
    %s319 = sphi 0, %s319
    %s321 = sphi 0, %s319
    %s322 = sphi 0, %s321
    %s336 = sphi 0, %s322
    %s340 = sphi 0, %s340
    %s342 = sphi 0, %s340
    %s343 = sphi 0, %s342
    %s357 = sphi 0, %s343
    %s361 = sphi 0, %s361
    %s363 = sphi 0, %s361
    %s364 = sphi 0, %s363
    %s378 = sphi 0, %s364
    %s382 = sphi 0, %s382
    %s384 = sphi 0, %s382
    %s385 = sphi 0, %s384
    %s399 = sphi 0, %s385
    %s403 = sphi 0, %s403
    %s405 = sphi 0, %s403
    %s406 = sphi 0, %s405
    %s420 = sphi 0, %s406
    %s424 = sphi 0, %s424
    %s426 = sphi 0, %s424
    %s427 = sphi 0, %s426
    %s441 = sphi 0, %s427
    %s445 = sphi 0, %s445
    %s447 = sphi 0, %s445
    %s448 = sphi 0, %s447
    %s462 = sphi 0, %s448
    %s466 = sphi 0, %s466
    %s468 = sphi 0, %s466
    %s469 = sphi 0, %s468
    %s483 = sphi 0, %s469
    %s487 = sphi 0, %s487
    %s489 = sphi 0, %s487
    %s490 = sphi 0, %s489
    %s504 = sphi 0, %s490
    %s510 = sphi 0, %s512
    %s513 = sphi 0, %s510
    %s514 = sphi 0, %s513
    %s530 = sphi 0, %s514
  $region4: #{forward.2} parent=0 // loop_header_branch
    %31 = sbr.rel (%p29) target = $region8
  $region5: #{forward.2} parent=0 // loop_body
    %s33 = ssub.s32 %s28, 1
    %s34 = ssub.s32 %s28, 2
    %s35 = sadd.s32 %s28, 1
    %s36 = ssub.s32 %s28, %s35
    %p37 = scmp.eq.s32.totalorder %s36, 0
    %s39 = sadd.s32 %s38, 1
    %s40 = scalar_select %p37, %s38, %s39
    %p43 = pneg %p37
    %p44 = scmp.eq.s32.totalorder %s28, 1
    %p45 = por %p43, %p44
    %p46 = scmp.ne.s32.totalorder %s38, %s41
    %p47 = scmp.eq.s32.totalorder %s28, 0
    %p48 = por %p46, %p47
    %p49 = scmp.ne.s32.totalorder %s38, %s41
    %p50 = scmp.eq.s32.totalorder %s33, 1
    %p51 = por %p49, %p50
    %p52 = scmp.ne.s32.totalorder %s41, %s42
    %p53 = scmp.eq.s32.totalorder %s33, 0
    %p54 = por %p52, %p53
    %p55 = scmp.ne.s32.totalorder %s41, %s42
    %p56 = scmp.eq.s32.totalorder %s34, 1
    %p57 = por %p55, %p56
    %p59 = scmp.ne.s32.totalorder %s42, %s58
    %p60 = scmp.eq.s32.totalorder %s34, 0
    %p61 = por %p59, %p60
    %s62 = ssub.s32 %s28, %s35
    %p63 = scmp.eq.s32.totalorder %s62, 0
    %s65 = sadd.s32 %s64, 1
    %s66 = scalar_select %p63, %s64, %s65
    %p69 = pneg %p63
    %p70 = scmp.eq.s32.totalorder %s28, 1
    %p71 = por %p69, %p70
    %p72 = scmp.ne.s32.totalorder %s64, %s67
    %p73 = scmp.eq.s32.totalorder %s28, 0
    %p74 = por %p72, %p73
    %p75 = scmp.ne.s32.totalorder %s64, %s67
    %p76 = scmp.eq.s32.totalorder %s33, 1
    %p77 = por %p75, %p76
    %p78 = scmp.ne.s32.totalorder %s67, %s68
    %p79 = scmp.eq.s32.totalorder %s33, 0
    %p80 = por %p78, %p79
    %p81 = scmp.ne.s32.totalorder %s67, %s68
    %p82 = scmp.eq.s32.totalorder %s34, 1
    %p83 = por %p81, %p82
    %p85 = scmp.ne.s32.totalorder %s68, %s84
    %p86 = scmp.eq.s32.totalorder %s34, 0
    %p87 = por %p85, %p86
    %s89 = sadd.s32 %s88, 1
    %p92 = scmp.eq.s32.totalorder %s28, 1
    %p93 = scmp.ne.s32.totalorder %s88, %s90
    %p94 = scmp.eq.s32.totalorder %s28, 0
    %p95 = por %p93, %p94
    %p96 = scmp.ne.s32.totalorder %s88, %s90
    %p97 = scmp.eq.s32.totalorder %s33, 1
    %p98 = por %p96, %p97
    %p99 = scmp.ne.s32.totalorder %s90, %s91
    %p100 = scmp.eq.s32.totalorder %s33, 0
    %p101 = por %p99, %p100
    %p102 = scmp.ne.s32.totalorder %s90, %s91
    %p103 = scmp.eq.s32.totalorder %s34, 1
    %p104 = por %p102, %p103
    %p106 = scmp.ne.s32.totalorder %s91, %s105
    %p107 = scmp.eq.s32.totalorder %s34, 0
    %p108 = por %p106, %p107
    %s110 = sadd.s32 %s109, 1
    %p113 = scmp.eq.s32.totalorder %s28, 1
    %p114 = scmp.ne.s32.totalorder %s109, %s111
    %p115 = scmp.eq.s32.totalorder %s28, 0
    %p116 = por %p114, %p115
    %p117 = scmp.ne.s32.totalorder %s109, %s111
    %p118 = scmp.eq.s32.totalorder %s33, 1
    %p119 = por %p117, %p118
    %p120 = scmp.ne.s32.totalorder %s111, %s112
    %p121 = scmp.eq.s32.totalorder %s33, 0
    %p122 = por %p120, %p121
    %p123 = scmp.ne.s32.totalorder %s111, %s112
    %p124 = scmp.eq.s32.totalorder %s34, 1
    %p125 = por %p123, %p124
    %p127 = scmp.ne.s32.totalorder %s112, %s126
    %p128 = scmp.eq.s32.totalorder %s34, 0
    %p129 = por %p127, %p128
    %s131 = sadd.s32 %s130, 1
    %p134 = scmp.eq.s32.totalorder %s28, 1
    %p135 = scmp.ne.s32.totalorder %s130, %s132
    %p136 = scmp.eq.s32.totalorder %s28, 0
    %p137 = por %p135, %p136
    %p138 = scmp.ne.s32.totalorder %s130, %s132
    %p139 = scmp.eq.s32.totalorder %s33, 1
    %p140 = por %p138, %p139
    %p141 = scmp.ne.s32.totalorder %s132, %s133
    %p142 = scmp.eq.s32.totalorder %s33, 0
    %p143 = por %p141, %p142
    %p144 = scmp.ne.s32.totalorder %s132, %s133
    %p145 = scmp.eq.s32.totalorder %s34, 1
    %p146 = por %p144, %p145
    %p148 = scmp.ne.s32.totalorder %s133, %s147
    %p149 = scmp.eq.s32.totalorder %s34, 0
    %p150 = por %p148, %p149
    %s152 = sadd.s32 %s151, 1
    %p155 = scmp.eq.s32.totalorder %s28, 1
    %p156 = scmp.ne.s32.totalorder %s151, %s153
    %p157 = scmp.eq.s32.totalorder %s28, 0
    %p158 = por %p156, %p157
    %p159 = scmp.ne.s32.totalorder %s151, %s153
    %p160 = scmp.eq.s32.totalorder %s33, 1
    %p161 = por %p159, %p160
    %p162 = scmp.ne.s32.totalorder %s153, %s154
    %p163 = scmp.eq.s32.totalorder %s33, 0
    %p164 = por %p162, %p163
    %p165 = scmp.ne.s32.totalorder %s153, %s154
    %p166 = scmp.eq.s32.totalorder %s34, 1
    %p167 = por %p165, %p166
    %p169 = scmp.ne.s32.totalorder %s154, %s168
    %p170 = scmp.eq.s32.totalorder %s34, 0
    %p171 = por %p169, %p170
    %s173 = sadd.s32 %s172, 1
    %p176 = scmp.eq.s32.totalorder %s28, 1
    %p177 = scmp.ne.s32.totalorder %s172, %s174
    %p178 = scmp.eq.s32.totalorder %s28, 0
    %p179 = por %p177, %p178
    %p180 = scmp.ne.s32.totalorder %s172, %s174
    %p181 = scmp.eq.s32.totalorder %s33, 1
    %p182 = por %p180, %p181
    %p183 = scmp.ne.s32.totalorder %s174, %s175
    %p184 = scmp.eq.s32.totalorder %s33, 0
    %p185 = por %p183, %p184
    %p186 = scmp.ne.s32.totalorder %s174, %s175
    %p187 = scmp.eq.s32.totalorder %s34, 1
    %p188 = por %p186, %p187
    %p190 = scmp.ne.s32.totalorder %s175, %s189
    %p191 = scmp.eq.s32.totalorder %s34, 0
    %p192 = por %p190, %p191
    %s194 = sadd.s32 %s193, 1
    %p197 = scmp.eq.s32.totalorder %s28, 1
    %p198 = scmp.ne.s32.totalorder %s193, %s195
    %p199 = scmp.eq.s32.totalorder %s28, 0
    %p200 = por %p198, %p199
    %p201 = scmp.ne.s32.totalorder %s193, %s195
    %p202 = scmp.eq.s32.totalorder %s33, 1
    %p203 = por %p201, %p202
    %p204 = scmp.ne.s32.totalorder %s195, %s196
    %p205 = scmp.eq.s32.totalorder %s33, 0
    %p206 = por %p204, %p205
    %p207 = scmp.ne.s32.totalorder %s195, %s196
    %p208 = scmp.eq.s32.totalorder %s34, 1
    %p209 = por %p207, %p208
    %p211 = scmp.ne.s32.totalorder %s196, %s210
    %p212 = scmp.eq.s32.totalorder %s34, 0
    %p213 = por %p211, %p212
    %s215 = sadd.s32 %s214, 1
    %p218 = scmp.eq.s32.totalorder %s28, 1
    %p219 = scmp.ne.s32.totalorder %s214, %s216
    %p220 = scmp.eq.s32.totalorder %s28, 0
    %p221 = por %p219, %p220
    %p222 = scmp.ne.s32.totalorder %s214, %s216
    %p223 = scmp.eq.s32.totalorder %s33, 1
    %p224 = por %p222, %p223
    %p225 = scmp.ne.s32.totalorder %s216, %s217
    %p226 = scmp.eq.s32.totalorder %s33, 0
    %p227 = por %p225, %p226
    %p228 = scmp.ne.s32.totalorder %s216, %s217
    %p229 = scmp.eq.s32.totalorder %s34, 1
    %p230 = por %p228, %p229
    %p232 = scmp.ne.s32.totalorder %s217, %s231
    %p233 = scmp.eq.s32.totalorder %s34, 0
    %p234 = por %p232, %p233
    %s236 = sadd.s32 %s235, 1
    %p239 = scmp.eq.s32.totalorder %s28, 1
    %p240 = scmp.ne.s32.totalorder %s235, %s237
    %p241 = scmp.eq.s32.totalorder %s28, 0
    %p242 = por %p240, %p241
    %p243 = scmp.ne.s32.totalorder %s235, %s237
    %p244 = scmp.eq.s32.totalorder %s33, 1
    %p245 = por %p243, %p244
    %p246 = scmp.ne.s32.totalorder %s237, %s238
    %p247 = scmp.eq.s32.totalorder %s33, 0
    %p248 = por %p246, %p247
    %p249 = scmp.ne.s32.totalorder %s237, %s238
    %p250 = scmp.eq.s32.totalorder %s34, 1
    %p251 = por %p249, %p250
    %p253 = scmp.ne.s32.totalorder %s238, %s252
    %p254 = scmp.eq.s32.totalorder %s34, 0
    %p255 = por %p253, %p254
    %s257 = sadd.s32 %s256, 1
    %p260 = scmp.eq.s32.totalorder %s28, 1
    %p261 = scmp.ne.s32.totalorder %s256, %s258
    %p262 = scmp.eq.s32.totalorder %s28, 0
    %p263 = por %p261, %p262
    %p264 = scmp.ne.s32.totalorder %s256, %s258
    %p265 = scmp.eq.s32.totalorder %s33, 1
    %p266 = por %p264, %p265
    %p267 = scmp.ne.s32.totalorder %s258, %s259
    %p268 = scmp.eq.s32.totalorder %s33, 0
    %p269 = por %p267, %p268
    %p270 = scmp.ne.s32.totalorder %s258, %s259
    %p271 = scmp.eq.s32.totalorder %s34, 1
    %p272 = por %p270, %p271
    %p274 = scmp.ne.s32.totalorder %s259, %s273
    %p275 = scmp.eq.s32.totalorder %s34, 0
    %p276 = por %p274, %p275
    %s278 = sadd.s32 %s277, 1
    %p281 = scmp.eq.s32.totalorder %s28, 1
    %p282 = scmp.ne.s32.totalorder %s277, %s279
    %p283 = scmp.eq.s32.totalorder %s28, 0
    %p284 = por %p282, %p283
    %p285 = scmp.ne.s32.totalorder %s277, %s279
    %p286 = scmp.eq.s32.totalorder %s33, 1
    %p287 = por %p285, %p286
    %p288 = scmp.ne.s32.totalorder %s279, %s280
    %p289 = scmp.eq.s32.totalorder %s33, 0
    %p290 = por %p288, %p289
    %p291 = scmp.ne.s32.totalorder %s279, %s280
    %p292 = scmp.eq.s32.totalorder %s34, 1
    %p293 = por %p291, %p292
    %p295 = scmp.ne.s32.totalorder %s280, %s294
    %p296 = scmp.eq.s32.totalorder %s34, 0
    %p297 = por %p295, %p296
    %s299 = sadd.s32 %s298, 1
    %p302 = scmp.eq.s32.totalorder %s28, 1
    %p303 = scmp.ne.s32.totalorder %s298, %s300
    %p304 = scmp.eq.s32.totalorder %s28, 0
    %p305 = por %p303, %p304
    %p306 = scmp.ne.s32.totalorder %s298, %s300
    %p307 = scmp.eq.s32.totalorder %s33, 1
    %p308 = por %p306, %p307
    %p309 = scmp.ne.s32.totalorder %s300, %s301
    %p310 = scmp.eq.s32.totalorder %s33, 0
    %p311 = por %p309, %p310
    %p312 = scmp.ne.s32.totalorder %s300, %s301
    %p313 = scmp.eq.s32.totalorder %s34, 1
    %p314 = por %p312, %p313
    %p316 = scmp.ne.s32.totalorder %s301, %s315
    %p317 = scmp.eq.s32.totalorder %s34, 0
    %p318 = por %p316, %p317
    %s320 = sadd.s32 %s319, 1
    %p323 = scmp.eq.s32.totalorder %s28, 1
    %p324 = scmp.ne.s32.totalorder %s319, %s321
    %p325 = scmp.eq.s32.totalorder %s28, 0
    %p326 = por %p324, %p325
    %p327 = scmp.ne.s32.totalorder %s319, %s321
    %p328 = scmp.eq.s32.totalorder %s33, 1
    %p329 = por %p327, %p328
    %p330 = scmp.ne.s32.totalorder %s321, %s322
    %p331 = scmp.eq.s32.totalorder %s33, 0
    %p332 = por %p330, %p331
    %p333 = scmp.ne.s32.totalorder %s321, %s322
    %p334 = scmp.eq.s32.totalorder %s34, 1
    %p335 = por %p333, %p334
    %p337 = scmp.ne.s32.totalorder %s322, %s336
    %p338 = scmp.eq.s32.totalorder %s34, 0
    %p339 = por %p337, %p338
    %s341 = sadd.s32 %s340, 1
    %p344 = scmp.eq.s32.totalorder %s28, 1
    %p345 = scmp.ne.s32.totalorder %s340, %s342
    %p346 = scmp.eq.s32.totalorder %s28, 0
    %p347 = por %p345, %p346
    %p348 = scmp.ne.s32.totalorder %s340, %s342
    %p349 = scmp.eq.s32.totalorder %s33, 1
    %p350 = por %p348, %p349
    %p351 = scmp.ne.s32.totalorder %s342, %s343
    %p352 = scmp.eq.s32.totalorder %s33, 0
    %p353 = por %p351, %p352
    %p354 = scmp.ne.s32.totalorder %s342, %s343
    %p355 = scmp.eq.s32.totalorder %s34, 1
    %p356 = por %p354, %p355
    %p358 = scmp.ne.s32.totalorder %s343, %s357
    %p359 = scmp.eq.s32.totalorder %s34, 0
    %p360 = por %p358, %p359
    %s362 = sadd.s32 %s361, 1
    %p365 = scmp.eq.s32.totalorder %s28, 1
    %p366 = scmp.ne.s32.totalorder %s361, %s363
    %p367 = scmp.eq.s32.totalorder %s28, 0
    %p368 = por %p366, %p367
    %p369 = scmp.ne.s32.totalorder %s361, %s363
    %p370 = scmp.eq.s32.totalorder %s33, 1
    %p371 = por %p369, %p370
    %p372 = scmp.ne.s32.totalorder %s363, %s364
    %p373 = scmp.eq.s32.totalorder %s33, 0
    %p374 = por %p372, %p373
    %p375 = scmp.ne.s32.totalorder %s363, %s364
    %p376 = scmp.eq.s32.totalorder %s34, 1
    %p377 = por %p375, %p376
    %p379 = scmp.ne.s32.totalorder %s364, %s378
    %p380 = scmp.eq.s32.totalorder %s34, 0
    %p381 = por %p379, %p380
    %s383 = sadd.s32 %s382, 1
    %p386 = scmp.eq.s32.totalorder %s28, 1
    %p387 = scmp.ne.s32.totalorder %s382, %s384
    %p388 = scmp.eq.s32.totalorder %s28, 0
    %p389 = por %p387, %p388
    %p390 = scmp.ne.s32.totalorder %s382, %s384
    %p391 = scmp.eq.s32.totalorder %s33, 1
    %p392 = por %p390, %p391
    %p393 = scmp.ne.s32.totalorder %s384, %s385
    %p394 = scmp.eq.s32.totalorder %s33, 0
    %p395 = por %p393, %p394
    %p396 = scmp.ne.s32.totalorder %s384, %s385
    %p397 = scmp.eq.s32.totalorder %s34, 1
    %p398 = por %p396, %p397
    %p400 = scmp.ne.s32.totalorder %s385, %s399
    %p401 = scmp.eq.s32.totalorder %s34, 0
    %p402 = por %p400, %p401
    %s404 = sadd.s32 %s403, 1
    %p407 = scmp.eq.s32.totalorder %s28, 1
    %p408 = scmp.ne.s32.totalorder %s403, %s405
    %p409 = scmp.eq.s32.totalorder %s28, 0
    %p410 = por %p408, %p409
    %p411 = scmp.ne.s32.totalorder %s403, %s405
    %p412 = scmp.eq.s32.totalorder %s33, 1
    %p413 = por %p411, %p412
    %p414 = scmp.ne.s32.totalorder %s405, %s406
    %p415 = scmp.eq.s32.totalorder %s33, 0
    %p416 = por %p414, %p415
    %p417 = scmp.ne.s32.totalorder %s405, %s406
    %p418 = scmp.eq.s32.totalorder %s34, 1
    %p419 = por %p417, %p418
    %p421 = scmp.ne.s32.totalorder %s406, %s420
    %p422 = scmp.eq.s32.totalorder %s34, 0
    %p423 = por %p421, %p422
    %s425 = sadd.s32 %s424, 1
    %p428 = scmp.eq.s32.totalorder %s28, 1
    %p429 = scmp.ne.s32.totalorder %s424, %s426
    %p430 = scmp.eq.s32.totalorder %s28, 0
    %p431 = por %p429, %p430
    %p432 = scmp.ne.s32.totalorder %s424, %s426
    %p433 = scmp.eq.s32.totalorder %s33, 1
    %p434 = por %p432, %p433
    %p435 = scmp.ne.s32.totalorder %s426, %s427
    %p436 = scmp.eq.s32.totalorder %s33, 0
    %p437 = por %p435, %p436
    %p438 = scmp.ne.s32.totalorder %s426, %s427
    %p439 = scmp.eq.s32.totalorder %s34, 1
    %p440 = por %p438, %p439
    %p442 = scmp.ne.s32.totalorder %s427, %s441
    %p443 = scmp.eq.s32.totalorder %s34, 0
    %p444 = por %p442, %p443
    %s446 = sadd.s32 %s445, 1
    %p449 = scmp.eq.s32.totalorder %s28, 1
    %p450 = scmp.ne.s32.totalorder %s445, %s447
    %p451 = scmp.eq.s32.totalorder %s28, 0
    %p452 = por %p450, %p451
    %p453 = scmp.ne.s32.totalorder %s445, %s447
    %p454 = scmp.eq.s32.totalorder %s33, 1
    %p455 = por %p453, %p454
    %p456 = scmp.ne.s32.totalorder %s447, %s448
    %p457 = scmp.eq.s32.totalorder %s33, 0
    %p458 = por %p456, %p457
    %p459 = scmp.ne.s32.totalorder %s447, %s448
    %p460 = scmp.eq.s32.totalorder %s34, 1
    %p461 = por %p459, %p460
    %p463 = scmp.ne.s32.totalorder %s448, %s462
    %p464 = scmp.eq.s32.totalorder %s34, 0
    %p465 = por %p463, %p464
    %s467 = sadd.s32 %s466, 1
    %p470 = scmp.eq.s32.totalorder %s28, 1
    %p471 = scmp.ne.s32.totalorder %s466, %s468
    %p472 = scmp.eq.s32.totalorder %s28, 0
    %p473 = por %p471, %p472
    %p474 = scmp.ne.s32.totalorder %s466, %s468
    %p475 = scmp.eq.s32.totalorder %s33, 1
    %p476 = por %p474, %p475
    %p477 = scmp.ne.s32.totalorder %s468, %s469
    %p478 = scmp.eq.s32.totalorder %s33, 0
    %p479 = por %p477, %p478
    %p480 = scmp.ne.s32.totalorder %s468, %s469
    %p481 = scmp.eq.s32.totalorder %s34, 1
    %p482 = por %p480, %p481
    %p484 = scmp.ne.s32.totalorder %s469, %s483
    %p485 = scmp.eq.s32.totalorder %s34, 0
    %p486 = por %p484, %p485
    %s488 = sadd.s32 %s487, 1
    %p491 = scmp.eq.s32.totalorder %s28, 1
    %p492 = scmp.ne.s32.totalorder %s487, %s489
    %p493 = scmp.eq.s32.totalorder %s28, 0
    %p494 = por %p492, %p493
    %p495 = scmp.ne.s32.totalorder %s487, %s489
    %p496 = scmp.eq.s32.totalorder %s33, 1
    %p497 = por %p495, %p496
    %p498 = scmp.ne.s32.totalorder %s489, %s490
    %p499 = scmp.eq.s32.totalorder %s33, 0
    %p500 = por %p498, %p499
    %p501 = scmp.ne.s32.totalorder %s489, %s490
    %p502 = scmp.eq.s32.totalorder %s34, 1
    %p503 = por %p501, %p502
    %p505 = scmp.ne.s32.totalorder %s490, %s504
    %p506 = scmp.eq.s32.totalorder %s34, 0
    %p507 = por %p505, %p506
    %s508 = ssub.s32 %s28, %s35
    %p509 = scmp.eq.s32.totalorder %s508, 0
    %s511 = sadd.s32 %s510, 1
    %s512 = scalar_select %p509, %s510, %s511
    %p515 = pneg %p509
    %p516 = scmp.eq.s32.totalorder %s28, 1
    %p517 = por %p515, %p516
    %p518 = scmp.ne.s32.totalorder %s510, %s513
    %p519 = scmp.eq.s32.totalorder %s28, 0
    %p520 = por %p518, %p519
    %p521 = scmp.ne.s32.totalorder %s510, %s513
    %p522 = scmp.eq.s32.totalorder %s33, 1
    %p523 = por %p521, %p522
    %p524 = scmp.ne.s32.totalorder %s513, %s514
    %p525 = scmp.eq.s32.totalorder %s33, 0
    %p526 = por %p524, %p525
    %p527 = scmp.ne.s32.totalorder %s513, %s514
    %p528 = scmp.eq.s32.totalorder %s34, 1
    %p529 = por %p527, %p528
    %p531 = scmp.ne.s32.totalorder %s514, %s530
    %p532 = scmp.eq.s32.totalorder %s34, 0
    %p533 = por %p531, %p532
    %p534 = scmp.le.s32.totalorder 1, %s28
    %p535 = scmp.lt.s32.totalorder %s28, 3
    %p536 = pnand %p534, %p535
    %p537 = pneg %p536
    // Predicated region
    $region9: #{forward.2} parent=5 // pred_check
      _
    $region10: #{forward.2} parent=5 // pred_check_branch
      %539 = sbr.rel (%p536) target = $region12
    $region11: #{forward.2} parent=5 // pred_region
      %s540 = ssub.s32 %s28, 1
      // Predicated region
      $region13: #{forward.2} parent=11 // pred_check
        %p541 = pneg %p101
      $region14: #{forward.2} parent=11 // pred_check_branch
        %543 = sbr.rel (%p541) target = $region16
      $region15: #{forward.2} parent=11 // pred_region
        _
      $region16: #{forward.2} parent=11 // pred_fallthru
        _
      // Predicated region
      $region17: #{forward.2} parent=11 // pred_check
        %p544 = pneg %p122
      $region18: #{forward.2} parent=11 // pred_check_branch
        %546 = sbr.rel (%p544) target = $region20
      $region19: #{forward.2} parent=11 // pred_region
        _
      $region20: #{forward.2} parent=11 // pred_fallthru
        _
      // Predicated region
      $region21: #{forward.2} parent=11 // pred_check
        %p547 = pneg %p143
      $region22: #{forward.2} parent=11 // pred_check_branch
        %549 = sbr.rel (%p547) target = $region24
      $region23: #{forward.2} parent=11 // pred_region
        _
      $region24: #{forward.2} parent=11 // pred_fallthru
        _
      // Predicated region
      $region25: #{forward.2} parent=11 // pred_check
        %p550 = pneg %p164
      $region26: #{forward.2} parent=11 // pred_check_branch
        %552 = sbr.rel (%p550) target = $region28
      $region27: #{forward.2} parent=11 // pred_region
        _
      $region28: #{forward.2} parent=11 // pred_fallthru
        _
      // Predicated region
      $region29: #{forward.2} parent=11 // pred_check
        %p553 = pneg %p185
      $region30: #{forward.2} parent=11 // pred_check_branch
        %555 = sbr.rel (%p553) target = $region32
      $region31: #{forward.2} parent=11 // pred_region
        _
      $region32: #{forward.2} parent=11 // pred_fallthru
        _
      // Predicated region
      $region33: #{forward.2} parent=11 // pred_check
        %p556 = pneg %p206
      $region34: #{forward.2} parent=11 // pred_check_branch
        %558 = sbr.rel (%p556) target = $region36
      $region35: #{forward.2} parent=11 // pred_region
        _
      $region36: #{forward.2} parent=11 // pred_fallthru
        _
      // Predicated region
      $region37: #{forward.2} parent=11 // pred_check
        %p559 = pneg %p227
      $region38: #{forward.2} parent=11 // pred_check_branch
        %561 = sbr.rel (%p559) target = $region40
      $region39: #{forward.2} parent=11 // pred_region
        _
      $region40: #{forward.2} parent=11 // pred_fallthru
        _
      // Predicated region
      $region41: #{forward.2} parent=11 // pred_check
        %p562 = pneg %p248
      $region42: #{forward.2} parent=11 // pred_check_branch
        %564 = sbr.rel (%p562) target = $region44
      $region43: #{forward.2} parent=11 // pred_region
        _
      $region44: #{forward.2} parent=11 // pred_fallthru
        _
      // Predicated region
      $region45: #{forward.2} parent=11 // pred_check
        %p565 = pneg %p269
      $region46: #{forward.2} parent=11 // pred_check_branch
        %567 = sbr.rel (%p565) target = $region48
      $region47: #{forward.2} parent=11 // pred_region
        _
      $region48: #{forward.2} parent=11 // pred_fallthru
        _
      // Predicated region
      $region49: #{forward.2} parent=11 // pred_check
        %p568 = pneg %p290
      $region50: #{forward.2} parent=11 // pred_check_branch
        %570 = sbr.rel (%p568) target = $region52
      $region51: #{forward.2} parent=11 // pred_region
        _
      $region52: #{forward.2} parent=11 // pred_fallthru
        _
      // Predicated region
      $region53: #{forward.2} parent=11 // pred_check
        %p571 = pneg %p311
      $region54: #{forward.2} parent=11 // pred_check_branch
        %573 = sbr.rel (%p571) target = $region56
      $region55: #{forward.2} parent=11 // pred_region
        _
      $region56: #{forward.2} parent=11 // pred_fallthru
        _
      // Predicated region
      $region57: #{forward.2} parent=11 // pred_check
        %p574 = pneg %p332
      $region58: #{forward.2} parent=11 // pred_check_branch
        %576 = sbr.rel (%p574) target = $region60
      $region59: #{forward.2} parent=11 // pred_region
        _
      $region60: #{forward.2} parent=11 // pred_fallthru
        _
      // Predicated region
      $region61: #{forward.2} parent=11 // pred_check
        %p577 = pneg %p353
      $region62: #{forward.2} parent=11 // pred_check_branch
        %579 = sbr.rel (%p577) target = $region64
      $region63: #{forward.2} parent=11 // pred_region
        _
      $region64: #{forward.2} parent=11 // pred_fallthru
        _
      // Predicated region
      $region65: #{forward.2} parent=11 // pred_check
        %p580 = pneg %p374
      $region66: #{forward.2} parent=11 // pred_check_branch
        %582 = sbr.rel (%p580) target = $region68
      $region67: #{forward.2} parent=11 // pred_region
        _
      $region68: #{forward.2} parent=11 // pred_fallthru
        _
      // Predicated region
      $region69: #{forward.2} parent=11 // pred_check
        %p583 = pneg %p395
      $region70: #{forward.2} parent=11 // pred_check_branch
        %585 = sbr.rel (%p583) target = $region72
      $region71: #{forward.2} parent=11 // pred_region
        _
      $region72: #{forward.2} parent=11 // pred_fallthru
        _
      // Predicated region
      $region73: #{forward.2} parent=11 // pred_check
        %p586 = pneg %p416
      $region74: #{forward.2} parent=11 // pred_check_branch
        %588 = sbr.rel (%p586) target = $region76
      $region75: #{forward.2} parent=11 // pred_region
        _
      $region76: #{forward.2} parent=11 // pred_fallthru
        _
      // Predicated region
      $region77: #{forward.2} parent=11 // pred_check
        %p589 = pneg %p437
      $region78: #{forward.2} parent=11 // pred_check_branch
        %591 = sbr.rel (%p589) target = $region80
      $region79: #{forward.2} parent=11 // pred_region
        _
      $region80: #{forward.2} parent=11 // pred_fallthru
        _
      // Predicated region
      $region81: #{forward.2} parent=11 // pred_check
        %p592 = pneg %p458
      $region82: #{forward.2} parent=11 // pred_check_branch
        %594 = sbr.rel (%p592) target = $region84
      $region83: #{forward.2} parent=11 // pred_region
        _
      $region84: #{forward.2} parent=11 // pred_fallthru
        _
      // Predicated region
      $region85: #{forward.2} parent=11 // pred_check
        %p595 = pneg %p479
      $region86: #{forward.2} parent=11 // pred_check_branch
        %597 = sbr.rel (%p595) target = $region88
      $region87: #{forward.2} parent=11 // pred_region
        _
      $region88: #{forward.2} parent=11 // pred_fallthru
        _
      // Predicated region
      $region89: #{forward.2} parent=11 // pred_check
        %p598 = pneg %p500
      $region90: #{forward.2} parent=11 // pred_check_branch
        %600 = sbr.rel (%p598) target = $region92
      $region91: #{forward.2} parent=11 // pred_region
        _
      $region92: #{forward.2} parent=11 // pred_fallthru
        _
    $region12: #{forward.2} parent=5 // pred_fallthru
      _
    %p601 = scmp.lt.s32.totalorder %s28, 2
    // Predicated region
    $region93: #{forward.2} parent=5 // pred_check
      %p602 = pneg %p601
    $region94: #{forward.2} parent=5 // pred_check_branch
      %604 = sbr.rel (%p602) target = $region96
    $region95: #{forward.2} parent=5 // pred_region
      // Predicated region
      $region97: #{forward.2} parent=95 // pred_check
        %p605 = pneg %p48
      $region98: #{forward.2} parent=95 // pred_check_branch
        %607 = sbr.rel (%p605) target = $region100
      $region99: #{forward.2} parent=95 // pred_region
        %p608 = scmp.lt.s32.totalorder %s28, 1
        %s609 = scalar_select %p608, %s28, 1
        %s610 = smul.addr %s609, 4
        %s611 = smul.addr %s610, 8
        %s612 = scalar_lea.vmem %s0, %s611
      $region100: #{forward.2} parent=95 // pred_fallthru
        _
      // Predicated region
      $region101: #{forward.2} parent=95 // pred_check
        %p613 = pneg %p74
      $region102: #{forward.2} parent=95 // pred_check_branch
        %615 = sbr.rel (%p613) target = $region104
      $region103: #{forward.2} parent=95 // pred_region
        %p616 = scmp.lt.s32.totalorder %s28, 1
        %s617 = scalar_select %p616, %s28, 1
        %s618 = smul.addr %s617, 4
        %s619 = scalar_lea.vmem %s1, %s618
      $region104: #{forward.2} parent=95 // pred_fallthru
        _
    $region96: #{forward.2} parent=5 // pred_fallthru
      _
    %p620 = scmp.le.s32.totalorder 1, %s28
    %p621 = scmp.lt.s32.totalorder %s28, 3
    %p622 = pnand %p620, %p621
    %p623 = pneg %p622
    // Predicated region
    $region105: #{forward.2} parent=5 // pred_check
      _
    $region106: #{forward.2} parent=5 // pred_check_branch
      %625 = sbr.rel (%p622) target = $region108
    $region107: #{forward.2} parent=5 // pred_region
      %s626 = ssub.s32 %s28, 1
      %p627 = scmp.lt.s32.totalorder %s33, 1
      %s628 = scalar_select %p627, %s33, 1
      %s629 = smul.addr %s628, 4
      %s630 = smul.addr %s629, 8
      %s631 = scalar_lea.vmem %s0, %s630
      %p632 = pneg %p54
      %p633 = pneg %p51
      %p634 = scmp.lt.s32.totalorder %s33, 1
      %s635 = scalar_select %p634, %s33, 1
      %s636 = smul.addr %s635, 4
      %s637 = scalar_lea.vmem %s1, %s636
      %p638 = pneg %p80
      %p639 = pneg %p77
      %p640 = pneg %p101
      %p641 = pneg %p98
      %p642 = pneg %p122
      %p643 = pneg %p119
      %p644 = pneg %p143
      %p645 = pneg %p140
      %p646 = pneg %p164
      %p647 = pneg %p161
      %p648 = pneg %p185
      %p649 = pneg %p182
      %p650 = pneg %p206
      %p651 = pneg %p203
      %p652 = pneg %p227
      %p653 = pneg %p224
      %p654 = pneg %p248
      %p655 = pneg %p245
      %p656 = pneg %p269
      %p657 = pneg %p266
      %p658 = pneg %p290
      %p659 = pneg %p287
      %p660 = pneg %p311
      %p661 = pneg %p308
      %p662 = pneg %p332
      %p663 = pneg %p329
      %p664 = pneg %p353
      %p665 = pneg %p350
      %p666 = pneg %p374
      %p667 = pneg %p371
      %p668 = pneg %p395
      %p669 = pneg %p392
      %p670 = pneg %p416
      %p671 = pneg %p413
      %p672 = pneg %p437
      %p673 = pneg %p434
      %p674 = pneg %p458
      %p675 = pneg %p455
      %p676 = pneg %p479
      %p677 = pneg %p476
      %p678 = pneg %p500
      %p679 = pneg %p497
      %p680 = pneg %p526
      %p681 = pneg %p523
      %p682 = scmp.lt.s32.totalorder %s33, 1
      %s683 = scalar_select %p682, %s33, 1
      %s684 = smul.addr %s683, 8
      %s685 = scalar_lea.vmem %s22, %s684
      %p686 = scmp.lt.s32.totalorder %s33, 1
      %s687 = scalar_select %p686, %s33, 1
      %s688 = smul.addr %s687, 4
      %s689 = smul.addr %s688, 8
      %s690 = scalar_lea.vmem %s0, %s689
      %p691 = scmp.lt.s32.totalorder %s33, 1
      %s692 = scalar_select %p691, %s33, 1
      %s693 = smul.addr %s692, 4
      %s694 = scalar_lea.vmem %s1, %s693
      %p695 = scmp.lt.s32.totalorder %s33, 1
      %s696 = scalar_select %p695, %s33, 1
      %s697 = smul.addr %s696, 8
      %s698 = scalar_lea.vmem %s22, %s697
      %v700 = vld [vmem:[%s690] sm:$0xff]
      %v701 = vld [vmem:[%s690 + $0x8] sm:$0xff]
      %v702 = vld [vmem:[%s690 + $0x10] sm:$0xff]
      %v703 = vld [vmem:[%s690 + $0x18] sm:$0xff]
      %v704 = vld [vmem:[%s4] sm:$0xff]
      %v705 = vld [vmem:[%s4 + $0x8] sm:$0xff]
      %v706 = vld [vmem:[%s4 + $0x10] sm:$0x1]
      %v707 = vld [vmem:[%s2] sm:$0xf]
      %v708 = vld [vmem:[%s2 + $0x4] sm:$0xf]
      %v709 = vld [vmem:[%s2 + $0x8] sm:$0xf]
      %v710 = vld [vmem:[%s2 + $0xc] sm:$0xf]
      %v711 = vld [vmem:[%s2 + $0x10] sm:$0xf]
      %v712 = vld [vmem:[%s2 + $0x14] sm:$0xf]
      %v713 = vld [vmem:[%s2 + $0x18] sm:$0xf]
      %v714 = vld [vmem:[%s2 + $0x1c] sm:$0xf]
      %v715 = vld [vmem:[%s2 + $0x20] sm:$0xf]
      %v716 = vld [vmem:[%s2 + $0x24] sm:$0xf]
      %v717 = vld [vmem:[%s2 + $0x28] sm:$0xf]
      %v718 = vld [vmem:[%s2 + $0x2c] sm:$0xf]
      %v719 = vld [vmem:[%s2 + $0x30] sm:$0xf]
      %v720 = vld [vmem:[%s2 + $0x34] sm:$0xf]
      %v721 = vld [vmem:[%s2 + $0x38] sm:$0xf]
      %v722 = vld [vmem:[%s2 + $0x3c] sm:$0xf]
      %v723 = vld [vmem:[%s2 + $0x40] sm:$0xf]
      %v724 = vld [vmem:[%s2 + $0x44] sm:$0xf]
      %v725 = vld [vmem:[%s2 + $0x48] sm:$0xf]
      %v726 = vld [vmem:[%s2 + $0x4c] sm:$0xf]
      %v727 = vld [vmem:[%s2 + $0x50] sm:$0xf]
      %v728 = vld [vmem:[%s2 + $0x54] sm:$0xf]
      %v729 = vld [vmem:[%s2 + $0x58] sm:$0xf]
      %v730 = vld [vmem:[%s2 + $0x5c] sm:$0xf]
      %v731 = vld [vmem:[%s2 + $0x60] sm:$0xf]
      %v732 = vld [vmem:[%s2 + $0x64] sm:$0xf]
      %v733 = vld [vmem:[%s2 + $0x68] sm:$0xf]
      %v734 = vld [vmem:[%s2 + $0x6c] sm:$0xf]
      %v735 = vld [vmem:[%s2 + $0x70] sm:$0xf]
      %v736 = vld [vmem:[%s2 + $0x74] sm:$0xf]
      %v737 = vld [vmem:[%s2 + $0x78] sm:$0xf]
      %v738 = vld [vmem:[%s2 + $0x7c] sm:$0xf]
      %v739 = vpack.c.bf16 %v702, %v700
      %v740 = vpack.c.bf16 %v703, %v701
      %v741 = vld [vmem:[%s3] sm:$0x1]
      %v743 = vperm.slane %v741, 0
      %v777 = vunpack.c.l.b16 %v707
      %v778 = vunpack.c.l.b16 %v708
      %v779 = vunpack.c.l.b16 %v709
      %v780 = vunpack.c.l.b16 %v710
      %v781 = vunpack.c.l.b16 %v711
      %v782 = vunpack.c.l.b16 %v712
      %v783 = vunpack.c.l.b16 %v713
      %v784 = vunpack.c.l.b16 %v714
      %v785 = vunpack.c.l.b16 %v715
      %v786 = vunpack.c.l.b16 %v716
      %v787 = vunpack.c.l.b16 %v717
      %v788 = vunpack.c.l.b16 %v718
      %v789 = vunpack.c.l.b16 %v719
      %v790 = vunpack.c.l.b16 %v720
      %v791 = vunpack.c.l.b16 %v721
      %v792 = vunpack.c.l.b16 %v722
      %v793 = vunpack.c.l.b16 %v723
      %v794 = vunpack.c.l.b16 %v724
      %v795 = vunpack.c.l.b16 %v725
      %v796 = vunpack.c.l.b16 %v726
      %v797 = vunpack.c.l.b16 %v727
      %v798 = vunpack.c.l.b16 %v728
      %v799 = vunpack.c.l.b16 %v729
      %v800 = vunpack.c.l.b16 %v730
      %v801 = vunpack.c.l.b16 %v731
      %v802 = vunpack.c.l.b16 %v732
      %v803 = vunpack.c.l.b16 %v733
      %v804 = vunpack.c.l.b16 %v734
      %v805 = vunpack.c.l.b16 %v735
      %v806 = vunpack.c.l.b16 %v736
      %v807 = vunpack.c.l.b16 %v737
      %v808 = vunpack.c.l.b16 %v738
      %v809 = vpack.c.b16 %v778, %v777
      %v810 = vpack.c.b16 %v780, %v779
      %v811 = vpack.c.b16 %v782, %v781
      %v812 = vpack.c.b16 %v784, %v783
      %v813 = vpack.c.b16 %v786, %v785
      %v814 = vpack.c.b16 %v788, %v787
      %v815 = vpack.c.b16 %v790, %v789
      %v816 = vpack.c.b16 %v792, %v791
      %v817 = vpack.c.b16 %v794, %v793
      %v818 = vpack.c.b16 %v796, %v795
      %v819 = vpack.c.b16 %v798, %v797
      %v820 = vpack.c.b16 %v800, %v799
      %v821 = vpack.c.b16 %v802, %v801
      %v822 = vpack.c.b16 %v804, %v803
      %v823 = vpack.c.b16 %v806, %v805
      %v824 = vpack.c.b16 %v808, %v807
      %841 = vmatpush.bf16.msra.mxu0 %v816
      %842 = vmatpush.bf16.msra.mxu0 %v815
      %843 = vmatpush.bf16.msra.mxu0 %v814
      %844 = vmatpush.bf16.msra.mxu0 %v813
      %845 = vmatpush.bf16.msra.mxu0 %v812
      %846 = vmatpush.bf16.msra.mxu0 %v811
      %847 = vmatpush.bf16.msra.mxu0 %v810
      %848 = vmatpush.bf16.msra.mxu0 %v809
      %849 = vmatmul.bf16.gmra.mxu0 %v739
      %v850 = vpop.f32.mrf.mxu0
      %v851 = vadd.f32 %v743, %v850
      %v852 = vpop.f32.mrf.mxu0
      %v853 = vadd.f32 %v743, %v852
      %854 = vdwg.mxu0
      %855 = vmatpush.bf16.msra.mxu0 %v824
      %856 = vmatpush.bf16.msra.mxu0 %v823
      %857 = vmatpush.bf16.msra.mxu0 %v822
      %858 = vmatpush.bf16.msra.mxu0 %v821
      %859 = vmatpush.bf16.msra.mxu0 %v820
      %860 = vmatpush.bf16.msra.mxu0 %v819
      %861 = vmatpush.bf16.msra.mxu0 %v818
      %862 = vmatpush.bf16.msra.mxu0 %v817
      %863 = vmatmul.bf16.gmra.mxu0 %v740
      %v864 = vpop.f32.mrf.mxu0
      %v865 = vadd.f32 %v851, %v864
      %v866 = vpop.f32.mrf.mxu0
      %v867 = vadd.f32 %v853, %v866
      %868 = vdwg.mxu0
      %vm872 = vcmask 1046528
      %v873 = vrot.slane %v704, 1
      %v874 = vrot.slane %v705, 1
      %v875 = vsel %vm872, %v873, %v874
      %v876 = vrot.slane %v706, 1
      %v877 = vsel %vm872, %v874, %v876
      %v880 = vadd.f32 %v865, %v875
      %v881 = vadd.f32 %v867, %v877
      %v882 = vld [vmem:[%s694] sm:$0xf]
      %v883 = vlaneseq
      %v884 = vand.u32 %v883, 127
      %885 = vset.pattern.permute.xlu0 0
      %886 = vperm.xlu0 %885, %v882
      %v887 = vpop.permute.xlu0 %886
      %vm888 = vcmp.eq.s32.totalorder %v887, %v884
      %v889 = vsel %vm888, 1.0, 0.0
      %vm890 = vcmask 130048
      %v892 = vsel %vm890, %v889, 0
      %894 = vmatpush.msra.mxu0 0.0
      %895 = vmatpush.msra.mxu0 0.0
      %896 = vmatpush.msra.mxu0 0.0
      %897 = vmatpush.msra.mxu0 0.0
      %898 = vmatpush.msra.mxu0 0.0
      %899 = vmatpush.msra.mxu0 0.0
      %900 = vmatpush.msra.mxu0 0.0
      %901 = vmatpush.msra.mxu0 0.0
      %902 = vmatpush.msra.mxu0 0.0
      %903 = vmatpush.msra.mxu0 0.0
      %904 = vmatpush.msra.mxu0 0.0
      %905 = vmatpush.msra.mxu0 0.0
      %906 = vmatpush.msra.mxu0 0.0
      %907 = vmatpush.msra.mxu0 0.0
      %908 = vmatpush.msra.mxu0 %v881
      %909 = vmatpush.msra.mxu0 %v880
      %910 = vmatmul.f32.gmra.mxu0 %v892
      %v911 = vpop.f32.mrf.mxu0
      %v912 = vadd.f32 0.0, %v911
      %913 = vdwg.mxu0
      %v914 = vld [vmem:[%s5] sm:$0x1]
      %v915 = vadd.f32 %v914, %v704
      %v917 = vrot.slane %v912, 7
      %vm919 = vcmask 1040384
      %v920 = vsel %vm919, %v915, %v917
      %v921 = vld [vmem:[%s6] sm:$0x1]
      %v922 = vld [vmem:[%s7] sm:$0x1]
      %v923 = vld [vmem:[%s8] sm:$0xf]
      %v924 = vld [vmem:[%s8 + $0x4] sm:$0xf]
      %v925 = vld [vmem:[%s8 + $0x8] sm:$0xf]
      %v926 = vld [vmem:[%s8 + $0xc] sm:$0xf]
      %v927 = vld [vmem:[%s9] sm:$0x1]
      %v928 = vld [vmem:[%s10] sm:$0xf]
      %v929 = vld [vmem:[%s10 + $0x4] sm:$0xf]
      %v930 = vld [vmem:[%s10 + $0x8] sm:$0xf]
      %v931 = vld [vmem:[%s10 + $0xc] sm:$0xf]
      %v932 = vld [vmem:[%s11] sm:$0x1]
      %v933 = vld [vmem:[%s12] sm:$0x1]
      %v934 = vld [vmem:[%s13] sm:$0x1]
      %v935 = vld [vmem:[%s14] sm:$0xf]
      %v936 = vld [vmem:[%s14 + $0x4] sm:$0xf]
      %v937 = vld [vmem:[%s14 + $0x8] sm:$0xf]
      %v938 = vld [vmem:[%s14 + $0xc] sm:$0xf]
      %v939 = vld [vmem:[%s15] sm:$0x1]
      %v940 = vld [vmem:[%s16] sm:$0xf]
      %v941 = vld [vmem:[%s16 + $0x4] sm:$0xf]
      %v942 = vld [vmem:[%s16 + $0x8] sm:$0xf]
      %v943 = vld [vmem:[%s16 + $0xc] sm:$0xf]
      %v944 = vld [vmem:[%s16 + $0x10] sm:$0xf]
      %v945 = vld [vmem:[%s16 + $0x14] sm:$0xf]
      %v946 = vld [vmem:[%s16 + $0x18] sm:$0xf]
      %v947 = vld [vmem:[%s16 + $0x1c] sm:$0xf]
      %v948 = vld [vmem:[%s16 + $0x20] sm:$0xf]
      %v949 = vld [vmem:[%s16 + $0x24] sm:$0xf]
      %v950 = vld [vmem:[%s16 + $0x28] sm:$0xf]
      %v951 = vld [vmem:[%s16 + $0x2c] sm:$0xf]
      %v952 = vld [vmem:[%s16 + $0x30] sm:$0xf]
      %v953 = vld [vmem:[%s16 + $0x34] sm:$0xf]
      %v954 = vld [vmem:[%s16 + $0x38] sm:$0xf]
      %v955 = vld [vmem:[%s16 + $0x3c] sm:$0xf]
      %v956 = vld [vmem:[%s17] sm:$0x1]
      %vm957 = vcmask 258048
      %v958 = vsel %vm957, %v920, 0.0
      %959 = vadd.xlane.f32.xlu0 %v958
      %v960 = vpop.xlane.xlu0 %959
      %v961 = vrcp.pop 32.0
      %v962 = vmul.f32 32.0, %v961
      %v963 = vsub.f32 1.0, %v962
      %v964 = vmul.f32 %v961, %v963
      %v965 = vadd.f32 %v961, %v964
      %vm966 = vweird.f32 %v961
      %v967 = vsel %vm966, %v961, %v965
      %v968 = vmul.f32 %v960, %v967
      %v969 = vsub.f32 %v920, %v968
      %v970 = vmul.f32 %v969, %v969
      %v971 = vsel %vm957, %v970, 0.0
      %972 = vadd.xlane.f32.xlu0 %v971
      %v973 = vpop.xlane.xlu0 %972
      %v974 = vmul.f32 %v973, %v967
      %v975 = vadd.f32 %v974, 1e-05
      %v976 = vrsqrt.pop %v975
      %v977 = vmul.f32 %v976, %v975
      %v978 = vmul.f32 %v977, %v976
      %v979 = vmul.f32 0.5, %v978
      %v980 = vsub.f32 1.5, %v979
      %v981 = vmul.f32 %v976, %v980
      %vm982 = vweird.f32 %v975
      %vm983 = vweird.f32 %v976
      %vm984 = vmor %vm982, %vm983
      %v985 = vsel %vm984, %v976, %v981
      %v986 = vmul.f32 %v969, %v985
      %v988 = vperm.slane %v921, 0
      %v990 = vmul.f32 %v986, %v988
      %v992 = vperm.slane %v922, 0
      %v994 = vadd.f32 %v990, %v992
      %v995 = vpack.c.bf16 %v994, %v994
      %v997 = vperm.slane %v927, 0
      %v1003 = vunpack.c.l.b16 %v923
      %v1004 = vunpack.c.l.b16 %v924
      %v1005 = vunpack.c.l.b16 %v925
      %v1006 = vunpack.c.l.b16 %v926
      %v1007 = vpack.c.b16 %v1004, %v1003
      %v1008 = vpack.c.b16 %v1006, %v1005
      %vm1011 = vcmask 261120
      %v1013 = vsel %vm1011, %v995, 0
      %1015 = vmatpush.bf16.msra.mxu0 0
      %1016 = vmatpush.bf16.msra.mxu0 0
      %1017 = vmatpush.bf16.msra.mxu0 0
      %1018 = vmatpush.bf16.msra.mxu0 0
      %1019 = vmatpush.bf16.msra.mxu0 0
      %1020 = vmatpush.bf16.msra.mxu0 0
      %1021 = vmatpush.bf16.msra.mxu0 %v1008
      %1022 = vmatpush.bf16.msra.mxu0 %v1007
      %1023 = vmatmul.bf16.gmra.mxu0 %v1013
      %v1024 = vpop.f32.mrf.mxu0
      %v1025 = vadd.f32 %v997, %v1024
      %v1026 = vpop.f32.mrf.mxu0
      %1027 = vdwg.mxu0
      %v1028 = vpack.c.bf16 %v1025, %v1025
      %v1030 = vunpack.c.l.b16 %v1028
      %v1031 = vpack.c.b16 %v1030, %v1030
      %1032 = vrot.lane.b32.xlu0 %v1031, 96
      %v1033 = vpop.permute.xlu0 %1032
      %v1035 = vsel %vm890, %v1028, 0
      %v1038 = vsel %vm890, %v1033, 0
      %1040 = vmatpush.bf16.xpose.msra.mxu0 0
      %1041 = vmatpush.bf16.xpose.msra.mxu0 0
      %1042 = vmatpush.bf16.xpose.msra.mxu0 0
      %1043 = vmatpush.bf16.xpose.msra.mxu0 0
      %1044 = vmatpush.bf16.xpose.msra.mxu0 0
      %1045 = vmatpush.bf16.xpose.msra.mxu0 0
      %1046 = vmatpush.bf16.xpose.msra.mxu0 0
      %1047 = vmatpush.bf16.xpose.msra.mxu0 %v1038
      %1048 = vmatmul.bf16.gmra.mxu0 %v1035
      %v1049 = vpop.f32.mrf.mxu0
      %v1050 = vadd.f32 0.0, %v1049
      %v1051 = vpop.f32.mrf.mxu0
      %1052 = vdwg.mxu0
      %vm1053 = vcmask 36864
      %v1054 = vsel %vm1053, %v1050, -inf
      %1055 = vmax.xlane.f32.xlu0 %v1054
      %v1056 = vpop.xlane.xlu0 %1055
      %v1057 = vsub.f32 %v1050, %v1056
      %v1058 = vmul.f32 %v1057, 1.442695
      %v1059 = vpow.pop %v1058
      %v1060 = vsel %vm1053, %v1059, 0.0
      %1061 = vadd.xlane.f32.xlu0 %v1060
      %v1062 = vpop.xlane.xlu0 %1061
      %v1063 = vrcp.pop %v1062
      %v1064 = vmul.f32 %v1059, %v1063
      %v1065 = vpack.c.bf16 %v1064, %v1064
      %1066 = vrot.lane.b32.xlu0 %v1031, 64
      %v1067 = vpop.permute.xlu0 %1066
      %vm1068 = vcmask 39936
      %v1070 = vsel %vm1068, %v1065, 0
      %vm1072 = vcmask 1041408
      %vm1073 = vcmask 1042432
      %v1074 = vsel %vm1072, 4294967295, 65535
      %v1075 = vsel %vm1073, %v1074, 0
      %v1077 = vand.u32 %v1067, %v1075
      %1079 = vmatpush.bf16.msra.mxu0 0
      %1080 = vmatpush.bf16.msra.mxu0 0
      %1081 = vmatpush.bf16.msra.mxu0 0
      %1082 = vmatpush.bf16.msra.mxu0 0
      %1083 = vmatpush.bf16.msra.mxu0 0
      %1084 = vmatpush.bf16.msra.mxu0 0
      %1085 = vmatpush.bf16.msra.mxu0 0
      %1086 = vmatpush.bf16.msra.mxu0 %v1077
      %1087 = vmatmul.bf16.gmra.mxu0 %v1070
      %v1088 = vpop.f32.mrf.mxu0
      %v1089 = vadd.f32 0.0, %v1088
      %v1090 = vpop.f32.mrf.mxu0
      %1091 = vdwg.mxu0
      %1092 = vrot.lane.b32.xlu0 %v1031, 112
      %v1093 = vpop.permute.xlu0 %1092
      %1094 = vrot.lane.b32.xlu0 %v1031, 80
      %v1095 = vpop.permute.xlu0 %1094
      %v1097 = vsel %vm890, %v1093, 0
      %v1100 = vsel %vm890, %v1095, 0
      %1102 = vmatpush.bf16.xpose.msra.mxu0 0
      %1103 = vmatpush.bf16.xpose.msra.mxu0 0
      %1104 = vmatpush.bf16.xpose.msra.mxu0 0
      %1105 = vmatpush.bf16.xpose.msra.mxu0 0
      %1106 = vmatpush.bf16.xpose.msra.mxu0 0
      %1107 = vmatpush.bf16.xpose.msra.mxu0 0
      %1108 = vmatpush.bf16.xpose.msra.mxu0 0
      %1109 = vmatpush.bf16.xpose.msra.mxu0 %v1100
      %1110 = vmatmul.bf16.gmra.mxu0 %v1097
      %v1111 = vpop.f32.mrf.mxu0
      %v1112 = vadd.f32 0.0, %v1111
      %v1113 = vpop.f32.mrf.mxu0
      %1114 = vdwg.mxu0
      %v1115 = vsel %vm1053, %v1112, -inf
      %1116 = vmax.xlane.f32.xlu0 %v1115
      %v1117 = vpop.xlane.xlu0 %1116
      %v1118 = vsub.f32 %v1112, %v1117
      %v1119 = vmul.f32 %v1118, 1.442695
      %v1120 = vpow.pop %v1119
      %v1121 = vsel %vm1053, %v1120, 0.0
      %1122 = vadd.xlane.f32.xlu0 %v1121
      %v1123 = vpop.xlane.xlu0 %1122
      %v1124 = vrcp.pop %v1123
      %v1125 = vmul.f32 %v1120, %v1124
      %v1126 = vpack.c.bf16 %v1125, %v1125
      %1127 = vrot.lane.b32.xlu0 %v1031, 48
      %v1128 = vpop.permute.xlu0 %1127
      %v1130 = vsel %vm1068, %v1126, 0
      %v1133 = vand.u32 %v1128, %v1075
      %1135 = vmatpush.bf16.msra.mxu0 0
      %1136 = vmatpush.bf16.msra.mxu0 0
      %1137 = vmatpush.bf16.msra.mxu0 0
      %1138 = vmatpush.bf16.msra.mxu0 0
      %1139 = vmatpush.bf16.msra.mxu0 0
      %1140 = vmatpush.bf16.msra.mxu0 0
      %1141 = vmatpush.bf16.msra.mxu0 0
      %1142 = vmatpush.bf16.msra.mxu0 %v1133
      %1143 = vmatmul.bf16.gmra.mxu0 %v1130
      %v1144 = vpop.f32.mrf.mxu0
      %v1145 = vadd.f32 0.0, %v1144
      %v1146 = vpop.f32.mrf.mxu0
      %1147 = vdwg.mxu0
      %1149 = vrot.lane.b32.xlu0 %v1145, 16
      %v1150 = vpop.permute.xlu0 %1149
      %v1152 = vsel %vm890, %v1089, %v1150
      %v1153 = vpack.c.bf16 %v1152, %v1152
      %v1158 = vunpack.c.l.b16 %v928
      %v1159 = vunpack.c.l.b16 %v929
      %v1160 = vunpack.c.l.b16 %v930
      %v1161 = vunpack.c.l.b16 %v931
      %v1162 = vpack.c.b16 %v1159, %v1158
      %v1163 = vpack.c.b16 %v1161, %v1160
      %v1167 = vsel %vm1011, %v1153, 0
      %1169 = vmatpush.bf16.msra.mxu0 0
      %1170 = vmatpush.bf16.msra.mxu0 0
      %1171 = vmatpush.bf16.msra.mxu0 0
      %1172 = vmatpush.bf16.msra.mxu0 0
      %1173 = vmatpush.bf16.msra.mxu0 0
      %1174 = vmatpush.bf16.msra.mxu0 0
      %1175 = vmatpush.bf16.msra.mxu0 %v1163
      %1176 = vmatpush.bf16.msra.mxu0 %v1162
      %1177 = vmatmul.bf16.gmra.mxu0 %v1167
      %v1178 = vpop.f32.mrf.mxu0
      %v1179 = vadd.f32 0.0, %v1178
      %v1180 = vpop.f32.mrf.mxu0
      %1181 = vdwg.mxu0
      %v1182 = vadd.f32 %v920, %v1179
      %v1184 = vperm.slane %v932, 0
      %v1186 = vadd.f32 %v1182, %v1184
      %v1187 = vsel %vm957, %v1186, 0.0
      %1188 = vadd.xlane.f32.xlu0 %v1187
      %v1189 = vpop.xlane.xlu0 %1188
      %v1190 = vmul.f32 %v1189, %v967
      %v1191 = vsub.f32 %v1186, %v1190
      %v1192 = vmul.f32 %v1191, %v1191
      %v1193 = vsel %vm957, %v1192, 0.0
      %1194 = vadd.xlane.f32.xlu0 %v1193
      %v1195 = vpop.xlane.xlu0 %1194
      %v1196 = vmul.f32 %v1195, %v967
      %v1197 = vadd.f32 %v1196, 1e-05
      %v1198 = vrsqrt.pop %v1197
      %v1199 = vmul.f32 %v1198, %v1197
      %v1200 = vmul.f32 %v1199, %v1198
      %v1201 = vmul.f32 0.5, %v1200
      %v1202 = vsub.f32 1.5, %v1201
      %v1203 = vmul.f32 %v1198, %v1202
      %vm1204 = vweird.f32 %v1197
      %vm1205 = vweird.f32 %v1198
      %vm1206 = vmor %vm1204, %vm1205
      %v1207 = vsel %vm1206, %v1198, %v1203
      %v1208 = vmul.f32 %v1191, %v1207
      %v1210 = vperm.slane %v933, 0
      %v1212 = vmul.f32 %v1208, %v1210
      %v1214 = vperm.slane %v934, 0
      %v1216 = vadd.f32 %v1212, %v1214
      %v1217 = vpack.c.bf16 %v1216, %v1216
      %v1219 = vperm.slane %v939, 0
      %v1225 = vunpack.c.l.b16 %v935
      %v1226 = vunpack.c.l.b16 %v936
      %v1227 = vunpack.c.l.b16 %v937
      %v1228 = vunpack.c.l.b16 %v938
      %v1229 = vpack.c.b16 %v1226, %v1225
      %v1230 = vpack.c.b16 %v1228, %v1227
      %v1234 = vsel %vm1011, %v1217, 0
      %1236 = vmatpush.bf16.msra.mxu0 0
      %1237 = vmatpush.bf16.msra.mxu0 0
      %1238 = vmatpush.bf16.msra.mxu0 0
      %1239 = vmatpush.bf16.msra.mxu0 0
      %1240 = vmatpush.bf16.msra.mxu0 0
      %1241 = vmatpush.bf16.msra.mxu0 0
      %1242 = vmatpush.bf16.msra.mxu0 %v1230
      %1243 = vmatpush.bf16.msra.mxu0 %v1229
      %1244 = vmatmul.bf16.gmra.mxu0 %v1234
      %v1245 = vpop.f32.mrf.mxu0
      %v1246 = vadd.f32 %v1219, %v1245
      %v1247 = vpop.f32.mrf.mxu0
      %1248 = vdwg.mxu0
      %v1249 = vmul.f32 %v1246, 0.5
      %v1250 = vmul.f32 %v1246, 0.70710677
      %vm1251 = vcmp.ge.f32.partialorder %v1250, 0.0
      %v1252 = vsel %vm1251, 1.0, -1.0
      %v1253 = vand.u32 2147483647, %v1250
      %v1254 = vmul.f32 %v1253, 0.3275911
      %v1255 = vadd.f32 %v1254, 1.0
      %v1256 = vrcp.pop %v1255
      %v1257 = vmul.f32 %v1255, %v1256
      %v1258 = vsub.f32 1.0, %v1257
      %v1259 = vmul.f32 %v1256, %v1258
      %v1260 = vadd.f32 %v1256, %v1259
      %vm1261 = vweird.f32 %v1255
      %vm1262 = vweird.f32 %v1256
      %vm1263 = vmor %vm1261, %vm1262
      %v1264 = vsel %vm1263, %v1256, %v1260
      %v1265 = vand.u32 2147483647, %v1255
      %vm1266 = vcmp.eq.f32.partialorder %v1265, 8.507059e+37
      %v1267 = vand.u32 %v1255, 2147483648
      %v1268 = vor.u32 1.1754944e-38, %v1267
      %v1269 = vsel %vm1266, %v1268, %v1264
      %v1270 = vmul.f32 1.0, %v1269
      %v1271 = vmul.f32 %v1270, 1.0614054
      %v1272 = vadd.f32 %v1271, -1.4531521
      %v1273 = vmul.f32 %v1272, %v1270
      %v1274 = vadd.f32 %v1273, 1.4214138
      %v1275 = vmul.f32 %v1274, %v1270
      %v1276 = vadd.f32 %v1275, -0.28449672
      %v1277 = vmul.f32 %v1276, %v1270
      %v1278 = vadd.f32 %v1277, 0.2548296
      %v1279 = vmul.f32 %v1278, %v1270
      %v1280 = vsub.f32 0.0, %v1253
      %v1281 = vmul.f32 %v1280, %v1253
      %v1282 = vmul.f32 %v1281, 1.442695
      %v1283 = vpow.pop %v1282
      %v1284 = vmul.f32 %v1279, %v1283
      %v1285 = vsub.f32 1.0, %v1284
      %v1286 = vmul.f32 %v1252, %v1285
      %v1287 = vadd.f32 %v1286, 1.0
      %v1288 = vmul.f32 %v1249, %v1287
      %v1289 = vpack.c.bf16 %v1288, %v1288
      %v1306 = vunpack.c.l.b16 %v940
      %v1307 = vunpack.c.l.b16 %v941
      %v1308 = vunpack.c.l.b16 %v942
      %v1309 = vunpack.c.l.b16 %v943
      %v1310 = vunpack.c.l.b16 %v944
      %v1311 = vunpack.c.l.b16 %v945
      %v1312 = vunpack.c.l.b16 %v946
      %v1313 = vunpack.c.l.b16 %v947
      %v1314 = vunpack.c.l.b16 %v948
      %v1315 = vunpack.c.l.b16 %v949
      %v1316 = vunpack.c.l.b16 %v950
      %v1317 = vunpack.c.l.b16 %v951
      %v1318 = vunpack.c.l.b16 %v952
      %v1319 = vunpack.c.l.b16 %v953
      %v1320 = vunpack.c.l.b16 %v954
      %v1321 = vunpack.c.l.b16 %v955
      %v1322 = vpack.c.b16 %v1307, %v1306
      %v1323 = vpack.c.b16 %v1309, %v1308
      %v1324 = vpack.c.b16 %v1311, %v1310
      %v1325 = vpack.c.b16 %v1313, %v1312
      %v1326 = vpack.c.b16 %v1315, %v1314
      %v1327 = vpack.c.b16 %v1317, %v1316
      %v1328 = vpack.c.b16 %v1319, %v1318
      %v1329 = vpack.c.b16 %v1321, %v1320
      %1338 = vmatpush.bf16.msra.mxu0 %v1329
      %1339 = vmatpush.bf16.msra.mxu0 %v1328
      %1340 = vmatpush.bf16.msra.mxu0 %v1327
      %1341 = vmatpush.bf16.msra.mxu0 %v1326
      %1342 = vmatpush.bf16.msra.mxu0 %v1325
      %1343 = vmatpush.bf16.msra.mxu0 %v1324
      %1344 = vmatpush.bf16.msra.mxu0 %v1323
      %1345 = vmatpush.bf16.msra.mxu0 %v1322
      %1346 = vmatmul.bf16.gmra.mxu0 %v1289
      %v1347 = vpop.f32.mrf.mxu0
      %v1348 = vadd.f32 0.0, %v1347
      %v1349 = vpop.f32.mrf.mxu0
      %1350 = vdwg.mxu0
      %v1351 = vadd.f32 %v1186, %v1348
      %v1353 = vperm.slane %v956, 0
      %v1355 = vadd.f32 %v1351, %v1353
      %s1356 = scalar_lea.vmem %s6, 1
      %v1357 = vld [vmem:[%s1356] sm:$0x1]
      %s1358 = scalar_lea.vmem %s7, 1
      %v1359 = vld [vmem:[%s1358] sm:$0x1]
      %s1360 = scalar_lea.vmem %s8, 16
      %v1361 = vld [vmem:[%s1360] sm:$0xf]
      %v1362 = vld [vmem:[%s1360 + $0x4] sm:$0xf]
      %v1363 = vld [vmem:[%s1360 + $0x8] sm:$0xf]
      %v1364 = vld [vmem:[%s1360 + $0xc] sm:$0xf]
      %s1365 = scalar_lea.vmem %s9, 1
      %v1366 = vld [vmem:[%s1365] sm:$0x1]
      %s1367 = scalar_lea.vmem %s10, 16
      %v1368 = vld [vmem:[%s1367] sm:$0xf]
      %v1369 = vld [vmem:[%s1367 + $0x4] sm:$0xf]
      %v1370 = vld [vmem:[%s1367 + $0x8] sm:$0xf]
      %v1371 = vld [vmem:[%s1367 + $0xc] sm:$0xf]
      %s1372 = scalar_lea.vmem %s11, 1
      %v1373 = vld [vmem:[%s1372] sm:$0x1]
      %s1374 = scalar_lea.vmem %s12, 1
      %v1375 = vld [vmem:[%s1374] sm:$0x1]
      %s1376 = scalar_lea.vmem %s13, 1
      %v1377 = vld [vmem:[%s1376] sm:$0x1]
      %s1378 = scalar_lea.vmem %s14, 16
      %v1379 = vld [vmem:[%s1378] sm:$0xf]
      %v1380 = vld [vmem:[%s1378 + $0x4] sm:$0xf]
      %v1381 = vld [vmem:[%s1378 + $0x8] sm:$0xf]
      %v1382 = vld [vmem:[%s1378 + $0xc] sm:$0xf]
      %s1383 = scalar_lea.vmem %s15, 1
      %v1384 = vld [vmem:[%s1383] sm:$0x1]
      %s1385 = scalar_lea.vmem %s16, 64
      %v1386 = vld [vmem:[%s1385] sm:$0xf]
      %v1387 = vld [vmem:[%s1385 + $0x4] sm:$0xf]
      %v1388 = vld [vmem:[%s1385 + $0x8] sm:$0xf]
      %v1389 = vld [vmem:[%s1385 + $0xc] sm:$0xf]
      %v1390 = vld [vmem:[%s1385 + $0x10] sm:$0xf]
      %v1391 = vld [vmem:[%s1385 + $0x14] sm:$0xf]
      %v1392 = vld [vmem:[%s1385 + $0x18] sm:$0xf]
      %v1393 = vld [vmem:[%s1385 + $0x1c] sm:$0xf]
      %v1394 = vld [vmem:[%s1385 + $0x20] sm:$0xf]
      %v1395 = vld [vmem:[%s1385 + $0x24] sm:$0xf]
      %v1396 = vld [vmem:[%s1385 + $0x28] sm:$0xf]
      %v1397 = vld [vmem:[%s1385 + $0x2c] sm:$0xf]
      %v1398 = vld [vmem:[%s1385 + $0x30] sm:$0xf]
      %v1399 = vld [vmem:[%s1385 + $0x34] sm:$0xf]
      %v1400 = vld [vmem:[%s1385 + $0x38] sm:$0xf]
      %v1401 = vld [vmem:[%s1385 + $0x3c] sm:$0xf]
      %s1402 = scalar_lea.vmem %s17, 1
      %v1403 = vld [vmem:[%s1402] sm:$0x1]
      %v1404 = vsel %vm957, %v1355, 0.0
      %1405 = vadd.xlane.f32.xlu0 %v1404
      %v1406 = vpop.xlane.xlu0 %1405
      %v1407 = vmul.f32 %v1406, %v967
      %v1408 = vsub.f32 %v1355, %v1407
      %v1409 = vmul.f32 %v1408, %v1408
      %v1410 = vsel %vm957, %v1409, 0.0
      %1411 = vadd.xlane.f32.xlu0 %v1410
      %v1412 = vpop.xlane.xlu0 %1411
      %v1413 = vmul.f32 %v1412, %v967
      %v1414 = vadd.f32 %v1413, 1e-05
      %v1415 = vrsqrt.pop %v1414
      %v1416 = vmul.f32 %v1415, %v1414
      %v1417 = vmul.f32 %v1416, %v1415
      %v1418 = vmul.f32 0.5, %v1417
      %v1419 = vsub.f32 1.5, %v1418
      %v1420 = vmul.f32 %v1415, %v1419
      %vm1421 = vweird.f32 %v1414
      %vm1422 = vweird.f32 %v1415
      %vm1423 = vmor %vm1421, %vm1422
      %v1424 = vsel %vm1423, %v1415, %v1420
      %v1425 = vmul.f32 %v1408, %v1424
      %v1427 = vperm.slane %v1357, 0
      %v1429 = vmul.f32 %v1425, %v1427
      %v1431 = vperm.slane %v1359, 0
      %v1433 = vadd.f32 %v1429, %v1431
      %v1434 = vpack.c.bf16 %v1433, %v1433
      %v1436 = vperm.slane %v1366, 0
      %v1442 = vunpack.c.l.b16 %v1361
      %v1443 = vunpack.c.l.b16 %v1362
      %v1444 = vunpack.c.l.b16 %v1363
      %v1445 = vunpack.c.l.b16 %v1364
      %v1446 = vpack.c.b16 %v1443, %v1442
      %v1447 = vpack.c.b16 %v1445, %v1444
      %v1451 = vsel %vm1011, %v1434, 0
      %1453 = vmatpush.bf16.msra.mxu0 0
      %1454 = vmatpush.bf16.msra.mxu0 0
      %1455 = vmatpush.bf16.msra.mxu0 0
      %1456 = vmatpush.bf16.msra.mxu0 0
      %1457 = vmatpush.bf16.msra.mxu0 0
      %1458 = vmatpush.bf16.msra.mxu0 0
      %1459 = vmatpush.bf16.msra.mxu0 %v1447
      %1460 = vmatpush.bf16.msra.mxu0 %v1446
      %1461 = vmatmul.bf16.gmra.mxu0 %v1451
      %v1462 = vpop.f32.mrf.mxu0
      %v1463 = vadd.f32 %v1436, %v1462
      %v1464 = vpop.f32.mrf.mxu0
      %1465 = vdwg.mxu0
      %v1466 = vpack.c.bf16 %v1463, %v1463
      %v1468 = vunpack.c.l.b16 %v1466
      %v1469 = vpack.c.b16 %v1468, %v1468
      %1470 = vrot.lane.b32.xlu0 %v1469, 96
      %v1471 = vpop.permute.xlu0 %1470
      %v1473 = vsel %vm890, %v1466, 0
      %v1476 = vsel %vm890, %v1471, 0
      %1478 = vmatpush.bf16.xpose.msra.mxu0 0
      %1479 = vmatpush.bf16.xpose.msra.mxu0 0
      %1480 = vmatpush.bf16.xpose.msra.mxu0 0
      %1481 = vmatpush.bf16.xpose.msra.mxu0 0
      %1482 = vmatpush.bf16.xpose.msra.mxu0 0
      %1483 = vmatpush.bf16.xpose.msra.mxu0 0
      %1484 = vmatpush.bf16.xpose.msra.mxu0 0
      %1485 = vmatpush.bf16.xpose.msra.mxu0 %v1476
      %1486 = vmatmul.bf16.gmra.mxu0 %v1473
      %v1487 = vpop.f32.mrf.mxu0
      %v1488 = vadd.f32 0.0, %v1487
      %v1489 = vpop.f32.mrf.mxu0
      %1490 = vdwg.mxu0
      %v1491 = vsel %vm1053, %v1488, -inf
      %1492 = vmax.xlane.f32.xlu0 %v1491
      %v1493 = vpop.xlane.xlu0 %1492
      %v1494 = vsub.f32 %v1488, %v1493
      %v1495 = vmul.f32 %v1494, 1.442695
      %v1496 = vpow.pop %v1495
      %v1497 = vsel %vm1053, %v1496, 0.0
      %1498 = vadd.xlane.f32.xlu0 %v1497
      %v1499 = vpop.xlane.xlu0 %1498
      %v1500 = vrcp.pop %v1499
      %v1501 = vmul.f32 %v1496, %v1500
      %v1502 = vpack.c.bf16 %v1501, %v1501
      %1503 = vrot.lane.b32.xlu0 %v1469, 64
      %v1504 = vpop.permute.xlu0 %1503
      %v1506 = vsel %vm1068, %v1502, 0
      %v1509 = vand.u32 %v1504, %v1075
      %1511 = vmatpush.bf16.msra.mxu0 0
      %1512 = vmatpush.bf16.msra.mxu0 0
      %1513 = vmatpush.bf16.msra.mxu0 0
      %1514 = vmatpush.bf16.msra.mxu0 0
      %1515 = vmatpush.bf16.msra.mxu0 0
      %1516 = vmatpush.bf16.msra.mxu0 0
      %1517 = vmatpush.bf16.msra.mxu0 0
      %1518 = vmatpush.bf16.msra.mxu0 %v1509
      %1519 = vmatmul.bf16.gmra.mxu0 %v1506
      %v1520 = vpop.f32.mrf.mxu0
      %v1521 = vadd.f32 0.0, %v1520
      %v1522 = vpop.f32.mrf.mxu0
      %1523 = vdwg.mxu0
      %1524 = vrot.lane.b32.xlu0 %v1469, 112
      %v1525 = vpop.permute.xlu0 %1524
      %1526 = vrot.lane.b32.xlu0 %v1469, 80
      %v1527 = vpop.permute.xlu0 %1526
      %v1529 = vsel %vm890, %v1525, 0
      %v1532 = vsel %vm890, %v1527, 0
      %1534 = vmatpush.bf16.xpose.msra.mxu0 0
      %1535 = vmatpush.bf16.xpose.msra.mxu0 0
      %1536 = vmatpush.bf16.xpose.msra.mxu0 0
      %1537 = vmatpush.bf16.xpose.msra.mxu0 0
      %1538 = vmatpush.bf16.xpose.msra.mxu0 0
      %1539 = vmatpush.bf16.xpose.msra.mxu0 0
      %1540 = vmatpush.bf16.xpose.msra.mxu0 0
      %1541 = vmatpush.bf16.xpose.msra.mxu0 %v1532
      %1542 = vmatmul.bf16.gmra.mxu0 %v1529
      %v1543 = vpop.f32.mrf.mxu0
      %v1544 = vadd.f32 0.0, %v1543
      %v1545 = vpop.f32.mrf.mxu0
      %1546 = vdwg.mxu0
      %v1547 = vsel %vm1053, %v1544, -inf
      %1548 = vmax.xlane.f32.xlu0 %v1547
      %v1549 = vpop.xlane.xlu0 %1548
      %v1550 = vsub.f32 %v1544, %v1549
      %v1551 = vmul.f32 %v1550, 1.442695
      %v1552 = vpow.pop %v1551
      %v1553 = vsel %vm1053, %v1552, 0.0
      %1554 = vadd.xlane.f32.xlu0 %v1553
      %v1555 = vpop.xlane.xlu0 %1554
      %v1556 = vrcp.pop %v1555
      %v1557 = vmul.f32 %v1552, %v1556
      %v1558 = vpack.c.bf16 %v1557, %v1557
      %1559 = vrot.lane.b32.xlu0 %v1469, 48
      %v1560 = vpop.permute.xlu0 %1559
      %v1562 = vsel %vm1068, %v1558, 0
      %v1565 = vand.u32 %v1560, %v1075
      %1567 = vmatpush.bf16.msra.mxu0 0
      %1568 = vmatpush.bf16.msra.mxu0 0
      %1569 = vmatpush.bf16.msra.mxu0 0
      %1570 = vmatpush.bf16.msra.mxu0 0
      %1571 = vmatpush.bf16.msra.mxu0 0
      %1572 = vmatpush.bf16.msra.mxu0 0
      %1573 = vmatpush.bf16.msra.mxu0 0
      %1574 = vmatpush.bf16.msra.mxu0 %v1565
      %1575 = vmatmul.bf16.gmra.mxu0 %v1562
      %v1576 = vpop.f32.mrf.mxu0
      %v1577 = vadd.f32 0.0, %v1576
      %v1578 = vpop.f32.mrf.mxu0
      %1579 = vdwg.mxu0
      %1581 = vrot.lane.b32.xlu0 %v1577, 16
      %v1582 = vpop.permute.xlu0 %1581
      %v1584 = vsel %vm890, %v1521, %v1582
      %v1585 = vpack.c.bf16 %v1584, %v1584
      %v1590 = vunpack.c.l.b16 %v1368
      %v1591 = vunpack.c.l.b16 %v1369
      %v1592 = vunpack.c.l.b16 %v1370
      %v1593 = vunpack.c.l.b16 %v1371
      %v1594 = vpack.c.b16 %v1591, %v1590
      %v1595 = vpack.c.b16 %v1593, %v1592
      %v1599 = vsel %vm1011, %v1585, 0
      %1601 = vmatpush.bf16.msra.mxu0 0
      %1602 = vmatpush.bf16.msra.mxu0 0
      %1603 = vmatpush.bf16.msra.mxu0 0
      %1604 = vmatpush.bf16.msra.mxu0 0
      %1605 = vmatpush.bf16.msra.mxu0 0
      %1606 = vmatpush.bf16.msra.mxu0 0
      %1607 = vmatpush.bf16.msra.mxu0 %v1595
      %1608 = vmatpush.bf16.msra.mxu0 %v1594
      %1609 = vmatmul.bf16.gmra.mxu0 %v1599
      %v1610 = vpop.f32.mrf.mxu0
      %v1611 = vadd.f32 0.0, %v1610
      %v1612 = vpop.f32.mrf.mxu0
      %1613 = vdwg.mxu0
      %v1614 = vadd.f32 %v1355, %v1611
      %v1616 = vperm.slane %v1373, 0
      %v1618 = vadd.f32 %v1614, %v1616
      %v1619 = vsel %vm957, %v1618, 0.0
      %1620 = vadd.xlane.f32.xlu0 %v1619
      %v1621 = vpop.xlane.xlu0 %1620
      %v1622 = vmul.f32 %v1621, %v967
      %v1623 = vsub.f32 %v1618, %v1622
      %v1624 = vmul.f32 %v1623, %v1623
      %v1625 = vsel %vm957, %v1624, 0.0
      %1626 = vadd.xlane.f32.xlu0 %v1625
      %v1627 = vpop.xlane.xlu0 %1626
      %v1628 = vmul.f32 %v1627, %v967
      %v1629 = vadd.f32 %v1628, 1e-05
      %v1630 = vrsqrt.pop %v1629
      %v1631 = vmul.f32 %v1630, %v1629
      %v1632 = vmul.f32 %v1631, %v1630
      %v1633 = vmul.f32 0.5, %v1632
      %v1634 = vsub.f32 1.5, %v1633
      %v1635 = vmul.f32 %v1630, %v1634
      %vm1636 = vweird.f32 %v1629
      %vm1637 = vweird.f32 %v1630
      %vm1638 = vmor %vm1636, %vm1637
      %v1639 = vsel %vm1638, %v1630, %v1635
      %v1640 = vmul.f32 %v1623, %v1639
      %v1642 = vperm.slane %v1375, 0
      %v1644 = vmul.f32 %v1640, %v1642
      %v1646 = vperm.slane %v1377, 0
      %v1648 = vadd.f32 %v1644, %v1646
      %v1649 = vpack.c.bf16 %v1648, %v1648
      %v1651 = vperm.slane %v1384, 0
      %v1657 = vunpack.c.l.b16 %v1379
      %v1658 = vunpack.c.l.b16 %v1380
      %v1659 = vunpack.c.l.b16 %v1381
      %v1660 = vunpack.c.l.b16 %v1382
      %v1661 = vpack.c.b16 %v1658, %v1657
      %v1662 = vpack.c.b16 %v1660, %v1659
      %v1666 = vsel %vm1011, %v1649, 0
      %1668 = vmatpush.bf16.msra.mxu0 0
      %1669 = vmatpush.bf16.msra.mxu0 0
      %1670 = vmatpush.bf16.msra.mxu0 0
      %1671 = vmatpush.bf16.msra.mxu0 0
      %1672 = vmatpush.bf16.msra.mxu0 0
      %1673 = vmatpush.bf16.msra.mxu0 0
      %1674 = vmatpush.bf16.msra.mxu0 %v1662
      %1675 = vmatpush.bf16.msra.mxu0 %v1661
      %1676 = vmatmul.bf16.gmra.mxu0 %v1666
      %v1677 = vpop.f32.mrf.mxu0
      %v1678 = vadd.f32 %v1651, %v1677
      %v1679 = vpop.f32.mrf.mxu0
      %1680 = vdwg.mxu0
      %v1681 = vmul.f32 %v1678, 0.5
      %v1682 = vmul.f32 %v1678, 0.70710677
      %vm1683 = vcmp.ge.f32.partialorder %v1682, 0.0
      %v1684 = vsel %vm1683, 1.0, -1.0
      %v1685 = vand.u32 2147483647, %v1682
      %v1686 = vmul.f32 %v1685, 0.3275911
      %v1687 = vadd.f32 %v1686, 1.0
      %v1688 = vrcp.pop %v1687
      %v1689 = vmul.f32 %v1687, %v1688
      %v1690 = vsub.f32 1.0, %v1689
      %v1691 = vmul.f32 %v1688, %v1690
      %v1692 = vadd.f32 %v1688, %v1691
      %vm1693 = vweird.f32 %v1687
      %vm1694 = vweird.f32 %v1688
      %vm1695 = vmor %vm1693, %vm1694
      %v1696 = vsel %vm1695, %v1688, %v1692
      %v1697 = vand.u32 2147483647, %v1687
      %vm1698 = vcmp.eq.f32.partialorder %v1697, 8.507059e+37
      %v1699 = vand.u32 %v1687, 2147483648
      %v1700 = vor.u32 1.1754944e-38, %v1699
      %v1701 = vsel %vm1698, %v1700, %v1696
      %v1702 = vmul.f32 1.0, %v1701
      %v1703 = vmul.f32 %v1702, 1.0614054
      %v1704 = vadd.f32 %v1703, -1.4531521
      %v1705 = vmul.f32 %v1704, %v1702
      %v1706 = vadd.f32 %v1705, 1.4214138
      %v1707 = vmul.f32 %v1706, %v1702
      %v1708 = vadd.f32 %v1707, -0.28449672
      %v1709 = vmul.f32 %v1708, %v1702
      %v1710 = vadd.f32 %v1709, 0.2548296
      %v1711 = vmul.f32 %v1710, %v1702
      %v1712 = vsub.f32 0.0, %v1685
      %v1713 = vmul.f32 %v1712, %v1685
      %v1714 = vmul.f32 %v1713, 1.442695
      %v1715 = vpow.pop %v1714
      %v1716 = vmul.f32 %v1711, %v1715
      %v1717 = vsub.f32 1.0, %v1716
      %v1718 = vmul.f32 %v1684, %v1717
      %v1719 = vadd.f32 %v1718, 1.0
      %v1720 = vmul.f32 %v1681, %v1719
      %v1721 = vpack.c.bf16 %v1720, %v1720
      %v1738 = vunpack.c.l.b16 %v1386
      %v1739 = vunpack.c.l.b16 %v1387
      %v1740 = vunpack.c.l.b16 %v1388
      %v1741 = vunpack.c.l.b16 %v1389
      %v1742 = vunpack.c.l.b16 %v1390
      %v1743 = vunpack.c.l.b16 %v1391
      %v1744 = vunpack.c.l.b16 %v1392
      %v1745 = vunpack.c.l.b16 %v1393
      %v1746 = vunpack.c.l.b16 %v1394
      %v1747 = vunpack.c.l.b16 %v1395
      %v1748 = vunpack.c.l.b16 %v1396
      %v1749 = vunpack.c.l.b16 %v1397
      %v1750 = vunpack.c.l.b16 %v1398
      %v1751 = vunpack.c.l.b16 %v1399
      %v1752 = vunpack.c.l.b16 %v1400
      %v1753 = vunpack.c.l.b16 %v1401
      %v1754 = vpack.c.b16 %v1739, %v1738
      %v1755 = vpack.c.b16 %v1741, %v1740
      %v1756 = vpack.c.b16 %v1743, %v1742
      %v1757 = vpack.c.b16 %v1745, %v1744
      %v1758 = vpack.c.b16 %v1747, %v1746
      %v1759 = vpack.c.b16 %v1749, %v1748
      %v1760 = vpack.c.b16 %v1751, %v1750
      %v1761 = vpack.c.b16 %v1753, %v1752
      %1770 = vmatpush.bf16.msra.mxu0 %v1761
      %1771 = vmatpush.bf16.msra.mxu0 %v1760
      %1772 = vmatpush.bf16.msra.mxu0 %v1759
      %1773 = vmatpush.bf16.msra.mxu0 %v1758
      %1774 = vmatpush.bf16.msra.mxu0 %v1757
      %1775 = vmatpush.bf16.msra.mxu0 %v1756
      %1776 = vmatpush.bf16.msra.mxu0 %v1755
      %1777 = vmatpush.bf16.msra.mxu0 %v1754
      %1778 = vmatmul.bf16.gmra.mxu0 %v1721
      %v1779 = vpop.f32.mrf.mxu0
      %v1780 = vadd.f32 0.0, %v1779
      %v1781 = vpop.f32.mrf.mxu0
      %1782 = vdwg.mxu0
      %v1783 = vadd.f32 %v1618, %v1780
      %v1785 = vperm.slane %v1403, 0
      %v1787 = vadd.f32 %v1783, %v1785
      %v1788 = vld [vmem:[%s18] sm:$0x1]
      %v1789 = vld [vmem:[%s19] sm:$0x1]
      %v1790 = vsel %vm957, %v1787, 0.0
      %1791 = vadd.xlane.f32.xlu0 %v1790
      %v1792 = vpop.xlane.xlu0 %1791
      %v1793 = vmul.f32 %v1792, %v967
      %v1794 = vsub.f32 %v1787, %v1793
      %v1795 = vmul.f32 %v1794, %v1794
      %v1796 = vsel %vm957, %v1795, 0.0
      %1797 = vadd.xlane.f32.xlu0 %v1796
      %v1798 = vpop.xlane.xlu0 %1797
      %v1799 = vmul.f32 %v1798, %v967
      %v1800 = vadd.f32 %v1799, 1e-05
      %v1801 = vrsqrt.pop %v1800
      %v1802 = vmul.f32 %v1801, %v1800
      %v1803 = vmul.f32 %v1802, %v1801
      %v1804 = vmul.f32 0.5, %v1803
      %v1805 = vsub.f32 1.5, %v1804
      %v1806 = vmul.f32 %v1801, %v1805
      %vm1807 = vweird.f32 %v1800
      %vm1808 = vweird.f32 %v1801
      %vm1809 = vmor %vm1807, %vm1808
      %v1810 = vsel %vm1809, %v1801, %v1806
      %v1811 = vmul.f32 %v1794, %v1810
      %v1813 = vperm.slane %v1788, 0
      %v1815 = vmul.f32 %v1811, %v1813
      %v1817 = vperm.slane %v1789, 0
      %v1819 = vadd.f32 %v1815, %v1817
      %v1820 = vld [vmem:[%s20] sm:$0xf]
      %v1821 = vld [vmem:[%s20 + $0x4] sm:$0xf]
      %v1822 = vld [vmem:[%s20 + $0x8] sm:$0xf]
      %v1823 = vld [vmem:[%s20 + $0xc] sm:$0xf]
      %v1824 = vpack.c.bf16 %v1819, %v1819
      %v1825 = vld [vmem:[%s21] sm:$0x1]
      %v1827 = vperm.slane %v1825, 0
      %v1833 = vunpack.c.l.b16 %v1820
      %v1834 = vunpack.c.l.b16 %v1821
      %v1835 = vunpack.c.l.b16 %v1822
      %v1836 = vunpack.c.l.b16 %v1823
      %v1837 = vpack.c.b16 %v1834, %v1833
      %v1838 = vpack.c.b16 %v1836, %v1835
      %v1842 = vsel %vm1011, %v1824, 0
      %1844 = vmatpush.bf16.msra.mxu0 0
      %1845 = vmatpush.bf16.msra.mxu0 0
      %1846 = vmatpush.bf16.msra.mxu0 0
      %1847 = vmatpush.bf16.msra.mxu0 0
      %1848 = vmatpush.bf16.msra.mxu0 0
      %1849 = vmatpush.bf16.msra.mxu0 0
      %1850 = vmatpush.bf16.msra.mxu0 %v1838
      %1851 = vmatpush.bf16.msra.mxu0 %v1837
      %1852 = vmatmul.bf16.gmra.mxu0 %v1842
      %v1853 = vpop.f32.mrf.mxu0
      %v1854 = vadd.f32 %v1827, %v1853
      %v1855 = vpop.f32.mrf.mxu0
      %1856 = vdwg.mxu0
      %1857 = vst.msk [vmem:[%s698] sm:$0x1f] %vm957, %v1854
      %p1858 = scmp.lt.s32.totalorder %s33, 1
      %s1859 = scalar_select %p1858, %s33, 1
      %s1860 = smul.addr %s1859, 8
      %s1861 = scalar_lea.vmem %s22, %s1860
      // Predicated region
      $region109: #{forward.2} parent=107 // pred_check
        %p1862 = pneg %p523
      $region110: #{forward.2} parent=107 // pred_check_branch
        %1864 = sbr.rel (%p1862) target = $region112
      $region111: #{forward.2} parent=107 // pred_region
        _
      $region112: #{forward.2} parent=107 // pred_fallthru
        _
    $region108: #{forward.2} parent=5 // pred_fallthru
      _
    %p1865 = scmp.le.s32.totalorder 2, %s28
    // Predicated region
    $region113: #{forward.2} parent=5 // pred_check
      %p1866 = pneg %p1865
    $region114: #{forward.2} parent=5 // pred_check_branch
      %1868 = sbr.rel (%p1866) target = $region116
    $region115: #{forward.2} parent=5 // pred_region
      %s1869 = ssub.s32 %s28, 2
      // Predicated region
      $region117: #{forward.2} parent=115 // pred_check
        %p1870 = pneg %p529
      $region118: #{forward.2} parent=115 // pred_check_branch
        %1872 = sbr.rel (%p1870) target = $region120
      $region119: #{forward.2} parent=115 // pred_region
        %p1873 = scmp.lt.s32.totalorder %s34, 1
        %s1874 = scalar_select %p1873, %s34, 1
        %s1875 = smul.addr %s1874, 8
        %s1876 = scalar_lea.vmem %s22, %s1875
      $region120: #{forward.2} parent=115 // pred_fallthru
        _
    $region116: #{forward.2} parent=5 // pred_fallthru
      _
  $region6: #{forward.2} parent=0 // loop_footer
    %s32 = sadd.s32 1, %s28
  $region7: #{forward.2} parent=0 // loop_footer_branch
    %27 = sbr.rel target = $region3
  $region8: #{forward.2} parent=0 // loop_exit
    _

// kernel: forward.3
$region0: #{forward.3}
  #allocation0 [shape = 'u32[]', space=smem, size = 0x4, offset = 0x4, fixed_abs, tag = 'smem constant byte address 0x4 - core index']
  #allocation1 [shape = 'u32[72,128]{1,0:T(1,128)}', space=vmem, size = 0x9000, scoped, tag = 'internal scratch']
  %s0 = inlined_call_operand.vmem [shape: f32[2,5,32], index: 0, kind: input, shape index: {}]
  %s1 = inlined_call_operand.vmem [shape: s32[2,16,1], index: 1, kind: input, shape index: {}]
  %s2 = inlined_call_operand.vmem [shape: f32[1,1,32], index: 2, kind: input, shape index: {}]
  %s3 = inlined_call_operand.vmem [shape: f32[1,17,32], index: 3, kind: input, shape index: {}]
  %s4 = inlined_call_operand.vmem [shape: f32[1,1,32], index: 4, kind: input, shape index: {}]
  %s5 = inlined_call_operand.vmem [shape: f32[1,1,32], index: 5, kind: input, shape index: {}]
  %s6 = inlined_call_operand.vmem [shape: bf16[1,32,96], index: 6, kind: input, shape index: {}]
  %s7 = inlined_call_operand.vmem [shape: f32[1,1,96], index: 7, kind: input, shape index: {}]
  %s8 = inlined_call_operand.vmem [shape: bf16[1,32,32], index: 8, kind: input, shape index: {}]
  %s9 = inlined_call_operand.vmem [shape: f32[1,1,32], index: 9, kind: input, shape index: {}]
  %s10 = inlined_call_operand.vmem [shape: f32[1,1,32], index: 10, kind: input, shape index: {}]
  %s11 = inlined_call_operand.vmem [shape: f32[1,1,32], index: 11, kind: input, shape index: {}]
  %s12 = inlined_call_operand.vmem [shape: bf16[1,32,128], index: 12, kind: input, shape index: {}]
  %s13 = inlined_call_operand.vmem [shape: f32[1,1,128], index: 13, kind: input, shape index: {}]
  %s14 = inlined_call_operand.vmem [shape: bf16[1,128,32], index: 14, kind: input, shape index: {}]
  %s15 = inlined_call_operand.vmem [shape: f32[1,1,32], index: 15, kind: input, shape index: {}]
  %s16 = inlined_call_operand.vmem [shape: f32[1,32], index: 16, kind: input, shape index: {}]
  %s17 = inlined_call_operand.vmem [shape: f32[1,32], index: 17, kind: input, shape index: {}]
  %s18 = inlined_call_operand.vmem [shape: bf16[32,256], index: 18, kind: input, shape index: {}]
  %s19 = inlined_call_operand.vmem [shape: f32[1,256], index: 19, kind: input, shape index: {}]
  %s20 = inlined_call_operand.vmem [shape: f32[2,16,256], index: 20, kind: input, shape index: {}]
  %s21 = inlined_call_operand.hbm [shape: f32[2,16,256], index: 21, kind: output, shape index: {0}]
  %s22 = inlined_call_operand.vmem [shape: f32[2,1,2], index: 22, kind: output, shape index: {1}]
  %23 = xla_tuple %s21, %s22
  %s24 = sld [smem:[#allocation0]]
  $region125: #{forward.3} parent=0
    _
  %s26 = ssub.s32 1, %s24
  %s27 = scalar_select 0, %s26, %s24
  $region1: #{forward.3} parent=0
    #allocation2 [shape = 'u8[32768]{0}', space=vmem, size = 0x8000, scoped, tag = 'output window, operand 0']
    #allocation3 [shape = 's32[2]{0}', space=sflag, size = 0x8, scoped, tag = 'scoped memory for forward.3']
    %28 = vsyncpa [#allocation3], 0
    %s29 = scalar_lea.sflag [#allocation3], 1
    %30 = vsyncpa %s29, 0
    loop: start=0, step=1, limit=4
    $region2: #{forward.3} parent=1 // loop_pre_header
      _
    $region3: #{forward.3} parent=1 // loop_header
      %s32 = sphi 0, %s36
      %p33 = scmp.ge.s32.totalorder %s32, 4
      %s42 = sphi 0, %s44
      %s45 = sphi 0, %s42
      %s46 = sphi 0, %s45
      %s62 = sphi 0, %s46
      %s68 = sphi 0, %s70
      %s71 = sphi 0, %s68
      %s72 = sphi 0, %s71
      %s88 = sphi 0, %s72
      %s92 = sphi 0, %s92
      %s94 = sphi 0, %s92
      %s95 = sphi 0, %s94
      %s109 = sphi 0, %s95
      %s113 = sphi 0, %s113
      %s115 = sphi 0, %s113
      %s116 = sphi 0, %s115
      %s130 = sphi 0, %s116
      %s134 = sphi 0, %s134
      %s136 = sphi 0, %s134
      %s137 = sphi 0, %s136
      %s151 = sphi 0, %s137
      %s155 = sphi 0, %s155
      %s157 = sphi 0, %s155
      %s158 = sphi 0, %s157
      %s172 = sphi 0, %s158
      %s176 = sphi 0, %s176
      %s178 = sphi 0, %s176
      %s179 = sphi 0, %s178
      %s193 = sphi 0, %s179
      %s197 = sphi 0, %s197
      %s199 = sphi 0, %s197
      %s200 = sphi 0, %s199
      %s214 = sphi 0, %s200
      %s218 = sphi 0, %s218
      %s220 = sphi 0, %s218
      %s221 = sphi 0, %s220
      %s235 = sphi 0, %s221
      %s239 = sphi 0, %s239
      %s241 = sphi 0, %s239
      %s242 = sphi 0, %s241
      %s256 = sphi 0, %s242
      %s260 = sphi 0, %s260
      %s262 = sphi 0, %s260
      %s263 = sphi 0, %s262
      %s277 = sphi 0, %s263
      %s281 = sphi 0, %s281
      %s283 = sphi 0, %s281
      %s284 = sphi 0, %s283
      %s298 = sphi 0, %s284
      %s302 = sphi 0, %s302
      %s304 = sphi 0, %s302
      %s305 = sphi 0, %s304
      %s319 = sphi 0, %s305
      %s323 = sphi 0, %s323
      %s325 = sphi 0, %s323
      %s326 = sphi 0, %s325
      %s340 = sphi 0, %s326
      %s344 = sphi 0, %s344
      %s346 = sphi 0, %s344
      %s347 = sphi 0, %s346
      %s361 = sphi 0, %s347
      %s365 = sphi 0, %s365
      %s367 = sphi 0, %s365
      %s368 = sphi 0, %s367
      %s382 = sphi 0, %s368
      %s386 = sphi 0, %s386
      %s388 = sphi 0, %s386
      %s389 = sphi 0, %s388
      %s403 = sphi 0, %s389
      %s407 = sphi 0, %s407
      %s409 = sphi 0, %s407
      %s410 = sphi 0, %s409
      %s424 = sphi 0, %s410
      %s428 = sphi 0, %s428
      %s430 = sphi 0, %s428
      %s431 = sphi 0, %s430
      %s445 = sphi 0, %s431
      %s449 = sphi 0, %s449
      %s451 = sphi 0, %s449
      %s452 = sphi 0, %s451
      %s466 = sphi 0, %s452
      %s472 = sphi 0, %s474
      %s475 = sphi 0, %s472
      %s476 = sphi 0, %s475
      %s492 = sphi 0, %s476
      %s498 = sphi 0, %s500
      %s501 = sphi 0, %s498
      %s502 = sphi 0, %s501
      %s518 = sphi 0, %s502
      %s524 = sphi 0, %s526
      %s527 = sphi 0, %s524
      %s528 = sphi 0, %s527
      %s544 = sphi 0, %s528
    $region4: #{forward.3} parent=1 // loop_header_branch
      %35 = sbr.rel (%p33) target = $region8
    $region5: #{forward.3} parent=1 // loop_body
      %s37 = ssub.s32 %s32, 1
      %s38 = ssub.s32 %s32, 2
      %s39 = sadd.s32 %s32, 1
      %s40 = ssub.s32 %s32, %s39
      %p41 = scmp.eq.s32.totalorder %s40, 0
      %s43 = sadd.s32 %s42, 1
      %s44 = scalar_select %p41, %s42, %s43
      %p47 = pneg %p41
      %p48 = scmp.eq.s32.totalorder %s32, 1
      %p49 = por %p47, %p48
      %p50 = scmp.ne.s32.totalorder %s42, %s45
      %p51 = scmp.eq.s32.totalorder %s32, 0
      %p52 = por %p50, %p51
      %p53 = scmp.ne.s32.totalorder %s42, %s45
      %p54 = scmp.eq.s32.totalorder %s37, 1
      %p55 = por %p53, %p54
      %p56 = scmp.ne.s32.totalorder %s45, %s46
      %p57 = scmp.eq.s32.totalorder %s37, 0
      %p58 = por %p56, %p57
      %p59 = scmp.ne.s32.totalorder %s45, %s46
      %p60 = scmp.eq.s32.totalorder %s38, 1
      %p61 = por %p59, %p60
      %p63 = scmp.ne.s32.totalorder %s46, %s62
      %p64 = scmp.eq.s32.totalorder %s38, 0
      %p65 = por %p63, %p64
      %s66 = ssub.s32 %s32, %s39
      %p67 = scmp.eq.s32.totalorder %s66, 0
      %s69 = sadd.s32 %s68, 1
      %s70 = scalar_select %p67, %s68, %s69
      %p73 = pneg %p67
      %p74 = scmp.eq.s32.totalorder %s32, 1
      %p75 = por %p73, %p74
      %p76 = scmp.ne.s32.totalorder %s68, %s71
      %p77 = scmp.eq.s32.totalorder %s32, 0
      %p78 = por %p76, %p77
      %p79 = scmp.ne.s32.totalorder %s68, %s71
      %p80 = scmp.eq.s32.totalorder %s37, 1
      %p81 = por %p79, %p80
      %p82 = scmp.ne.s32.totalorder %s71, %s72
      %p83 = scmp.eq.s32.totalorder %s37, 0
      %p84 = por %p82, %p83
      %p85 = scmp.ne.s32.totalorder %s71, %s72
      %p86 = scmp.eq.s32.totalorder %s38, 1
      %p87 = por %p85, %p86
      %p89 = scmp.ne.s32.totalorder %s72, %s88
      %p90 = scmp.eq.s32.totalorder %s38, 0
      %p91 = por %p89, %p90
      %s93 = sadd.s32 %s92, 1
      %p96 = scmp.eq.s32.totalorder %s32, 1
      %p97 = scmp.ne.s32.totalorder %s92, %s94
      %p98 = scmp.eq.s32.totalorder %s32, 0
      %p99 = por %p97, %p98
      %p100 = scmp.ne.s32.totalorder %s92, %s94
      %p101 = scmp.eq.s32.totalorder %s37, 1
      %p102 = por %p100, %p101
      %p103 = scmp.ne.s32.totalorder %s94, %s95
      %p104 = scmp.eq.s32.totalorder %s37, 0
      %p105 = por %p103, %p104
      %p106 = scmp.ne.s32.totalorder %s94, %s95
      %p107 = scmp.eq.s32.totalorder %s38, 1
      %p108 = por %p106, %p107
      %p110 = scmp.ne.s32.totalorder %s95, %s109
      %p111 = scmp.eq.s32.totalorder %s38, 0
      %p112 = por %p110, %p111
      %s114 = sadd.s32 %s113, 1
      %p117 = scmp.eq.s32.totalorder %s32, 1
      %p118 = scmp.ne.s32.totalorder %s113, %s115
      %p119 = scmp.eq.s32.totalorder %s32, 0
      %p120 = por %p118, %p119
      %p121 = scmp.ne.s32.totalorder %s113, %s115
      %p122 = scmp.eq.s32.totalorder %s37, 1
      %p123 = por %p121, %p122
      %p124 = scmp.ne.s32.totalorder %s115, %s116
      %p125 = scmp.eq.s32.totalorder %s37, 0
      %p126 = por %p124, %p125
      %p127 = scmp.ne.s32.totalorder %s115, %s116
      %p128 = scmp.eq.s32.totalorder %s38, 1
      %p129 = por %p127, %p128
      %p131 = scmp.ne.s32.totalorder %s116, %s130
      %p132 = scmp.eq.s32.totalorder %s38, 0
      %p133 = por %p131, %p132
      %s135 = sadd.s32 %s134, 1
      %p138 = scmp.eq.s32.totalorder %s32, 1
      %p139 = scmp.ne.s32.totalorder %s134, %s136
      %p140 = scmp.eq.s32.totalorder %s32, 0
      %p141 = por %p139, %p140
      %p142 = scmp.ne.s32.totalorder %s134, %s136
      %p143 = scmp.eq.s32.totalorder %s37, 1
      %p144 = por %p142, %p143
      %p145 = scmp.ne.s32.totalorder %s136, %s137
      %p146 = scmp.eq.s32.totalorder %s37, 0
      %p147 = por %p145, %p146
      %p148 = scmp.ne.s32.totalorder %s136, %s137
      %p149 = scmp.eq.s32.totalorder %s38, 1
      %p150 = por %p148, %p149
      %p152 = scmp.ne.s32.totalorder %s137, %s151
      %p153 = scmp.eq.s32.totalorder %s38, 0
      %p154 = por %p152, %p153
      %s156 = sadd.s32 %s155, 1
      %p159 = scmp.eq.s32.totalorder %s32, 1
      %p160 = scmp.ne.s32.totalorder %s155, %s157
      %p161 = scmp.eq.s32.totalorder %s32, 0
      %p162 = por %p160, %p161
      %p163 = scmp.ne.s32.totalorder %s155, %s157
      %p164 = scmp.eq.s32.totalorder %s37, 1
      %p165 = por %p163, %p164
      %p166 = scmp.ne.s32.totalorder %s157, %s158
      %p167 = scmp.eq.s32.totalorder %s37, 0
      %p168 = por %p166, %p167
      %p169 = scmp.ne.s32.totalorder %s157, %s158
      %p170 = scmp.eq.s32.totalorder %s38, 1
      %p171 = por %p169, %p170
      %p173 = scmp.ne.s32.totalorder %s158, %s172
      %p174 = scmp.eq.s32.totalorder %s38, 0
      %p175 = por %p173, %p174
      %s177 = sadd.s32 %s176, 1
      %p180 = scmp.eq.s32.totalorder %s32, 1
      %p181 = scmp.ne.s32.totalorder %s176, %s178
      %p182 = scmp.eq.s32.totalorder %s32, 0
      %p183 = por %p181, %p182
      %p184 = scmp.ne.s32.totalorder %s176, %s178
      %p185 = scmp.eq.s32.totalorder %s37, 1
      %p186 = por %p184, %p185
      %p187 = scmp.ne.s32.totalorder %s178, %s179
      %p188 = scmp.eq.s32.totalorder %s37, 0
      %p189 = por %p187, %p188
      %p190 = scmp.ne.s32.totalorder %s178, %s179
      %p191 = scmp.eq.s32.totalorder %s38, 1
      %p192 = por %p190, %p191
      %p194 = scmp.ne.s32.totalorder %s179, %s193
      %p195 = scmp.eq.s32.totalorder %s38, 0
      %p196 = por %p194, %p195
      %s198 = sadd.s32 %s197, 1
      %p201 = scmp.eq.s32.totalorder %s32, 1
      %p202 = scmp.ne.s32.totalorder %s197, %s199
      %p203 = scmp.eq.s32.totalorder %s32, 0
      %p204 = por %p202, %p203
      %p205 = scmp.ne.s32.totalorder %s197, %s199
      %p206 = scmp.eq.s32.totalorder %s37, 1
      %p207 = por %p205, %p206
      %p208 = scmp.ne.s32.totalorder %s199, %s200
      %p209 = scmp.eq.s32.totalorder %s37, 0
      %p210 = por %p208, %p209
      %p211 = scmp.ne.s32.totalorder %s199, %s200
      %p212 = scmp.eq.s32.totalorder %s38, 1
      %p213 = por %p211, %p212
      %p215 = scmp.ne.s32.totalorder %s200, %s214
      %p216 = scmp.eq.s32.totalorder %s38, 0
      %p217 = por %p215, %p216
      %s219 = sadd.s32 %s218, 1
      %p222 = scmp.eq.s32.totalorder %s32, 1
      %p223 = scmp.ne.s32.totalorder %s218, %s220
      %p224 = scmp.eq.s32.totalorder %s32, 0
      %p225 = por %p223, %p224
      %p226 = scmp.ne.s32.totalorder %s218, %s220
      %p227 = scmp.eq.s32.totalorder %s37, 1
      %p228 = por %p226, %p227
      %p229 = scmp.ne.s32.totalorder %s220, %s221
      %p230 = scmp.eq.s32.totalorder %s37, 0
      %p231 = por %p229, %p230
      %p232 = scmp.ne.s32.totalorder %s220, %s221
      %p233 = scmp.eq.s32.totalorder %s38, 1
      %p234 = por %p232, %p233
      %p236 = scmp.ne.s32.totalorder %s221, %s235
      %p237 = scmp.eq.s32.totalorder %s38, 0
      %p238 = por %p236, %p237
      %s240 = sadd.s32 %s239, 1
      %p243 = scmp.eq.s32.totalorder %s32, 1
      %p244 = scmp.ne.s32.totalorder %s239, %s241
      %p245 = scmp.eq.s32.totalorder %s32, 0
      %p246 = por %p244, %p245
      %p247 = scmp.ne.s32.totalorder %s239, %s241
      %p248 = scmp.eq.s32.totalorder %s37, 1
      %p249 = por %p247, %p248
      %p250 = scmp.ne.s32.totalorder %s241, %s242
      %p251 = scmp.eq.s32.totalorder %s37, 0
      %p252 = por %p250, %p251
      %p253 = scmp.ne.s32.totalorder %s241, %s242
      %p254 = scmp.eq.s32.totalorder %s38, 1
      %p255 = por %p253, %p254
      %p257 = scmp.ne.s32.totalorder %s242, %s256
      %p258 = scmp.eq.s32.totalorder %s38, 0
      %p259 = por %p257, %p258
      %s261 = sadd.s32 %s260, 1
      %p264 = scmp.eq.s32.totalorder %s32, 1
      %p265 = scmp.ne.s32.totalorder %s260, %s262
      %p266 = scmp.eq.s32.totalorder %s32, 0
      %p267 = por %p265, %p266
      %p268 = scmp.ne.s32.totalorder %s260, %s262
      %p269 = scmp.eq.s32.totalorder %s37, 1
      %p270 = por %p268, %p269
      %p271 = scmp.ne.s32.totalorder %s262, %s263
      %p272 = scmp.eq.s32.totalorder %s37, 0
      %p273 = por %p271, %p272
      %p274 = scmp.ne.s32.totalorder %s262, %s263
      %p275 = scmp.eq.s32.totalorder %s38, 1
      %p276 = por %p274, %p275
      %p278 = scmp.ne.s32.totalorder %s263, %s277
      %p279 = scmp.eq.s32.totalorder %s38, 0
      %p280 = por %p278, %p279
      %s282 = sadd.s32 %s281, 1
      %p285 = scmp.eq.s32.totalorder %s32, 1
      %p286 = scmp.ne.s32.totalorder %s281, %s283
      %p287 = scmp.eq.s32.totalorder %s32, 0
      %p288 = por %p286, %p287
      %p289 = scmp.ne.s32.totalorder %s281, %s283
      %p290 = scmp.eq.s32.totalorder %s37, 1
      %p291 = por %p289, %p290
      %p292 = scmp.ne.s32.totalorder %s283, %s284
      %p293 = scmp.eq.s32.totalorder %s37, 0
      %p294 = por %p292, %p293
      %p295 = scmp.ne.s32.totalorder %s283, %s284
      %p296 = scmp.eq.s32.totalorder %s38, 1
      %p297 = por %p295, %p296
      %p299 = scmp.ne.s32.totalorder %s284, %s298
      %p300 = scmp.eq.s32.totalorder %s38, 0
      %p301 = por %p299, %p300
      %s303 = sadd.s32 %s302, 1
      %p306 = scmp.eq.s32.totalorder %s32, 1
      %p307 = scmp.ne.s32.totalorder %s302, %s304
      %p308 = scmp.eq.s32.totalorder %s32, 0
      %p309 = por %p307, %p308
      %p310 = scmp.ne.s32.totalorder %s302, %s304
      %p311 = scmp.eq.s32.totalorder %s37, 1
      %p312 = por %p310, %p311
      %p313 = scmp.ne.s32.totalorder %s304, %s305
      %p314 = scmp.eq.s32.totalorder %s37, 0
      %p315 = por %p313, %p314
      %p316 = scmp.ne.s32.totalorder %s304, %s305
      %p317 = scmp.eq.s32.totalorder %s38, 1
      %p318 = por %p316, %p317
      %p320 = scmp.ne.s32.totalorder %s305, %s319
      %p321 = scmp.eq.s32.totalorder %s38, 0
      %p322 = por %p320, %p321
      %s324 = sadd.s32 %s323, 1
      %p327 = scmp.eq.s32.totalorder %s32, 1
      %p328 = scmp.ne.s32.totalorder %s323, %s325
      %p329 = scmp.eq.s32.totalorder %s32, 0
      %p330 = por %p328, %p329
      %p331 = scmp.ne.s32.totalorder %s323, %s325
      %p332 = scmp.eq.s32.totalorder %s37, 1
      %p333 = por %p331, %p332
      %p334 = scmp.ne.s32.totalorder %s325, %s326
      %p335 = scmp.eq.s32.totalorder %s37, 0
      %p336 = por %p334, %p335
      %p337 = scmp.ne.s32.totalorder %s325, %s326
      %p338 = scmp.eq.s32.totalorder %s38, 1
      %p339 = por %p337, %p338
      %p341 = scmp.ne.s32.totalorder %s326, %s340
      %p342 = scmp.eq.s32.totalorder %s38, 0
      %p343 = por %p341, %p342
      %s345 = sadd.s32 %s344, 1
      %p348 = scmp.eq.s32.totalorder %s32, 1
      %p349 = scmp.ne.s32.totalorder %s344, %s346
      %p350 = scmp.eq.s32.totalorder %s32, 0
      %p351 = por %p349, %p350
      %p352 = scmp.ne.s32.totalorder %s344, %s346
      %p353 = scmp.eq.s32.totalorder %s37, 1
      %p354 = por %p352, %p353
      %p355 = scmp.ne.s32.totalorder %s346, %s347
      %p356 = scmp.eq.s32.totalorder %s37, 0
      %p357 = por %p355, %p356
      %p358 = scmp.ne.s32.totalorder %s346, %s347
      %p359 = scmp.eq.s32.totalorder %s38, 1
      %p360 = por %p358, %p359
      %p362 = scmp.ne.s32.totalorder %s347, %s361
      %p363 = scmp.eq.s32.totalorder %s38, 0
      %p364 = por %p362, %p363
      %s366 = sadd.s32 %s365, 1
      %p369 = scmp.eq.s32.totalorder %s32, 1
      %p370 = scmp.ne.s32.totalorder %s365, %s367
      %p371 = scmp.eq.s32.totalorder %s32, 0
      %p372 = por %p370, %p371
      %p373 = scmp.ne.s32.totalorder %s365, %s367
      %p374 = scmp.eq.s32.totalorder %s37, 1
      %p375 = por %p373, %p374
      %p376 = scmp.ne.s32.totalorder %s367, %s368
      %p377 = scmp.eq.s32.totalorder %s37, 0
      %p378 = por %p376, %p377
      %p379 = scmp.ne.s32.totalorder %s367, %s368
      %p380 = scmp.eq.s32.totalorder %s38, 1
      %p381 = por %p379, %p380
      %p383 = scmp.ne.s32.totalorder %s368, %s382
      %p384 = scmp.eq.s32.totalorder %s38, 0
      %p385 = por %p383, %p384
      %s387 = sadd.s32 %s386, 1
      %p390 = scmp.eq.s32.totalorder %s32, 1
      %p391 = scmp.ne.s32.totalorder %s386, %s388
      %p392 = scmp.eq.s32.totalorder %s32, 0
      %p393 = por %p391, %p392
      %p394 = scmp.ne.s32.totalorder %s386, %s388
      %p395 = scmp.eq.s32.totalorder %s37, 1
      %p396 = por %p394, %p395
      %p397 = scmp.ne.s32.totalorder %s388, %s389
      %p398 = scmp.eq.s32.totalorder %s37, 0
      %p399 = por %p397, %p398
      %p400 = scmp.ne.s32.totalorder %s388, %s389
      %p401 = scmp.eq.s32.totalorder %s38, 1
      %p402 = por %p400, %p401
      %p404 = scmp.ne.s32.totalorder %s389, %s403
      %p405 = scmp.eq.s32.totalorder %s38, 0
      %p406 = por %p404, %p405
      %s408 = sadd.s32 %s407, 1
      %p411 = scmp.eq.s32.totalorder %s32, 1
      %p412 = scmp.ne.s32.totalorder %s407, %s409
      %p413 = scmp.eq.s32.totalorder %s32, 0
      %p414 = por %p412, %p413
      %p415 = scmp.ne.s32.totalorder %s407, %s409
      %p416 = scmp.eq.s32.totalorder %s37, 1
      %p417 = por %p415, %p416
      %p418 = scmp.ne.s32.totalorder %s409, %s410
      %p419 = scmp.eq.s32.totalorder %s37, 0
      %p420 = por %p418, %p419
      %p421 = scmp.ne.s32.totalorder %s409, %s410
      %p422 = scmp.eq.s32.totalorder %s38, 1
      %p423 = por %p421, %p422
      %p425 = scmp.ne.s32.totalorder %s410, %s424
      %p426 = scmp.eq.s32.totalorder %s38, 0
      %p427 = por %p425, %p426
      %s429 = sadd.s32 %s428, 1
      %p432 = scmp.eq.s32.totalorder %s32, 1
      %p433 = scmp.ne.s32.totalorder %s428, %s430
      %p434 = scmp.eq.s32.totalorder %s32, 0
      %p435 = por %p433, %p434
      %p436 = scmp.ne.s32.totalorder %s428, %s430
      %p437 = scmp.eq.s32.totalorder %s37, 1
      %p438 = por %p436, %p437
      %p439 = scmp.ne.s32.totalorder %s430, %s431
      %p440 = scmp.eq.s32.totalorder %s37, 0
      %p441 = por %p439, %p440
      %p442 = scmp.ne.s32.totalorder %s430, %s431
      %p443 = scmp.eq.s32.totalorder %s38, 1
      %p444 = por %p442, %p443
      %p446 = scmp.ne.s32.totalorder %s431, %s445
      %p447 = scmp.eq.s32.totalorder %s38, 0
      %p448 = por %p446, %p447
      %s450 = sadd.s32 %s449, 1
      %p453 = scmp.eq.s32.totalorder %s32, 1
      %p454 = scmp.ne.s32.totalorder %s449, %s451
      %p455 = scmp.eq.s32.totalorder %s32, 0
      %p456 = por %p454, %p455
      %p457 = scmp.ne.s32.totalorder %s449, %s451
      %p458 = scmp.eq.s32.totalorder %s37, 1
      %p459 = por %p457, %p458
      %p460 = scmp.ne.s32.totalorder %s451, %s452
      %p461 = scmp.eq.s32.totalorder %s37, 0
      %p462 = por %p460, %p461
      %p463 = scmp.ne.s32.totalorder %s451, %s452
      %p464 = scmp.eq.s32.totalorder %s38, 1
      %p465 = por %p463, %p464
      %p467 = scmp.ne.s32.totalorder %s452, %s466
      %p468 = scmp.eq.s32.totalorder %s38, 0
      %p469 = por %p467, %p468
      %s470 = ssub.s32 %s32, %s39
      %p471 = scmp.eq.s32.totalorder %s470, 0
      %s473 = sadd.s32 %s472, 1
      %s474 = scalar_select %p471, %s472, %s473
      %p477 = pneg %p471
      %p478 = scmp.eq.s32.totalorder %s32, 1
      %p479 = por %p477, %p478
      %p480 = scmp.ne.s32.totalorder %s472, %s475
      %p481 = scmp.eq.s32.totalorder %s32, 0
      %p482 = por %p480, %p481
      %p483 = scmp.ne.s32.totalorder %s472, %s475
      %p484 = scmp.eq.s32.totalorder %s37, 1
      %p485 = por %p483, %p484
      %p486 = scmp.ne.s32.totalorder %s475, %s476
      %p487 = scmp.eq.s32.totalorder %s37, 0
      %p488 = por %p486, %p487
      %p489 = scmp.ne.s32.totalorder %s475, %s476
      %p490 = scmp.eq.s32.totalorder %s38, 1
      %p491 = por %p489, %p490
      %p493 = scmp.ne.s32.totalorder %s476, %s492
      %p494 = scmp.eq.s32.totalorder %s38, 0
      %p495 = por %p493, %p494
      %s496 = ssub.s32 %s32, %s39
      %p497 = scmp.eq.s32.totalorder %s496, 0
      %s499 = sadd.s32 %s498, 1
      %s500 = scalar_select %p497, %s498, %s499
      %p503 = pneg %p497
      %p504 = scmp.eq.s32.totalorder %s32, 1
      %p505 = por %p503, %p504
      %p506 = scmp.ne.s32.totalorder %s498, %s501
      %p507 = scmp.eq.s32.totalorder %s32, 0
      %p508 = por %p506, %p507
      %p509 = scmp.ne.s32.totalorder %s498, %s501
      %p510 = scmp.eq.s32.totalorder %s37, 1
      %p511 = por %p509, %p510
      %p512 = scmp.ne.s32.totalorder %s501, %s502
      %p513 = scmp.eq.s32.totalorder %s37, 0
      %p514 = por %p512, %p513
      %p515 = scmp.ne.s32.totalorder %s501, %s502
      %p516 = scmp.eq.s32.totalorder %s38, 1
      %p517 = por %p515, %p516
      %p519 = scmp.ne.s32.totalorder %s502, %s518
      %p520 = scmp.eq.s32.totalorder %s38, 0
      %p521 = por %p519, %p520
      %s522 = ssub.s32 %s32, %s39
      %p523 = scmp.eq.s32.totalorder %s522, 0
      %s525 = sadd.s32 %s524, 1
      %s526 = scalar_select %p523, %s524, %s525
      %p529 = pneg %p523
      %p530 = scmp.eq.s32.totalorder %s32, 1
      %p531 = por %p529, %p530
      %p532 = scmp.ne.s32.totalorder %s524, %s527
      %p533 = scmp.eq.s32.totalorder %s32, 0
      %p534 = por %p532, %p533
      %p535 = scmp.ne.s32.totalorder %s524, %s527
      %p536 = scmp.eq.s32.totalorder %s37, 1
      %p537 = por %p535, %p536
      %p538 = scmp.ne.s32.totalorder %s527, %s528
      %p539 = scmp.eq.s32.totalorder %s37, 0
      %p540 = por %p538, %p539
      %p541 = scmp.ne.s32.totalorder %s527, %s528
      %p542 = scmp.eq.s32.totalorder %s38, 1
      %p543 = por %p541, %p542
      %p545 = scmp.ne.s32.totalorder %s528, %s544
      %p546 = scmp.eq.s32.totalorder %s38, 0
      %p547 = por %p545, %p546
      %p548 = scmp.le.s32.totalorder 1, %s32
      %p549 = scmp.lt.s32.totalorder %s32, 3
      %p550 = pnand %p548, %p549
      %p551 = pneg %p550
      // Predicated region
      $region9: #{forward.3} parent=5 // pred_check
        _
      $region10: #{forward.3} parent=5 // pred_check_branch
        %553 = sbr.rel (%p550) target = $region12
      $region11: #{forward.3} parent=5 // pred_region
        %s554 = ssub.s32 %s32, 1
        // Predicated region
        $region13: #{forward.3} parent=11 // pred_check
          %p555 = pneg %p105
        $region14: #{forward.3} parent=11 // pred_check_branch
          %557 = sbr.rel (%p555) target = $region16
        $region15: #{forward.3} parent=11 // pred_region
          _
        $region16: #{forward.3} parent=11 // pred_fallthru
          _
        // Predicated region
        $region17: #{forward.3} parent=11 // pred_check
          %p558 = pneg %p126
        $region18: #{forward.3} parent=11 // pred_check_branch
          %560 = sbr.rel (%p558) target = $region20
        $region19: #{forward.3} parent=11 // pred_region
          _
        $region20: #{forward.3} parent=11 // pred_fallthru
          _
        // Predicated region
        $region21: #{forward.3} parent=11 // pred_check
          %p561 = pneg %p147
        $region22: #{forward.3} parent=11 // pred_check_branch
          %563 = sbr.rel (%p561) target = $region24
        $region23: #{forward.3} parent=11 // pred_region
          _
        $region24: #{forward.3} parent=11 // pred_fallthru
          _
        // Predicated region
        $region25: #{forward.3} parent=11 // pred_check
          %p564 = pneg %p168
        $region26: #{forward.3} parent=11 // pred_check_branch
          %566 = sbr.rel (%p564) target = $region28
        $region27: #{forward.3} parent=11 // pred_region
          _
        $region28: #{forward.3} parent=11 // pred_fallthru
          _
        // Predicated region
        $region29: #{forward.3} parent=11 // pred_check
          %p567 = pneg %p189
        $region30: #{forward.3} parent=11 // pred_check_branch
          %569 = sbr.rel (%p567) target = $region32
        $region31: #{forward.3} parent=11 // pred_region
          _
        $region32: #{forward.3} parent=11 // pred_fallthru
          _
        // Predicated region
        $region33: #{forward.3} parent=11 // pred_check
          %p570 = pneg %p210
        $region34: #{forward.3} parent=11 // pred_check_branch
          %572 = sbr.rel (%p570) target = $region36
        $region35: #{forward.3} parent=11 // pred_region
          _
        $region36: #{forward.3} parent=11 // pred_fallthru
          _
        // Predicated region
        $region37: #{forward.3} parent=11 // pred_check
          %p573 = pneg %p231
        $region38: #{forward.3} parent=11 // pred_check_branch
          %575 = sbr.rel (%p573) target = $region40
        $region39: #{forward.3} parent=11 // pred_region
          _
        $region40: #{forward.3} parent=11 // pred_fallthru
          _
        // Predicated region
        $region41: #{forward.3} parent=11 // pred_check
          %p576 = pneg %p252
        $region42: #{forward.3} parent=11 // pred_check_branch
          %578 = sbr.rel (%p576) target = $region44
        $region43: #{forward.3} parent=11 // pred_region
          _
        $region44: #{forward.3} parent=11 // pred_fallthru
          _
        // Predicated region
        $region45: #{forward.3} parent=11 // pred_check
          %p579 = pneg %p273
        $region46: #{forward.3} parent=11 // pred_check_branch
          %581 = sbr.rel (%p579) target = $region48
        $region47: #{forward.3} parent=11 // pred_region
          _
        $region48: #{forward.3} parent=11 // pred_fallthru
          _
        // Predicated region
        $region49: #{forward.3} parent=11 // pred_check
          %p582 = pneg %p294
        $region50: #{forward.3} parent=11 // pred_check_branch
          %584 = sbr.rel (%p582) target = $region52
        $region51: #{forward.3} parent=11 // pred_region
          _
        $region52: #{forward.3} parent=11 // pred_fallthru
          _
        // Predicated region
        $region53: #{forward.3} parent=11 // pred_check
          %p585 = pneg %p315
        $region54: #{forward.3} parent=11 // pred_check_branch
          %587 = sbr.rel (%p585) target = $region56
        $region55: #{forward.3} parent=11 // pred_region
          _
        $region56: #{forward.3} parent=11 // pred_fallthru
          _
        // Predicated region
        $region57: #{forward.3} parent=11 // pred_check
          %p588 = pneg %p336
        $region58: #{forward.3} parent=11 // pred_check_branch
          %590 = sbr.rel (%p588) target = $region60
        $region59: #{forward.3} parent=11 // pred_region
          _
        $region60: #{forward.3} parent=11 // pred_fallthru
          _
        // Predicated region
        $region61: #{forward.3} parent=11 // pred_check
          %p591 = pneg %p357
        $region62: #{forward.3} parent=11 // pred_check_branch
          %593 = sbr.rel (%p591) target = $region64
        $region63: #{forward.3} parent=11 // pred_region
          _
        $region64: #{forward.3} parent=11 // pred_fallthru
          _
        // Predicated region
        $region65: #{forward.3} parent=11 // pred_check
          %p594 = pneg %p378
        $region66: #{forward.3} parent=11 // pred_check_branch
          %596 = sbr.rel (%p594) target = $region68
        $region67: #{forward.3} parent=11 // pred_region
          _
        $region68: #{forward.3} parent=11 // pred_fallthru
          _
        // Predicated region
        $region69: #{forward.3} parent=11 // pred_check
          %p597 = pneg %p399
        $region70: #{forward.3} parent=11 // pred_check_branch
          %599 = sbr.rel (%p597) target = $region72
        $region71: #{forward.3} parent=11 // pred_region
          _
        $region72: #{forward.3} parent=11 // pred_fallthru
          _
        // Predicated region
        $region73: #{forward.3} parent=11 // pred_check
          %p600 = pneg %p420
        $region74: #{forward.3} parent=11 // pred_check_branch
          %602 = sbr.rel (%p600) target = $region76
        $region75: #{forward.3} parent=11 // pred_region
          _
        $region76: #{forward.3} parent=11 // pred_fallthru
          _
        // Predicated region
        $region77: #{forward.3} parent=11 // pred_check
          %p603 = pneg %p441
        $region78: #{forward.3} parent=11 // pred_check_branch
          %605 = sbr.rel (%p603) target = $region80
        $region79: #{forward.3} parent=11 // pred_region
          _
        $region80: #{forward.3} parent=11 // pred_fallthru
          _
        // Predicated region
        $region81: #{forward.3} parent=11 // pred_check
          %p606 = pneg %p462
        $region82: #{forward.3} parent=11 // pred_check_branch
          %608 = sbr.rel (%p606) target = $region84
        $region83: #{forward.3} parent=11 // pred_region
          _
        $region84: #{forward.3} parent=11 // pred_fallthru
          _
      $region12: #{forward.3} parent=5 // pred_fallthru
        _
      %p609 = scmp.lt.s32.totalorder %s32, 2
      // Predicated region
      $region85: #{forward.3} parent=5 // pred_check
        %p610 = pneg %p609
      $region86: #{forward.3} parent=5 // pred_check_branch
        %612 = sbr.rel (%p610) target = $region88
      $region87: #{forward.3} parent=5 // pred_region
        // Predicated region
        $region89: #{forward.3} parent=87 // pred_check
          %p613 = pneg %p52
        $region90: #{forward.3} parent=87 // pred_check_branch
          %615 = sbr.rel (%p613) target = $region92
        $region91: #{forward.3} parent=87 // pred_region
          %p616 = scmp.lt.s32.totalorder %s32, 1
          %s617 = scalar_select %p616, %s32, 1
          %s618 = smul.addr %s617, 8
          %s619 = scalar_lea.vmem %s0, %s618
        $region92: #{forward.3} parent=87 // pred_fallthru
          _
        // Predicated region
        $region93: #{forward.3} parent=87 // pred_check
          %p620 = pneg %p78
        $region94: #{forward.3} parent=87 // pred_check_branch
          %622 = sbr.rel (%p620) target = $region96
        $region95: #{forward.3} parent=87 // pred_region
          %p623 = scmp.lt.s32.totalorder %s32, 1
          %s624 = scalar_select %p623, %s32, 1
          %s625 = smul.addr %s624, 2
          %s626 = smul.addr %s625, 8
          %s627 = scalar_lea.vmem %s1, %s626
        $region96: #{forward.3} parent=87 // pred_fallthru
          _
        // Predicated region
        $region97: #{forward.3} parent=87 // pred_check
          %p628 = pneg %p482
        $region98: #{forward.3} parent=87 // pred_check_branch
          %630 = sbr.rel (%p628) target = $region100
        $region99: #{forward.3} parent=87 // pred_region
          %p631 = scmp.lt.s32.totalorder %s32, 1
          %s632 = scalar_select %p631, %s32, 1
          %s633 = smul.addr %s632, 4
          %s634 = smul.addr %s633, 8
          %s635 = scalar_lea.vmem %s20, %s634
        $region100: #{forward.3} parent=87 // pred_fallthru
          _
      $region88: #{forward.3} parent=5 // pred_fallthru
        _
      %p636 = scmp.le.s32.totalorder 1, %s32
      %p637 = scmp.lt.s32.totalorder %s32, 3
      %p638 = pnand %p636, %p637
      %p639 = pneg %p638
      // Predicated region
      $region101: #{forward.3} parent=5 // pred_check
        _
      $region102: #{forward.3} parent=5 // pred_check_branch
        %641 = sbr.rel (%p638) target = $region104
      $region103: #{forward.3} parent=5 // pred_region
        %s642 = ssub.s32 %s32, 1
        %p643 = scmp.lt.s32.totalorder %s37, 1
        %s644 = scalar_select %p643, %s37, 1
        %s645 = smul.addr %s644, 8
        %s646 = scalar_lea.vmem %s0, %s645
        %p647 = pneg %p58
        %p648 = pneg %p55
        %p649 = scmp.lt.s32.totalorder %s37, 1
        %s650 = scalar_select %p649, %s37, 1
        %s651 = smul.addr %s650, 2
        %s652 = smul.addr %s651, 8
        %s653 = scalar_lea.vmem %s1, %s652
        %p654 = pneg %p84
        %p655 = pneg %p81
        %p656 = pneg %p105
        %p657 = pneg %p102
        %p658 = pneg %p126
        %p659 = pneg %p123
        %p660 = pneg %p147
        %p661 = pneg %p144
        %p662 = pneg %p168
        %p663 = pneg %p165
        %p664 = pneg %p189
        %p665 = pneg %p186
        %p666 = pneg %p210
        %p667 = pneg %p207
        %p668 = pneg %p231
        %p669 = pneg %p228
        %p670 = pneg %p252
        %p671 = pneg %p249
        %p672 = pneg %p273
        %p673 = pneg %p270
        %p674 = pneg %p294
        %p675 = pneg %p291
        %p676 = pneg %p315
        %p677 = pneg %p312
        %p678 = pneg %p336
        %p679 = pneg %p333
        %p680 = pneg %p357
        %p681 = pneg %p354
        %p682 = pneg %p378
        %p683 = pneg %p375
        %p684 = pneg %p399
        %p685 = pneg %p396
        %p686 = pneg %p420
        %p687 = pneg %p417
        %p688 = pneg %p441
        %p689 = pneg %p438
        %p690 = pneg %p462
        %p691 = pneg %p459
        %p692 = scmp.lt.s32.totalorder %s37, 1
        %s693 = scalar_select %p692, %s37, 1
        %s694 = smul.addr %s693, 4
        %s695 = smul.addr %s694, 8
        %s696 = scalar_lea.vmem %s20, %s695
        %p697 = pneg %p488
        %p698 = pneg %p485
        %p699 = pneg %p514
        %p700 = pneg %p511
        %s701 = sand.u32 %s501, 1
        %s702 = scalar_lea.sflag [#allocation3], %s701
        %s703 = sand.u32 %s501, 1
        %s704 = smul.addr %s703, 32
        %s705 = scalar_lea.vmem [#allocation2], %s704
        %p706 = pneg %p540
        %p707 = pneg %p537
        %p708 = scmp.lt.s32.totalorder %s37, 1
        %s709 = scalar_select %p708, %s37, 1
        %s710 = scalar_lea.vmem %s22, %s709
        %p711 = scmp.lt.s32.totalorder %s37, 1
        %s712 = scalar_select %p711, %s37, 1
        %s713 = smul.addr %s712, 8
        %s714 = scalar_lea.vmem %s0, %s713
        %p715 = scmp.lt.s32.totalorder %s37, 1
        %s716 = scalar_select %p715, %s37, 1
        %s717 = smul.addr %s716, 2
        %s718 = smul.addr %s717, 8
        %s719 = scalar_lea.vmem %s1, %s718
        %p720 = scmp.lt.s32.totalorder %s37, 1
        %s721 = scalar_select %p720, %s37, 1
        %s722 = smul.addr %s721, 4
        %s723 = smul.addr %s722, 8
        %s724 = scalar_lea.vmem %s20, %s723
        %p725 = scmp.lt.s32.totalorder %s37, 1
        %s726 = scalar_select %p725, %s37, 1
        %s727 = scalar_lea.vmem %s22, %s726
        %v729 = vld [vmem:[%s714] sm:$0x1f]
        %v730 = vld [vmem:[%s719] sm:$0xff]
        %v731 = vld [vmem:[%s719 + $0x8] sm:$0xff]
        %v732 = vld [vmem:[%s3] sm:$0xff]
        %v733 = vld [vmem:[%s3 + $0x8] sm:$0xff]
        %v734 = vld [vmem:[%s3 + $0x10] sm:$0x1]
        %v735 = vlaneseq
        %v736 = vand.u32 %v735, 127
        %737 = vset.pattern.permute.xlu0 0
        %738 = vperm.xlu0 %737, %v730
        %v739 = vpop.permute.xlu0 %738
        %740 = vset.pattern.permute.xlu0 0
        %741 = vperm.xlu0 %740, %v731
        %v742 = vpop.permute.xlu0 %741
        %vm743 = vcmp.eq.s32.totalorder %v739, %v736
        %vm744 = vcmp.eq.s32.totalorder %v742, %v736
        %v745 = vsel %vm743, 1.0, 0.0
        %v746 = vsel %vm744, 1.0, 0.0
        %vm747 = vcmp.ge.s32.totalorder %v730, 4
        %vm748 = vcmp.ge.s32.totalorder %v731, 4
        %v749 = vsel %vm747, 1.0, 0.0
        %v750 = vsel %vm748, 1.0, 0.0
        %v751 = vld [vmem:[%s2] sm:$0x1]
        %753 = vset.pattern.permute.xlu0 0
        %754 = vperm.xlu0 %753, %v749
        %v755 = vpop.permute.xlu0 %754
        %758 = vset.pattern.permute.xlu0 0
        %759 = vperm.xlu0 %758, %v750
        %v760 = vpop.permute.xlu0 %759
        %v763 = vperm.slane %v751, 0
        %v765 = vmul.f32 %v755, %v763
        %v766 = vmul.f32 %v760, %v763
        %v768 = vrot.slane %v729, 1
        %vm769 = vcmask 31744
        %v771 = vsel %vm769, %v745, 0
        %v774 = vsel %vm769, %v746, 0
        %vm776 = vcmask 1043456
        %v777 = vsel %vm776, %v768, 0
        %779 = vmatpush.msra.mxu0 0.0
        %780 = vmatpush.msra.mxu0 0.0
        %781 = vmatpush.msra.mxu0 0.0
        %782 = vmatpush.msra.mxu0 0.0
        %783 = vmatpush.msra.mxu0 0.0
        %784 = vmatpush.msra.mxu0 0.0
        %785 = vmatpush.msra.mxu0 0.0
        %786 = vmatpush.msra.mxu0 0.0
        %787 = vmatpush.msra.mxu0 0.0
        %788 = vmatpush.msra.mxu0 0.0
        %789 = vmatpush.msra.mxu0 0.0
        %790 = vmatpush.msra.mxu0 0.0
        %791 = vmatpush.msra.mxu0 0.0
        %792 = vmatpush.msra.mxu0 0.0
        %793 = vmatpush.msra.mxu0 0.0
        %794 = vmatpush.msra.mxu0 %v777
        %795 = vmatmul.f32.gmra.mxu0 %v771
        %v796 = vpop.f32.mrf.mxu0
        %v797 = vadd.f32 %v765, %v796
        %798 = vmatmul.f32.gmra.mxu0 %v774
        %v799 = vpop.f32.mrf.mxu0
        %v800 = vadd.f32 %v766, %v799
        %801 = vdwg.mxu0
        %vm804 = vcmask 1040384
        %v805 = vrot.slane %v797, 7
        %v806 = vrot.slane %v800, 7
        %v807 = vsel %vm804, %v805, %v806
        %v811 = vsel %vm804, %v729, %v805
        %v812 = vadd.f32 %v811, %v732
        %v813 = vadd.f32 %v807, %v733
        %v814 = vadd.f32 %v806, %v734
        %v815 = vld [vmem:[%s4] sm:$0x1]
        %v816 = vld [vmem:[%s5] sm:$0x1]
        %v817 = vld [vmem:[%s6] sm:$0xf]
        %v818 = vld [vmem:[%s6 + $0x4] sm:$0xf]
        %v819 = vld [vmem:[%s6 + $0x8] sm:$0xf]
        %v820 = vld [vmem:[%s6 + $0xc] sm:$0xf]
        %v821 = vld [vmem:[%s7] sm:$0x1]
        %v822 = vld [vmem:[%s8] sm:$0xf]
        %v823 = vld [vmem:[%s8 + $0x4] sm:$0xf]
        %v824 = vld [vmem:[%s8 + $0x8] sm:$0xf]
        %v825 = vld [vmem:[%s8 + $0xc] sm:$0xf]
        %v826 = vld [vmem:[%s9] sm:$0x1]
        %v827 = vld [vmem:[%s10] sm:$0x1]
        %v828 = vld [vmem:[%s11] sm:$0x1]
        %v829 = vld [vmem:[%s12] sm:$0xf]
        %v830 = vld [vmem:[%s12 + $0x4] sm:$0xf]
        %v831 = vld [vmem:[%s12 + $0x8] sm:$0xf]
        %v832 = vld [vmem:[%s12 + $0xc] sm:$0xf]
        %v833 = vld [vmem:[%s13] sm:$0x1]
        %v834 = vld [vmem:[%s14] sm:$0xf]
        %v835 = vld [vmem:[%s14 + $0x4] sm:$0xf]
        %v836 = vld [vmem:[%s14 + $0x8] sm:$0xf]
        %v837 = vld [vmem:[%s14 + $0xc] sm:$0xf]
        %v838 = vld [vmem:[%s14 + $0x10] sm:$0xf]
        %v839 = vld [vmem:[%s14 + $0x14] sm:$0xf]
        %v840 = vld [vmem:[%s14 + $0x18] sm:$0xf]
        %v841 = vld [vmem:[%s14 + $0x1c] sm:$0xf]
        %v842 = vld [vmem:[%s14 + $0x20] sm:$0xf]
        %v843 = vld [vmem:[%s14 + $0x24] sm:$0xf]
        %v844 = vld [vmem:[%s14 + $0x28] sm:$0xf]
        %v845 = vld [vmem:[%s14 + $0x2c] sm:$0xf]
        %v846 = vld [vmem:[%s14 + $0x30] sm:$0xf]
        %v847 = vld [vmem:[%s14 + $0x34] sm:$0xf]
        %v848 = vld [vmem:[%s14 + $0x38] sm:$0xf]
        %v849 = vld [vmem:[%s14 + $0x3c] sm:$0xf]
        %v850 = vld [vmem:[%s15] sm:$0x1]
        %vm851 = vcmask 261120
        %v852 = vsel %vm851, %v812, 0.0
        %853 = vadd.xlane.f32.xlu0 %v852
        %v854 = vpop.xlane.xlu0 %853
        %v855 = vsel %vm851, %v813, 0.0
        %856 = vadd.xlane.f32.xlu0 %v855
        %v857 = vpop.xlane.xlu0 %856
        %vm858 = vcmask 253952
        %v859 = vsel %vm858, %v814, 0.0
        %860 = vadd.xlane.f32.xlu0 %v859
        %v861 = vpop.xlane.xlu0 %860
        %v862 = vrcp.pop 32.0
        %v863 = vmul.f32 32.0, %v862
        %v864 = vsub.f32 1.0, %v863
        %v865 = vmul.f32 %v862, %v864
        %v866 = vadd.f32 %v862, %v865
        %vm867 = vweird.f32 %v862
        %v868 = vsel %vm867, %v862, %v866
        %v869 = vmul.f32 %v854, %v868
        %v870 = vmul.f32 %v857, %v868
        %v871 = vmul.f32 %v861, %v868
        %v872 = vsub.f32 %v812, %v869
        %v873 = vsub.f32 %v813, %v870
        %v874 = vsub.f32 %v814, %v871
        %v875 = vmul.f32 %v872, %v872
        %v876 = vmul.f32 %v873, %v873
        %v877 = vmul.f32 %v874, %v874
        %v878 = vsel %vm851, %v875, 0.0
        %879 = vadd.xlane.f32.xlu0 %v878
        %v880 = vpop.xlane.xlu0 %879
        %v881 = vsel %vm851, %v876, 0.0
        %882 = vadd.xlane.f32.xlu0 %v881
        %v883 = vpop.xlane.xlu0 %882
        %v884 = vsel %vm858, %v877, 0.0
        %885 = vadd.xlane.f32.xlu0 %v884
        %v886 = vpop.xlane.xlu0 %885
        %v887 = vmul.f32 %v880, %v868
        %v888 = vmul.f32 %v883, %v868
        %v889 = vmul.f32 %v886, %v868
        %v890 = vadd.f32 %v887, 1e-05
        %v891 = vadd.f32 %v888, 1e-05
        %v892 = vadd.f32 %v889, 1e-05
        %v893 = vrsqrt.pop %v890
        %v894 = vmul.f32 %v893, %v890
        %v895 = vmul.f32 %v894, %v893
        %v896 = vmul.f32 0.5, %v895
        %v897 = vsub.f32 1.5, %v896
        %v898 = vmul.f32 %v893, %v897
        %vm899 = vweird.f32 %v890
        %vm900 = vweird.f32 %v893
        %vm901 = vmor %vm899, %vm900
        %v902 = vsel %vm901, %v893, %v898
        %v903 = vrsqrt.pop %v891
        %v904 = vmul.f32 %v903, %v891
        %v905 = vmul.f32 %v904, %v903
        %v906 = vmul.f32 0.5, %v905
        %v907 = vsub.f32 1.5, %v906
        %v908 = vmul.f32 %v903, %v907
        %vm909 = vweird.f32 %v891
        %vm910 = vweird.f32 %v903
        %vm911 = vmor %vm909, %vm910
        %v912 = vsel %vm911, %v903, %v908
        %v913 = vrsqrt.pop %v892
        %v914 = vmul.f32 %v913, %v892
        %v915 = vmul.f32 %v914, %v913
        %v916 = vmul.f32 0.5, %v915
        %v917 = vsub.f32 1.5, %v916
        %v918 = vmul.f32 %v913, %v917
        %vm919 = vweird.f32 %v892
        %vm920 = vweird.f32 %v913
        %vm921 = vmor %vm919, %vm920
        %v922 = vsel %vm921, %v913, %v918
        %v923 = vmul.f32 %v872, %v902
        %v924 = vmul.f32 %v873, %v912
        %v925 = vmul.f32 %v874, %v922
        %v927 = vperm.slane %v815, 0
        %v929 = vmul.f32 %v923, %v927
        %v930 = vmul.f32 %v924, %v927
        %v931 = vmul.f32 %v925, %v927
        %v933 = vperm.slane %v816, 0
        %v935 = vadd.f32 %v929, %v933
        %v936 = vadd.f32 %v930, %v933
        %v937 = vadd.f32 %v931, %v933
        %v938 = vpack.c.bf16 %v936, %v935
        %v939 = vpack.c.bf16 %v937, %v937
        %v941 = vperm.slane %v821, 0
        %v947 = vunpack.c.l.b16 %v817
        %v948 = vunpack.c.l.b16 %v818
        %v949 = vunpack.c.l.b16 %v819
        %v950 = vunpack.c.l.b16 %v820
        %v951 = vpack.c.b16 %v948, %v947
        %v952 = vpack.c.b16 %v950, %v949
        %v956 = vsel %vm851, %v938, 0
        %v959 = vsel %vm851, %v939, 0
        %961 = vmatpush.bf16.msra.mxu0 0
        %962 = vmatpush.bf16.msra.mxu0 0
        %963 = vmatpush.bf16.msra.mxu0 0
        %964 = vmatpush.bf16.msra.mxu0 0
        %965 = vmatpush.bf16.msra.mxu0 0
        %966 = vmatpush.bf16.msra.mxu0 0
        %967 = vmatpush.bf16.msra.mxu0 %v952
        %968 = vmatpush.bf16.msra.mxu0 %v951
        %969 = vmatmul.bf16.gmra.mxu0 %v956
        %v970 = vpop.f32.mrf.mxu0
        %v971 = vadd.f32 %v941, %v970
        %v972 = vpop.f32.mrf.mxu0
        %v973 = vadd.f32 %v941, %v972
        %974 = vmatmul.bf16.gmra.mxu0 %v959
        %v975 = vpop.f32.mrf.mxu0
        %v976 = vadd.f32 %v941, %v975
        %v977 = vpop.f32.mrf.mxu0
        %978 = vdwg.mxu0
        %v979 = vpack.c.bf16 %v971, %v971
        %v980 = vpack.c.bf16 %v973, %v973
        %v981 = vpack.c.bf16 %v976, %v976
        %v985 = vunpack.c.l.b16 %v979
        %v986 = vunpack.c.l.b16 %v980
        %v987 = vunpack.c.l.b16 %v981
        %v988 = vpack.c.b16 %v986, %v985
        %v989 = vpack.c.b16 %v987, %v987
        %990 = vrot.lane.b32.xlu0 %v988, 96
        %v991 = vpop.permute.xlu0 %990
        %992 = vrot.lane.b32.xlu0 %v989, 96
        %v993 = vpop.permute.xlu0 %992
        %vm994 = vcmask 130048
        %v996 = vsel %vm994, %v988, 0
        %v999 = vsel %vm994, %v989, 0
        %v1002 = vsel %vm994, %v991, 0
        %v1005 = vsel %vm994, %v993, 0
        %1007 = vmatpush.bf16.xpose.msra.mxu0 0
        %1008 = vmatpush.bf16.xpose.msra.mxu0 0
        %1009 = vmatpush.bf16.xpose.msra.mxu0 0
        %1010 = vmatpush.bf16.xpose.msra.mxu0 0
        %1011 = vmatpush.bf16.xpose.msra.mxu0 0
        %1012 = vmatpush.bf16.xpose.msra.mxu0 0
        %1013 = vmatpush.bf16.xpose.msra.mxu0 %v1005
        %1014 = vmatpush.bf16.xpose.msra.mxu0 %v1002
        %1015 = vmatmul.bf16.gmra.mxu0 %v996
        %v1016 = vpop.f32.mrf.mxu0
        %v1017 = vadd.f32 0.0, %v1016
        %v1018 = vpop.f32.mrf.mxu0
        %v1019 = vadd.f32 0.0, %v1018
        %1020 = vmatmul.bf16.gmra.mxu0 %v999
        %v1021 = vpop.f32.mrf.mxu0
        %v1022 = vadd.f32 0.0, %v1021
        %v1023 = vpop.f32.mrf.mxu0
        %1024 = vdwg.mxu0
        %vm1025 = vcmask 138240
        %v1026 = vsel %vm1025, %v1017, -inf
        %1027 = vmax.xlane.f32.xlu0 %v1026
        %v1028 = vpop.xlane.xlu0 %1027
        %v1029 = vsel %vm1025, %v1019, -inf
        %1030 = vmax.xlane.f32.xlu0 %v1029
        %v1031 = vpop.xlane.xlu0 %1030
        %vm1032 = vcmask 131072
        %v1033 = vsel %vm1032, %v1022, -inf
        %1034 = vmax.xlane.f32.xlu0 %v1033
        %v1035 = vpop.xlane.xlu0 %1034
        %v1036 = vsub.f32 %v1017, %v1028
        %v1037 = vsub.f32 %v1019, %v1031
        %v1038 = vsub.f32 %v1022, %v1035
        %v1039 = vmul.f32 %v1036, 1.442695
        %v1040 = vpow.pop %v1039
        %v1041 = vmul.f32 %v1037, 1.442695
        %v1042 = vpow.pop %v1041
        %v1043 = vmul.f32 %v1038, 1.442695
        %v1044 = vpow.pop %v1043
        %v1045 = vsel %vm1025, %v1040, 0.0
        %1046 = vadd.xlane.f32.xlu0 %v1045
        %v1047 = vpop.xlane.xlu0 %1046
        %v1048 = vsel %vm1025, %v1042, 0.0
        %1049 = vadd.xlane.f32.xlu0 %v1048
        %v1050 = vpop.xlane.xlu0 %1049
        %v1051 = vsel %vm1032, %v1044, 0.0
        %1052 = vadd.xlane.f32.xlu0 %v1051
        %v1053 = vpop.xlane.xlu0 %1052
        %v1054 = vrcp.pop %v1047
        %v1055 = vrcp.pop %v1050
        %v1056 = vrcp.pop %v1053
        %v1057 = vmul.f32 %v1040, %v1054
        %v1058 = vmul.f32 %v1042, %v1055
        %v1059 = vmul.f32 %v1044, %v1056
        %v1060 = vpack.c.bf16 %v1058, %v1057
        %v1061 = vpack.c.bf16 %v1059, %v1059
        %1062 = vrot.lane.b32.xlu0 %v988, 64
        %v1063 = vpop.permute.xlu0 %1062
        %1064 = vrot.lane.b32.xlu0 %v989, 64
        %v1065 = vpop.permute.xlu0 %1064
        %v1068 = vsel %vm1025, %v1060, 0
        %v1071 = vsel %vm1025, %v1061, 0
        %v1073 = vsel 0, 4294967295, 65535
        %v1074 = vsel %vm804, %v1073, 0
        %v1076 = vand.u32 %v1065, %v1074
        %1078 = vmatpush.bf16.msra.mxu0 0
        %1079 = vmatpush.bf16.msra.mxu0 0
        %1080 = vmatpush.bf16.msra.mxu0 0
        %1081 = vmatpush.bf16.msra.mxu0 0
        %1082 = vmatpush.bf16.msra.mxu0 0
        %1083 = vmatpush.bf16.msra.mxu0 0
        %1084 = vmatpush.bf16.msra.mxu0 %v1076
        %1085 = vmatpush.bf16.msra.mxu0 %v1063
        %1086 = vmatmul.bf16.gmra.mxu0 %v1068
        %v1087 = vpop.f32.mrf.mxu0
        %v1088 = vadd.f32 0.0, %v1087
        %v1089 = vpop.f32.mrf.mxu0
        %v1090 = vadd.f32 0.0, %v1089
        %1091 = vmatmul.bf16.gmra.mxu0 %v1071
        %v1092 = vpop.f32.mrf.mxu0
        %v1093 = vadd.f32 0.0, %v1092
        %v1094 = vpop.f32.mrf.mxu0
        %1095 = vdwg.mxu0
        %1096 = vrot.lane.b32.xlu0 %v988, 112
        %v1097 = vpop.permute.xlu0 %1096
        %1098 = vrot.lane.b32.xlu0 %v989, 112
        %v1099 = vpop.permute.xlu0 %1098
        %1100 = vrot.lane.b32.xlu0 %v988, 80
        %v1101 = vpop.permute.xlu0 %1100
        %1102 = vrot.lane.b32.xlu0 %v989, 80
        %v1103 = vpop.permute.xlu0 %1102
        %v1105 = vsel %vm994, %v1097, 0
        %v1108 = vsel %vm994, %v1099, 0
        %v1111 = vsel %vm994, %v1101, 0
        %v1114 = vsel %vm994, %v1103, 0
        %1116 = vmatpush.bf16.xpose.msra.mxu0 0
        %1117 = vmatpush.bf16.xpose.msra.mxu0 0
        %1118 = vmatpush.bf16.xpose.msra.mxu0 0
        %1119 = vmatpush.bf16.xpose.msra.mxu0 0
        %1120 = vmatpush.bf16.xpose.msra.mxu0 0
        %1121 = vmatpush.bf16.xpose.msra.mxu0 0
        %1122 = vmatpush.bf16.xpose.msra.mxu0 %v1114
        %1123 = vmatpush.bf16.xpose.msra.mxu0 %v1111
        %1124 = vmatmul.bf16.gmra.mxu0 %v1105
        %v1125 = vpop.f32.mrf.mxu0
        %v1126 = vadd.f32 0.0, %v1125
        %v1127 = vpop.f32.mrf.mxu0
        %v1128 = vadd.f32 0.0, %v1127
        %1129 = vmatmul.bf16.gmra.mxu0 %v1108
        %v1130 = vpop.f32.mrf.mxu0
        %v1131 = vadd.f32 0.0, %v1130
        %v1132 = vpop.f32.mrf.mxu0
        %1133 = vdwg.mxu0
        %v1134 = vsel %vm1025, %v1126, -inf
        %1135 = vmax.xlane.f32.xlu0 %v1134
        %v1136 = vpop.xlane.xlu0 %1135
        %v1137 = vsel %vm1025, %v1128, -inf
        %1138 = vmax.xlane.f32.xlu0 %v1137
        %v1139 = vpop.xlane.xlu0 %1138
        %v1140 = vsel %vm1032, %v1131, -inf
        %1141 = vmax.xlane.f32.xlu0 %v1140
        %v1142 = vpop.xlane.xlu0 %1141
        %v1143 = vsub.f32 %v1126, %v1136
        %v1144 = vsub.f32 %v1128, %v1139
        %v1145 = vsub.f32 %v1131, %v1142
        %v1146 = vmul.f32 %v1143, 1.442695
        %v1147 = vpow.pop %v1146
        %v1148 = vmul.f32 %v1144, 1.442695
        %v1149 = vpow.pop %v1148
        %v1150 = vmul.f32 %v1145, 1.442695
        %v1151 = vpow.pop %v1150
        %v1152 = vsel %vm1025, %v1147, 0.0
        %1153 = vadd.xlane.f32.xlu0 %v1152
        %v1154 = vpop.xlane.xlu0 %1153
        %v1155 = vsel %vm1025, %v1149, 0.0
        %1156 = vadd.xlane.f32.xlu0 %v1155
        %v1157 = vpop.xlane.xlu0 %1156
        %v1158 = vsel %vm1032, %v1151, 0.0
        %1159 = vadd.xlane.f32.xlu0 %v1158
        %v1160 = vpop.xlane.xlu0 %1159
        %v1161 = vrcp.pop %v1154
        %v1162 = vrcp.pop %v1157
        %v1163 = vrcp.pop %v1160
        %v1164 = vmul.f32 %v1147, %v1161
        %v1165 = vmul.f32 %v1149, %v1162
        %v1166 = vmul.f32 %v1151, %v1163
        %v1167 = vpack.c.bf16 %v1165, %v1164
        %v1168 = vpack.c.bf16 %v1166, %v1166
        %1169 = vrot.lane.b32.xlu0 %v988, 48
        %v1170 = vpop.permute.xlu0 %1169
        %1171 = vrot.lane.b32.xlu0 %v989, 48
        %v1172 = vpop.permute.xlu0 %1171
        %v1175 = vsel %vm1025, %v1167, 0
        %v1178 = vsel %vm1025, %v1168, 0
        %v1181 = vand.u32 %v1172, %v1074
        %1183 = vmatpush.bf16.msra.mxu0 0
        %1184 = vmatpush.bf16.msra.mxu0 0
        %1185 = vmatpush.bf16.msra.mxu0 0
        %1186 = vmatpush.bf16.msra.mxu0 0
        %1187 = vmatpush.bf16.msra.mxu0 0
        %1188 = vmatpush.bf16.msra.mxu0 0
        %1189 = vmatpush.bf16.msra.mxu0 %v1181
        %1190 = vmatpush.bf16.msra.mxu0 %v1170
        %1191 = vmatmul.bf16.gmra.mxu0 %v1175
        %v1192 = vpop.f32.mrf.mxu0
        %v1193 = vadd.f32 0.0, %v1192
        %v1194 = vpop.f32.mrf.mxu0
        %v1195 = vadd.f32 0.0, %v1194
        %1196 = vmatmul.bf16.gmra.mxu0 %v1178
        %v1197 = vpop.f32.mrf.mxu0
        %v1198 = vadd.f32 0.0, %v1197
        %v1199 = vpop.f32.mrf.mxu0
        %1200 = vdwg.mxu0
        %1204 = vrot.lane.b32.xlu0 %v1193, 16
        %v1205 = vpop.permute.xlu0 %1204
        %1206 = vrot.lane.b32.xlu0 %v1195, 16
        %v1207 = vpop.permute.xlu0 %1206
        %1208 = vrot.lane.b32.xlu0 %v1198, 16
        %v1209 = vpop.permute.xlu0 %1208
        %v1213 = vsel %vm994, %v1088, %v1205
        %v1214 = vsel %vm994, %v1090, %v1207
        %v1215 = vsel %vm994, %v1093, %v1209
        %v1216 = vpack.c.bf16 %v1214, %v1213
        %v1217 = vpack.c.bf16 %v1215, %v1215
        %v1222 = vunpack.c.l.b16 %v822
        %v1223 = vunpack.c.l.b16 %v823
        %v1224 = vunpack.c.l.b16 %v824
        %v1225 = vunpack.c.l.b16 %v825
        %v1226 = vpack.c.b16 %v1223, %v1222
        %v1227 = vpack.c.b16 %v1225, %v1224
        %v1231 = vsel %vm851, %v1216, 0
        %v1234 = vsel %vm851, %v1217, 0
        %1236 = vmatpush.bf16.msra.mxu0 0
        %1237 = vmatpush.bf16.msra.mxu0 0
        %1238 = vmatpush.bf16.msra.mxu0 0
        %1239 = vmatpush.bf16.msra.mxu0 0
        %1240 = vmatpush.bf16.msra.mxu0 0
        %1241 = vmatpush.bf16.msra.mxu0 0
        %1242 = vmatpush.bf16.msra.mxu0 %v1227
        %1243 = vmatpush.bf16.msra.mxu0 %v1226
        %1244 = vmatmul.bf16.gmra.mxu0 %v1231
        %v1245 = vpop.f32.mrf.mxu0
        %v1246 = vadd.f32 0.0, %v1245
        %v1247 = vpop.f32.mrf.mxu0
        %v1248 = vadd.f32 0.0, %v1247
        %1249 = vmatmul.bf16.gmra.mxu0 %v1234
        %v1250 = vpop.f32.mrf.mxu0
        %v1251 = vadd.f32 0.0, %v1250
        %v1252 = vpop.f32.mrf.mxu0
        %1253 = vdwg.mxu0
        %v1254 = vadd.f32 %v812, %v1246
        %v1255 = vadd.f32 %v813, %v1248
        %v1256 = vadd.f32 %v814, %v1251
        %v1258 = vperm.slane %v826, 0
        %v1260 = vadd.f32 %v1254, %v1258
        %v1261 = vadd.f32 %v1255, %v1258
        %v1262 = vadd.f32 %v1256, %v1258
        %v1263 = vsel %vm851, %v1260, 0.0
        %1264 = vadd.xlane.f32.xlu0 %v1263
        %v1265 = vpop.xlane.xlu0 %1264
        %v1266 = vsel %vm851, %v1261, 0.0
        %1267 = vadd.xlane.f32.xlu0 %v1266
        %v1268 = vpop.xlane.xlu0 %1267
        %v1269 = vsel %vm858, %v1262, 0.0
        %1270 = vadd.xlane.f32.xlu0 %v1269
        %v1271 = vpop.xlane.xlu0 %1270
        %v1272 = vmul.f32 %v1265, %v868
        %v1273 = vmul.f32 %v1268, %v868
        %v1274 = vmul.f32 %v1271, %v868
        %v1275 = vsub.f32 %v1260, %v1272
        %v1276 = vsub.f32 %v1261, %v1273
        %v1277 = vsub.f32 %v1262, %v1274
        %v1278 = vmul.f32 %v1275, %v1275
        %v1279 = vmul.f32 %v1276, %v1276
        %v1280 = vmul.f32 %v1277, %v1277
        %v1281 = vsel %vm851, %v1278, 0.0
        %1282 = vadd.xlane.f32.xlu0 %v1281
        %v1283 = vpop.xlane.xlu0 %1282
        %v1284 = vsel %vm851, %v1279, 0.0
        %1285 = vadd.xlane.f32.xlu0 %v1284
        %v1286 = vpop.xlane.xlu0 %1285
        %v1287 = vsel %vm858, %v1280, 0.0
        %1288 = vadd.xlane.f32.xlu0 %v1287
        %v1289 = vpop.xlane.xlu0 %1288
        %v1290 = vmul.f32 %v1283, %v868
        %v1291 = vmul.f32 %v1286, %v868
        %v1292 = vmul.f32 %v1289, %v868
        %v1293 = vadd.f32 %v1290, 1e-05
        %v1294 = vadd.f32 %v1291, 1e-05
        %v1295 = vadd.f32 %v1292, 1e-05
        %v1296 = vrsqrt.pop %v1293
        %v1297 = vmul.f32 %v1296, %v1293
        %v1298 = vmul.f32 %v1297, %v1296
        %v1299 = vmul.f32 0.5, %v1298
        %v1300 = vsub.f32 1.5, %v1299
        %v1301 = vmul.f32 %v1296, %v1300
        %vm1302 = vweird.f32 %v1293
        %vm1303 = vweird.f32 %v1296
        %vm1304 = vmor %vm1302, %vm1303
        %v1305 = vsel %vm1304, %v1296, %v1301
        %v1306 = vrsqrt.pop %v1294
        %v1307 = vmul.f32 %v1306, %v1294
        %v1308 = vmul.f32 %v1307, %v1306
        %v1309 = vmul.f32 0.5, %v1308
        %v1310 = vsub.f32 1.5, %v1309
        %v1311 = vmul.f32 %v1306, %v1310
        %vm1312 = vweird.f32 %v1294
        %vm1313 = vweird.f32 %v1306
        %vm1314 = vmor %vm1312, %vm1313
        %v1315 = vsel %vm1314, %v1306, %v1311
        %v1316 = vrsqrt.pop %v1295
        %v1317 = vmul.f32 %v1316, %v1295
        %v1318 = vmul.f32 %v1317, %v1316
        %v1319 = vmul.f32 0.5, %v1318
        %v1320 = vsub.f32 1.5, %v1319
        %v1321 = vmul.f32 %v1316, %v1320
        %vm1322 = vweird.f32 %v1295
        %vm1323 = vweird.f32 %v1316
        %vm1324 = vmor %vm1322, %vm1323
        %v1325 = vsel %vm1324, %v1316, %v1321
        %v1326 = vmul.f32 %v1275, %v1305
        %v1327 = vmul.f32 %v1276, %v1315
        %v1328 = vmul.f32 %v1277, %v1325
        %v1330 = vperm.slane %v827, 0
        %v1332 = vmul.f32 %v1326, %v1330
        %v1333 = vmul.f32 %v1327, %v1330
        %v1334 = vmul.f32 %v1328, %v1330
        %v1336 = vperm.slane %v828, 0
        %v1338 = vadd.f32 %v1332, %v1336
        %v1339 = vadd.f32 %v1333, %v1336
        %v1340 = vadd.f32 %v1334, %v1336
        %v1341 = vpack.c.bf16 %v1339, %v1338
        %v1342 = vpack.c.bf16 %v1340, %v1340
        %v1344 = vperm.slane %v833, 0
        %v1350 = vunpack.c.l.b16 %v829
        %v1351 = vunpack.c.l.b16 %v830
        %v1352 = vunpack.c.l.b16 %v831
        %v1353 = vunpack.c.l.b16 %v832
        %v1354 = vpack.c.b16 %v1351, %v1350
        %v1355 = vpack.c.b16 %v1353, %v1352
        %v1359 = vsel %vm851, %v1341, 0
        %v1362 = vsel %vm851, %v1342, 0
        %1364 = vmatpush.bf16.msra.mxu0 0
        %1365 = vmatpush.bf16.msra.mxu0 0
        %1366 = vmatpush.bf16.msra.mxu0 0
        %1367 = vmatpush.bf16.msra.mxu0 0
        %1368 = vmatpush.bf16.msra.mxu0 0
        %1369 = vmatpush.bf16.msra.mxu0 0
        %1370 = vmatpush.bf16.msra.mxu0 %v1355
        %1371 = vmatpush.bf16.msra.mxu0 %v1354
        %1372 = vmatmul.bf16.gmra.mxu0 %v1359
        %v1373 = vpop.f32.mrf.mxu0
        %v1374 = vadd.f32 %v1344, %v1373
        %v1375 = vpop.f32.mrf.mxu0
        %v1376 = vadd.f32 %v1344, %v1375
        %1377 = vmatmul.bf16.gmra.mxu0 %v1362
        %v1378 = vpop.f32.mrf.mxu0
        %v1379 = vadd.f32 %v1344, %v1378
        %v1380 = vpop.f32.mrf.mxu0
        %1381 = vdwg.mxu0
        %v1382 = vmul.f32 %v1374, 0.5
        %v1383 = vmul.f32 %v1376, 0.5
        %v1384 = vmul.f32 %v1379, 0.5
        %v1385 = vmul.f32 %v1374, 0.70710677
        %v1386 = vmul.f32 %v1376, 0.70710677
        %v1387 = vmul.f32 %v1379, 0.70710677
        %vm1388 = vcmp.ge.f32.partialorder %v1385, 0.0
        %vm1389 = vcmp.ge.f32.partialorder %v1386, 0.0
        %vm1390 = vcmp.ge.f32.partialorder %v1387, 0.0
        %v1391 = vsel %vm1388, 1.0, -1.0
        %v1392 = vsel %vm1389, 1.0, -1.0
        %v1393 = vsel %vm1390, 1.0, -1.0
        %v1394 = vand.u32 2147483647, %v1385
        %v1395 = vand.u32 2147483647, %v1386
        %v1396 = vand.u32 2147483647, %v1387
        %v1397 = vmul.f32 %v1394, 0.3275911
        %v1398 = vmul.f32 %v1395, 0.3275911
        %v1399 = vmul.f32 %v1396, 0.3275911
        %v1400 = vadd.f32 %v1397, 1.0
        %v1401 = vadd.f32 %v1398, 1.0
        %v1402 = vadd.f32 %v1399, 1.0
        %v1403 = vrcp.pop %v1400
        %v1404 = vmul.f32 %v1400, %v1403
        %v1405 = vsub.f32 1.0, %v1404
        %v1406 = vmul.f32 %v1403, %v1405
        %v1407 = vadd.f32 %v1403, %v1406
        %vm1408 = vweird.f32 %v1400
        %vm1409 = vweird.f32 %v1403
        %vm1410 = vmor %vm1408, %vm1409
        %v1411 = vsel %vm1410, %v1403, %v1407
        %v1412 = vand.u32 2147483647, %v1400
        %vm1413 = vcmp.eq.f32.partialorder %v1412, 8.507059e+37
        %v1414 = vand.u32 %v1400, 2147483648
        %v1415 = vor.u32 1.1754944e-38, %v1414
        %v1416 = vsel %vm1413, %v1415, %v1411
        %v1417 = vmul.f32 1.0, %v1416
        %v1418 = vrcp.pop %v1401
        %v1419 = vmul.f32 %v1401, %v1418
        %v1420 = vsub.f32 1.0, %v1419
        %v1421 = vmul.f32 %v1418, %v1420
        %v1422 = vadd.f32 %v1418, %v1421
        %vm1423 = vweird.f32 %v1401
        %vm1424 = vweird.f32 %v1418
        %vm1425 = vmor %vm1423, %vm1424
        %v1426 = vsel %vm1425, %v1418, %v1422
        %v1427 = vand.u32 2147483647, %v1401
        %vm1428 = vcmp.eq.f32.partialorder %v1427, 8.507059e+37
        %v1429 = vand.u32 %v1401, 2147483648
        %v1430 = vor.u32 1.1754944e-38, %v1429
        %v1431 = vsel %vm1428, %v1430, %v1426
        %v1432 = vmul.f32 1.0, %v1431
        %v1433 = vrcp.pop %v1402
        %v1434 = vmul.f32 %v1402, %v1433
        %v1435 = vsub.f32 1.0, %v1434
        %v1436 = vmul.f32 %v1433, %v1435
        %v1437 = vadd.f32 %v1433, %v1436
        %vm1438 = vweird.f32 %v1402
        %vm1439 = vweird.f32 %v1433
        %vm1440 = vmor %vm1438, %vm1439
        %v1441 = vsel %vm1440, %v1433, %v1437
        %v1442 = vand.u32 2147483647, %v1402
        %vm1443 = vcmp.eq.f32.partialorder %v1442, 8.507059e+37
        %v1444 = vand.u32 %v1402, 2147483648
        %v1445 = vor.u32 1.1754944e-38, %v1444
        %v1446 = vsel %vm1443, %v1445, %v1441
        %v1447 = vmul.f32 1.0, %v1446
        %v1448 = vmul.f32 %v1417, 1.0614054
        %v1449 = vmul.f32 %v1432, 1.0614054
        %v1450 = vmul.f32 %v1447, 1.0614054
        %v1451 = vadd.f32 %v1448, -1.4531521
        %v1452 = vadd.f32 %v1449, -1.4531521
        %v1453 = vadd.f32 %v1450, -1.4531521
        %v1454 = vmul.f32 %v1451, %v1417
        %v1455 = vmul.f32 %v1452, %v1432
        %v1456 = vmul.f32 %v1453, %v1447
        %v1457 = vadd.f32 %v1454, 1.4214138
        %v1458 = vadd.f32 %v1455, 1.4214138
        %v1459 = vadd.f32 %v1456, 1.4214138
        %v1460 = vmul.f32 %v1457, %v1417
        %v1461 = vmul.f32 %v1458, %v1432
        %v1462 = vmul.f32 %v1459, %v1447
        %v1463 = vadd.f32 %v1460, -0.28449672
        %v1464 = vadd.f32 %v1461, -0.28449672
        %v1465 = vadd.f32 %v1462, -0.28449672
        %v1466 = vmul.f32 %v1463, %v1417
        %v1467 = vmul.f32 %v1464, %v1432
        %v1468 = vmul.f32 %v1465, %v1447
        %v1469 = vadd.f32 %v1466, 0.2548296
        %v1470 = vadd.f32 %v1467, 0.2548296
        %v1471 = vadd.f32 %v1468, 0.2548296
        %v1472 = vmul.f32 %v1469, %v1417
        %v1473 = vmul.f32 %v1470, %v1432
        %v1474 = vmul.f32 %v1471, %v1447
        %v1475 = vsub.f32 0.0, %v1394
        %v1476 = vsub.f32 0.0, %v1395
        %v1477 = vsub.f32 0.0, %v1396
        %v1478 = vmul.f32 %v1475, %v1394
        %v1479 = vmul.f32 %v1476, %v1395
        %v1480 = vmul.f32 %v1477, %v1396
        %v1481 = vmul.f32 %v1478, 1.442695
        %v1482 = vpow.pop %v1481
        %v1483 = vmul.f32 %v1479, 1.442695
        %v1484 = vpow.pop %v1483
        %v1485 = vmul.f32 %v1480, 1.442695
        %v1486 = vpow.pop %v1485
        %v1487 = vmul.f32 %v1472, %v1482
        %v1488 = vmul.f32 %v1473, %v1484
        %v1489 = vmul.f32 %v1474, %v1486
        %v1490 = vsub.f32 1.0, %v1487
        %v1491 = vsub.f32 1.0, %v1488
        %v1492 = vsub.f32 1.0, %v1489
        %v1493 = vmul.f32 %v1391, %v1490
        %v1494 = vmul.f32 %v1392, %v1491
        %v1495 = vmul.f32 %v1393, %v1492
        %v1496 = vadd.f32 %v1493, 1.0
        %v1497 = vadd.f32 %v1494, 1.0
        %v1498 = vadd.f32 %v1495, 1.0
        %v1499 = vmul.f32 %v1382, %v1496
        %v1500 = vmul.f32 %v1383, %v1497
        %v1501 = vmul.f32 %v1384, %v1498
        %v1502 = vpack.c.bf16 %v1500, %v1499
        %v1503 = vpack.c.bf16 %v1501, %v1501
        %v1520 = vunpack.c.l.b16 %v834
        %v1521 = vunpack.c.l.b16 %v835
        %v1522 = vunpack.c.l.b16 %v836
        %v1523 = vunpack.c.l.b16 %v837
        %v1524 = vunpack.c.l.b16 %v838
        %v1525 = vunpack.c.l.b16 %v839
        %v1526 = vunpack.c.l.b16 %v840
        %v1527 = vunpack.c.l.b16 %v841
        %v1528 = vunpack.c.l.b16 %v842
        %v1529 = vunpack.c.l.b16 %v843
        %v1530 = vunpack.c.l.b16 %v844
        %v1531 = vunpack.c.l.b16 %v845
        %v1532 = vunpack.c.l.b16 %v846
        %v1533 = vunpack.c.l.b16 %v847
        %v1534 = vunpack.c.l.b16 %v848
        %v1535 = vunpack.c.l.b16 %v849
        %v1536 = vpack.c.b16 %v1521, %v1520
        %v1537 = vpack.c.b16 %v1523, %v1522
        %v1538 = vpack.c.b16 %v1525, %v1524
        %v1539 = vpack.c.b16 %v1527, %v1526
        %v1540 = vpack.c.b16 %v1529, %v1528
        %v1541 = vpack.c.b16 %v1531, %v1530
        %v1542 = vpack.c.b16 %v1533, %v1532
        %v1543 = vpack.c.b16 %v1535, %v1534
        %1552 = vmatpush.bf16.msra.mxu0 %v1543
        %1553 = vmatpush.bf16.msra.mxu0 %v1542
        %1554 = vmatpush.bf16.msra.mxu0 %v1541
        %1555 = vmatpush.bf16.msra.mxu0 %v1540
        %1556 = vmatpush.bf16.msra.mxu0 %v1539
        %1557 = vmatpush.bf16.msra.mxu0 %v1538
        %1558 = vmatpush.bf16.msra.mxu0 %v1537
        %1559 = vmatpush.bf16.msra.mxu0 %v1536
        %1560 = vmatmul.bf16.gmra.mxu0 %v1502
        %v1561 = vpop.f32.mrf.mxu0
        %v1562 = vadd.f32 0.0, %v1561
        %v1563 = vpop.f32.mrf.mxu0
        %v1564 = vadd.f32 0.0, %v1563
        %1565 = vmatmul.bf16.gmra.mxu0 %v1503
        %v1566 = vpop.f32.mrf.mxu0
        %v1567 = vadd.f32 0.0, %v1566
        %v1568 = vpop.f32.mrf.mxu0
        %1569 = vdwg.mxu0
        %v1570 = vadd.f32 %v1260, %v1562
        %v1571 = vadd.f32 %v1261, %v1564
        %v1572 = vadd.f32 %v1262, %v1567
        %v1574 = vperm.slane %v850, 0
        %v1576 = vadd.f32 %v1570, %v1574
        %v1577 = vadd.f32 %v1571, %v1574
        %v1578 = vadd.f32 %v1572, %v1574
        %v1579 = vld [vmem:[%s16] sm:$0x1]
        %v1580 = vld [vmem:[%s17] sm:$0x1]
        %v1581 = vsel %vm851, %v1576, 0.0
        %1582 = vadd.xlane.f32.xlu0 %v1581
        %v1583 = vpop.xlane.xlu0 %1582
        %v1584 = vsel %vm851, %v1577, 0.0
        %1585 = vadd.xlane.f32.xlu0 %v1584
        %v1586 = vpop.xlane.xlu0 %1585
        %v1587 = vsel %vm858, %v1578, 0.0
        %1588 = vadd.xlane.f32.xlu0 %v1587
        %v1589 = vpop.xlane.xlu0 %1588
        %v1590 = vmul.f32 %v1583, %v868
        %v1591 = vmul.f32 %v1586, %v868
        %v1592 = vmul.f32 %v1589, %v868
        %v1593 = vsub.f32 %v1576, %v1590
        %v1594 = vsub.f32 %v1577, %v1591
        %v1595 = vsub.f32 %v1578, %v1592
        %v1596 = vmul.f32 %v1593, %v1593
        %v1597 = vmul.f32 %v1594, %v1594
        %v1598 = vmul.f32 %v1595, %v1595
        %v1599 = vsel %vm851, %v1596, 0.0
        %1600 = vadd.xlane.f32.xlu0 %v1599
        %v1601 = vpop.xlane.xlu0 %1600
        %v1602 = vsel %vm851, %v1597, 0.0
        %1603 = vadd.xlane.f32.xlu0 %v1602
        %v1604 = vpop.xlane.xlu0 %1603
        %v1605 = vsel %vm858, %v1598, 0.0
        %1606 = vadd.xlane.f32.xlu0 %v1605
        %v1607 = vpop.xlane.xlu0 %1606
        %v1608 = vmul.f32 %v1601, %v868
        %v1609 = vmul.f32 %v1604, %v868
        %v1610 = vmul.f32 %v1607, %v868
        %v1611 = vadd.f32 %v1608, 1e-05
        %v1612 = vadd.f32 %v1609, 1e-05
        %v1613 = vadd.f32 %v1610, 1e-05
        %v1614 = vrsqrt.pop %v1611
        %v1615 = vmul.f32 %v1614, %v1611
        %v1616 = vmul.f32 %v1615, %v1614
        %v1617 = vmul.f32 0.5, %v1616
        %v1618 = vsub.f32 1.5, %v1617
        %v1619 = vmul.f32 %v1614, %v1618
        %vm1620 = vweird.f32 %v1611
        %vm1621 = vweird.f32 %v1614
        %vm1622 = vmor %vm1620, %vm1621
        %v1623 = vsel %vm1622, %v1614, %v1619
        %v1624 = vrsqrt.pop %v1612
        %v1625 = vmul.f32 %v1624, %v1612
        %v1626 = vmul.f32 %v1625, %v1624
        %v1627 = vmul.f32 0.5, %v1626
        %v1628 = vsub.f32 1.5, %v1627
        %v1629 = vmul.f32 %v1624, %v1628
        %vm1630 = vweird.f32 %v1612
        %vm1631 = vweird.f32 %v1624
        %vm1632 = vmor %vm1630, %vm1631
        %v1633 = vsel %vm1632, %v1624, %v1629
        %v1634 = vrsqrt.pop %v1613
        %v1635 = vmul.f32 %v1634, %v1613
        %v1636 = vmul.f32 %v1635, %v1634
        %v1637 = vmul.f32 0.5, %v1636
        %v1638 = vsub.f32 1.5, %v1637
        %v1639 = vmul.f32 %v1634, %v1638
        %vm1640 = vweird.f32 %v1613
        %vm1641 = vweird.f32 %v1634
        %vm1642 = vmor %vm1640, %vm1641
        %v1643 = vsel %vm1642, %v1634, %v1639
        %v1644 = vmul.f32 %v1593, %v1623
        %v1645 = vmul.f32 %v1594, %v1633
        %v1646 = vmul.f32 %v1595, %v1643
        %v1648 = vperm.slane %v1579, 0
        %v1650 = vmul.f32 %v1644, %v1648
        %v1651 = vmul.f32 %v1645, %v1648
        %v1652 = vmul.f32 %v1646, %v1648
        %v1654 = vperm.slane %v1580, 0
        %v1656 = vadd.f32 %v1650, %v1654
        %v1657 = vadd.f32 %v1651, %v1654
        %v1658 = vadd.f32 %v1652, %v1654
        %v1659 = vld [vmem:[%s18] sm:$0xff]
        %v1660 = vld [vmem:[%s18 + $0x8] sm:$0xff]
        %v1661 = vld [vmem:[%s18 + $0x10] sm:$0xff]
        %v1662 = vld [vmem:[%s18 + $0x18] sm:$0xff]
        %v1663 = vpack.c.bf16 %v1657, %v1656
        %v1664 = vpack.c.bf16 %v1658, %v1658
        %v1665 = vld [vmem:[%s19] sm:$0x3]
        %v1667 = vperm.slane %v1665, 0
        %v1668 = vperm.slane %v1665, 1
        %v1675 = vunpack.c.l.b16 %v1659
        %v1676 = vunpack.c.h.b16 %v1659
        %v1677 = vunpack.c.l.b16 %v1660
        %v1678 = vunpack.c.h.b16 %v1660
        %v1679 = vunpack.c.l.b16 %v1661
        %v1680 = vunpack.c.h.b16 %v1661
        %v1681 = vunpack.c.l.b16 %v1662
        %v1682 = vunpack.c.h.b16 %v1662
        %v1683 = vpack.c.b16 %v1677, %v1675
        %v1684 = vpack.c.b16 %v1678, %v1676
        %v1685 = vpack.c.b16 %v1681, %v1679
        %v1686 = vpack.c.b16 %v1682, %v1680
        %v1692 = vsel %vm851, %v1663, 0
        %v1695 = vsel %vm851, %v1664, 0
        %1697 = vmatpush.bf16.msra.mxu0 0
        %1698 = vmatpush.bf16.msra.mxu0 0
        %1699 = vmatpush.bf16.msra.mxu0 0
        %1700 = vmatpush.bf16.msra.mxu0 0
        %1701 = vmatpush.bf16.msra.mxu0 0
        %1702 = vmatpush.bf16.msra.mxu0 0
        %1703 = vmatpush.bf16.msra.mxu0 %v1685
        %1704 = vmatpush.bf16.msra.mxu0 %v1683
        %1705 = vmatmul.bf16.gmra.mxu0 %v1692
        %v1706 = vpop.f32.mrf.mxu0
        %v1707 = vadd.f32 %v1667, %v1706
        %v1708 = vpop.f32.mrf.mxu0
        %v1709 = vadd.f32 %v1667, %v1708
        %1710 = vmatmul.bf16.gmra.mxu0 %v1695
        %v1711 = vpop.f32.mrf.mxu0
        %v1712 = vadd.f32 %v1667, %v1711
        %v1713 = vpop.f32.mrf.mxu0
        %1714 = vdwg.mxu0
        %1715 = vmatpush.bf16.msra.mxu0 0
        %1716 = vmatpush.bf16.msra.mxu0 0
        %1717 = vmatpush.bf16.msra.mxu0 0
        %1718 = vmatpush.bf16.msra.mxu0 0
        %1719 = vmatpush.bf16.msra.mxu0 0
        %1720 = vmatpush.bf16.msra.mxu0 0
        %1721 = vmatpush.bf16.msra.mxu0 %v1686
        %1722 = vmatpush.bf16.msra.mxu0 %v1684
        %1723 = vmatmul.bf16.gmra.mxu0 %v1692
        %v1724 = vpop.f32.mrf.mxu0
        %v1725 = vadd.f32 %v1668, %v1724
        %v1726 = vpop.f32.mrf.mxu0
        %v1727 = vadd.f32 %v1668, %v1726
        %1728 = vmatmul.bf16.gmra.mxu0 %v1695
        %v1729 = vpop.f32.mrf.mxu0
        %v1730 = vadd.f32 %v1668, %v1729
        %v1731 = vpop.f32.mrf.mxu0
        %1732 = vdwg.mxu0
        %vm1739 = vcmask 1046528
        %v1740 = vrot.slane %v1707, 1
        %v1741 = vrot.slane %v1709, 1
        %v1742 = vsel %vm1739, %v1740, %v1741
        %v1743 = vrot.slane %v1725, 1
        %v1744 = vrot.slane %v1727, 1
        %v1745 = vsel %vm1739, %v1743, %v1744
        %v1746 = vrot.slane %v1712, 1
        %v1747 = vsel %vm1739, %v1741, %v1746
        %v1748 = vrot.slane %v1730, 1
        %v1749 = vsel %vm1739, %v1744, %v1748
        %1754 = vst [vmem:[%s705] sm:$0xff] %v1742
        %1755 = vst [vmem:[%s705 + $0x8] sm:$0xff] %v1745
        %1756 = vst [vmem:[%s705 + $0x10] sm:$0xff] %v1747
        %1757 = vst [vmem:[%s705 + $0x18] sm:$0xff] %v1749
        %v1758 = vld [vmem:[%s724] sm:$0xff]
        %v1759 = vld [vmem:[%s724 + $0x8] sm:$0xff]
        %v1760 = vld [vmem:[%s724 + $0x10] sm:$0xff]
        %v1761 = vld [vmem:[%s724 + $0x18] sm:$0xff]
        %v1766 = vrot.slane %v1758, 7
        %v1767 = vrot.slane %v1759, 7
        %v1768 = vrot.slane %v1760, 7
        %v1769 = vsel %vm804, %v1766, %v1768
        %v1770 = vrot.slane %v1761, 7
        %v1771 = vsel %vm804, %v1767, %v1770
        %v1778 = vsub.f32 %v1707, %v1766
        %v1779 = vsub.f32 %v1725, %v1767
        %v1780 = vsub.f32 %v1709, %v1769
        %v1781 = vsub.f32 %v1727, %v1771
        %v1782 = vsub.f32 %v1712, %v1768
        %v1783 = vsub.f32 %v1730, %v1770
        %v1784 = vmul.f32 %v1778, %v1778
        %v1785 = vmul.f32 %v1779, %v1779
        %v1786 = vmul.f32 %v1780, %v1780
        %v1787 = vmul.f32 %v1781, %v1781
        %v1788 = vmul.f32 %v1782, %v1782
        %v1789 = vmul.f32 %v1783, %v1783
        %vm1790 = vcmask 1047553
        %v1791 = vsel %vm1790, %v1784, 0.0
        %v1792 = vsel %vm1790, %v1785, 0.0
        %v1793 = vadd.f32 %v1791, %v1792
        %1794 = vadd.xlane.f32.xlu0 %v1793
        %v1795 = vpop.xlane.xlu0 %1794
        %v1796 = vadd.f32 %v1786, %v1787
        %1797 = vadd.xlane.f32.xlu0 %v1796
        %v1798 = vpop.xlane.xlu0 %1797
        %v1799 = vsel %vm804, %v1788, 0.0
        %v1800 = vsel %vm804, %v1789, 0.0
        %v1801 = vadd.f32 %v1799, %v1800
        %1802 = vadd.xlane.f32.xlu0 %v1801
        %v1803 = vpop.xlane.xlu0 %1802
        %v1804 = vrcp.pop 256.0
        %v1805 = vmul.f32 256.0, %v1804
        %v1806 = vsub.f32 1.0, %v1805
        %v1807 = vmul.f32 %v1804, %v1806
        %v1808 = vadd.f32 %v1804, %v1807
        %vm1809 = vweird.f32 %v1804
        %v1810 = vsel %vm1809, %v1804, %v1808
        %v1811 = vmul.f32 %v1795, %v1810
        %v1812 = vmul.f32 %v1798, %v1810
        %v1813 = vmul.f32 %v1803, %v1810
        %v1814 = vrot.slane %v749, 7
        %v1815 = vrot.slane %v750, 7
        %v1816 = vsel %vm804, %v1814, %v1815
        %v1820 = vmul.f32 %v1811, %v1814
        %v1821 = vmul.f32 %v1812, %v1816
        %v1822 = vmul.f32 %v1813, %v1815
        %v1826 = vrot.slane %v1820, 1
        %v1827 = vrot.slane %v1821, 1
        %v1828 = vsel %vm1739, %v1826, %v1827
        %v1829 = vrot.slane %v1822, 1
        %v1830 = vsel %vm1739, %v1827, %v1829
        %vm1833 = vcmask 7168
        %v1834 = vsel %vm1833, %v1828, 0.0
        %v1835 = vsel %vm1833, %v1830, 0.0
        %v1836 = vadd.f32 %v1834, %v1835
        %1837 = vadd.xlane.f32.xlu0 %v1836
        %v1838 = vpop.xlane.xlu0 %1837
        %v1839 = vrot.slane %v1838, 4
        %v1840 = vadd.f32 %v1838, %v1839
        %v1841 = vrot.slane %v1840, 2
        %v1842 = vadd.f32 %v1840, %v1841
        %v1843 = vrot.slane %v1842, 1
        %v1844 = vadd.f32 %v1842, %v1843
        %s1845 = vtos %v1844
        %v1846 = vstv %s1845
        %v1847 = vsel %vm1833, %v749, 0.0
        %v1848 = vsel %vm1833, %v750, 0.0
        %v1849 = vadd.f32 %v1847, %v1848
        %1850 = vadd.xlane.f32.xlu0 %v1849
        %v1851 = vpop.xlane.xlu0 %1850
        %v1852 = vrot.slane %v1851, 4
        %v1853 = vadd.f32 %v1851, %v1852
        %v1854 = vrot.slane %v1853, 2
        %v1855 = vadd.f32 %v1853, %v1854
        %v1856 = vrot.slane %v1855, 1
        %v1857 = vadd.f32 %v1855, %v1856
        %s1858 = vtos %v1857
        %v1859 = vstv %s1858
        %v1860 = vsel %vm1833, %v1846, %v1859
        %vm1861 = vcmask 8192
        %1862 = vst.msk [vmem:[%s727] sm:$0x1] %vm1861, %v1860
        %s1863 = sand.u32 %s501, 1
        %s1864 = scalar_lea.sflag [#allocation3], %s1863
        %s1865 = sand.u32 %s501, 1
        %s1866 = smul.addr %s1865, 32
        %s1867 = scalar_lea.vmem [#allocation2], %s1866
        %p1868 = scmp.lt.s32.totalorder %s37, 1
        %s1869 = scalar_select %p1868, %s37, 1
        %s1870 = scalar_lea.vmem %s22, %s1869
        // Predicated region
        $region105: #{forward.3} parent=103 // pred_check
          %p1871 = pneg %p511
        $region106: #{forward.3} parent=103 // pred_check_branch
          %1873 = sbr.rel (%p1871) target = $region108
        $region107: #{forward.3} parent=103 // pred_region
          %1875 = vsyncadd %s1864, 0
          %s1876 = smul.addr %s37, 4
          %s1877 = smul.addr %s1876, 8
          %s1878 = scalar_lea.hbm %s21, %s1877
          %s1879 = sshll.u32 %s1867, 4
          %s1880 = int_to_ptr.vmem [resolvable:$true] %s1879
          %s1881 = sshll.u32 %s1878, 4
          %s1882 = int_to_ptr.hbm [resolvable:$true] %s1881
          %1887 = dma.vmem_to_hbm [thread:$0]  %s1880, 512, %s1882, %s1864, 256, 256, 16
        $region108: #{forward.3} parent=103 // pred_fallthru
          _
        // Predicated region
        $region109: #{forward.3} parent=103 // pred_check
          %p1888 = pneg %p537
        $region110: #{forward.3} parent=103 // pred_check_branch
          %1890 = sbr.rel (%p1888) target = $region112
        $region111: #{forward.3} parent=103 // pred_region
          _
        $region112: #{forward.3} parent=103 // pred_fallthru
          _
      $region104: #{forward.3} parent=5 // pred_fallthru
        _
      %p1891 = scmp.le.s32.totalorder 2, %s32
      // Predicated region
      $region113: #{forward.3} parent=5 // pred_check
        %p1892 = pneg %p1891
      $region114: #{forward.3} parent=5 // pred_check_branch
        %1894 = sbr.rel (%p1892) target = $region116
      $region115: #{forward.3} parent=5 // pred_region
        %s1895 = ssub.s32 %s32, 2
        // Predicated region
        $region117: #{forward.3} parent=115 // pred_check
          %p1896 = pneg %p517
        $region118: #{forward.3} parent=115 // pred_check_branch
          %1898 = sbr.rel (%p1896) target = $region120
        $region119: #{forward.3} parent=115 // pred_region
          %s1899 = sand.u32 %s502, 1
          %s1900 = scalar_lea.sflag [#allocation3], %s1899
          %s1901 = sand.u32 %s502, 1
          %s1902 = smul.addr %s1901, 32
          %s1903 = scalar_lea.vmem [#allocation2], %s1902
          %1905 = dma.done %s1900, 512
        $region120: #{forward.3} parent=115 // pred_fallthru
          _
        // Predicated region
        $region121: #{forward.3} parent=115 // pred_check
          %p1906 = pneg %p543
        $region122: #{forward.3} parent=115 // pred_check_branch
          %1908 = sbr.rel (%p1906) target = $region124
        $region123: #{forward.3} parent=115 // pred_region
          %p1909 = scmp.lt.s32.totalorder %s38, 1
          %s1910 = scalar_select %p1909, %s38, 1
          %s1911 = scalar_lea.vmem %s22, %s1910
        $region124: #{forward.3} parent=115 // pred_fallthru
          _
      $region116: #{forward.3} parent=5 // pred_fallthru
        _
    $region6: #{forward.3} parent=1 // loop_footer
      %s36 = sadd.s32 1, %s32
    $region7: #{forward.3} parent=1 // loop_footer_branch
      %31 = sbr.rel target = $region3
    $region8: #{forward.3} parent=1 // loop_exit
      _
    %1912 = vsyncpa [#allocation3], 1
    %s1913 = scalar_lea.sflag [#allocation3], 1
    %1914 = vsyncpa %s1913, 1

</llo_original>
